<compile_context>
chip_gen: v7x
topology: tpu7x:2x2x1
jax: 0.10.0
libtpu: 0.0.40
codegen_flags: <defaults>
</compile_context>

<pallas_src>
import numpy as np
import jax
import jax.numpy as jnp
from jax import lax
from jax.experimental import pallas as pl
from jax.experimental.pallas import tpu as pltpu

# ----------------------------- configuration --------------------------------
NUM_ANGLE_BIN = 12
NUM_VIEWPOINT = 12
NUM_PROPOSAL = 256          # forward does features.view(B, 128, 16, 16) -> 256
FEAT_DIM = 128
PLANES = FEAT_DIM // 2      # SpatialCGNL planes = 64
GROUPS = 4
C_OUT = 2 + 3 + 1 + 1 + NUM_ANGLE_BIN * 2 + NUM_VIEWPOINT   # 43
C3_PAD = 48                 # conv3 rows padded to whole sublane tiles
BN_EPS = 1e-5
GN_EPS = 1e-5


# ------------------------------ Pallas kernel --------------------------------
def _proposal_kernel(x_ref, seg_ref, segt_ref, wtpg_ref, gpp_ref, wz_ref,
                     gz_ref, gztg_ref, w1_ref, w2_ref, w3_ref, cp_ref,
                     out_ref):
    f32, bf16 = jnp.float32, jnp.bfloat16
    inv_n = 1.0 / float((FEAT_DIM // GROUPS) * NUM_PROPOSAL)

    def per_chunk(stat):
        # (G, L) f32 -> (G, TBp) f32 : sum over each batch element's 256 lanes
        return jnp.dot(stat.astype(bf16), segt_ref[...],
                       preferred_element_type=f32)

    def to_lanes(vals):
        # (G, TBp) f32 -> (G, L) f32 : broadcast per-batch values onto its lanes
        return jnp.dot(vals.astype(bf16), seg_ref[...],
                       preferred_element_type=f32)

    x = x_ref[...]                                                   # (128, L) bf16

    # ---- SpatialCGNL(128, 64, use_scale=False, groups=4), dot-product kernel ----
    # fused t / p / g 1x1 convs: one (192,128) @ (128,L) MXU matmul
    tpg = jnp.dot(wtpg_ref[...], x, preferred_element_type=f32)      # (192, L)
    t = tpg[0:PLANES]
    p = tpg[PLANES:2 * PLANES]
    g = tpg[2 * PLANES:3 * PLANES]

    # per-(group, batch) attention scalar, expanded back to group channels:
    pg_b = per_chunk(p * g)                                          # (64, TBp)
    att_c = jnp.dot(gpp_ref[...], pg_b.astype(bf16),
                    preferred_element_type=f32)                      # (64, TBp)
    y = (t * to_lanes(att_c)).astype(bf16)                           # (64, L)

    # grouped 1x1 conv z (block-diagonal weights): 64 -> 128, no bias
    z = jnp.dot(wz_ref[...], y, preferred_element_type=f32)          # (128, L)

    # ---- GroupNorm(4, 128) per batch element (gamma folded, beta in conv1 bias) ----
    zc = per_chunk(z)                                                # (128, TBp)
    zqc = per_chunk(z * z)                                           # (128, TBp)
    mu = jnp.dot(gz_ref[...], zc.astype(bf16),
                 preferred_element_type=f32) * inv_n                 # (4, TBp)
    ex2 = jnp.dot(gz_ref[...], zqc.astype(bf16),
                  preferred_element_type=f32) * inv_n                # (4, TBp)
    rstd = lax.rsqrt(jnp.maximum(ex2 - mu * mu, 0.0) + GN_EPS)       # (4, TBp)
    # one lane-expansion matmul for both scale and shift (aligned concat)
    ab = jnp.concatenate(
        [jnp.dot(gztg_ref[...], rstd.astype(bf16), preferred_element_type=f32),
         jnp.dot(gztg_ref[...], (-mu * rstd).astype(bf16),
                 preferred_element_type=f32)], axis=0)               # (256, TBp)
    ab_ch = to_lanes(ab)                                             # (256, L)
    net = z * ab_ch[0:FEAT_DIM] + ab_ch[FEAT_DIM:2 * FEAT_DIM] + x.astype(f32)

    # ---- conv1+bn1+relu, conv2+bn2+relu (BN + GN beta folded), conv3 (padded) ----
    net = jnp.maximum(
        jnp.dot(w1_ref[...], net.astype(bf16), preferred_element_type=f32)
        + cp_ref[0:FEAT_DIM, :], 0.0)
    net = jnp.maximum(
        jnp.dot(w2_ref[...], net.astype(bf16), preferred_element_type=f32)
        + cp_ref[FEAT_DIM:2 * FEAT_DIM, :], 0.0)
    out_ref[...] = (jnp.dot(w3_ref[...], net.astype(bf16),
                            preferred_element_type=f32)
                    + cp_ref[2 * FEAT_DIM:2 * FEAT_DIM + C3_PAD, :])


# ------------------------------ host-side helpers ----------------------------
def _seg_matrices(tb, n):
    """Chunk indicator (TBp, tb*n) and its transpose (bf16); TBp padded to >=8."""
    tbp = max(8, -(-tb // 8) * 8)
    lane_chunk = np.arange(tb * n) // n
    seg = (lane_chunk[None, :] == np.arange(tbp)[:, None]).astype(np.float32)
    return jnp.asarray(seg, jnp.bfloat16), jnp.asarray(seg.T, jnp.bfloat16)


def _tpu_vmem_bytes():
    try:
        return int(pltpu.get_tpu_info().vmem_capacity_bytes)
    except Exception:
        return 64 << 20


def _tpu_tensorcores_per_chip():
    try:
        kind = jax.devices()[0].device_kind.lower()
    except Exception:
        kind = ""
    return 2 if "v7" in kind else 1


def _pick_tb(batch):
    """Batch elements per grid step: 1 step on 1-TC parts (v5e/v6e), 2 VMEM-capped
    steps on 2-TC parts (v7x)."""
    lane_cap = 8192 if _tpu_vmem_bytes() >= (96 << 20) else 4096
    max_tb = max(1, lane_cap // NUM_PROPOSAL)
    min_steps = 2 if (_tpu_tensorcores_per_chip() >= 2 and batch >= 2) else 1
    best = 1
    for d in range(1, batch + 1):
        if batch % d == 0 and d <= max_tb and batch // d >= min_steps:
            best = d
    return best


def prepare_params(params):
    """Fuse / fold / cast parameters once on the host."""
    (wt, wp, wg, wz, gng, gnb, w1, s1, h1, w2, s2, h2, w3, b3) = params
    bf16 = jnp.bfloat16

    # fused t/p/g weight (192, 128)
    wtpg = jnp.concatenate([wt, wp, wg], axis=0).astype(bf16)

    # block-diagonal grouped conv z weight (128, 64)
    zoc = FEAT_DIM // GROUPS        # 32 out channels / group
    gc = PLANES // GROUPS           # 16 in channels / group
    wz_np = np.zeros((FEAT_DIM, PLANES), np.float32)
    wz_host = np.asarray(wz)
    for gi in range(GROUPS):
        wz_np[gi * zoc:(gi + 1) * zoc, gi * gc:(gi + 1) * gc] = \
            wz_host[gi * zoc:(gi + 1) * zoc]
    wz_bd = jnp.asarray(wz_np, bf16)

    # attention "sum within group then broadcast back" matrix (64, 64)
    gidx_p = np.arange(PLANES) // gc
    gpp = jnp.asarray((gidx_p[:, None] == gidx_p[None, :]).astype(np.float32), bf16)

    # GroupNorm group indicator (4, 128) and gamma-folded expansion (128, 4)
    gidx_c = np.arange(FEAT_DIM) // zoc
    gz_np = (np.arange(GROUPS)[:, None] == gidx_c[None, :]).astype(np.float32)
    gz = jnp.asarray(gz_np, bf16)
    gztg = (jnp.asarray(gz_np.T) * gng).astype(bf16)

    # conv1/conv2 with BN folded; GN beta folded into the conv1 bias
    w1s = w1 * s1
    w2s = w2 * s2
    h1_eff = h1 + jnp.dot(w1s, gnb)

    # conv3 zero-padded to 48 rows (unmasked full-tile output stores)
    w3p = jnp.zeros((C3_PAD, FEAT_DIM), jnp.float32).at[:C_OUT].set(w3).astype(bf16)
    b3p = jnp.zeros((FEAT_DIM, 1), jnp.float32).at[:C_OUT].set(b3)

    # packed per-channel constants: [h1_eff; h2; b3(padded)] -> (384, 1) f32
    cpack = jnp.concatenate([h1_eff, h2, b3p], axis=0)

    return dict(
        wtpg=wtpg, wz_bd=wz_bd, gpp=gpp, gz=gz, gztg=gztg,
        w1s=w1s.astype(bf16), w2s=w2s.astype(bf16), w3p=w3p, cpack=cpack,
        # full-precision copies for the pure-JAX reference
        gng=gng, gnb=gnb, h1=h1, h2=h2, w3=w3.astype(bf16), b3=b3)


# --------------------------------- wrapper -----------------------------------
def proposal_net_pallas(features, prep):
    """features: (B, 128, 256) f32 -> net: (B, C_OUT, 256) f32."""
    B = features.shape[0]
    N = NUM_PROPOSAL
    tb = _pick_tb(B)
    steps = B // tb
    L = tb * N

    # layout plumbing: (B, C, N) -> lane-dense (C, B*N) bf16 slab
    xf = jnp.transpose(features, (1, 0, 2)).reshape(FEAT_DIM, B * N)
    xf = xf.astype(jnp.bfloat16)
    seg, segT = _seg_matrices(tb, N)

    consts = [seg, segT, prep['wtpg'], prep['gpp'], prep['wz_bd'],
              prep['gz'], prep['gztg'], prep['w1s'], prep['w2s'],
              prep['w3p'], prep['cpack']]

    def const_spec(a):
        nd = a.ndim
        return pl.BlockSpec(a.shape, lambda s, _nd=nd: (0,) * _nd)

    vmem_limit = (100 * 1024 * 1024 if _tpu_vmem_bytes() >= (96 << 20)
                  else 48 * 1024 * 1024)

    out2d = pl.pallas_call(
        _proposal_kernel,
        out_shape=jax.ShapeDtypeStruct((C3_PAD, B * N), jnp.float32),
        grid=(steps,),
        in_specs=[pl.BlockSpec((FEAT_DIM, L), lambda s: (0, s))] +
                 [const_spec(a) for a in consts],
        out_specs=pl.BlockSpec((C3_PAD, L), lambda s: (0, s)),
        compiler_params=pltpu.CompilerParams(
            dimension_semantics=("parallel",),
            vmem_limit_bytes=vmem_limit),
    )(xf, *consts)

    return out2d[:C_OUT].reshape(C_OUT, B, N).transpose(1, 0, 2)   # (B, C_OUT, N)


def decode_scores_jax(net, aggregated_xyz, num_angle_bin, num_viewpoint):
    """Exact port of decode_scores (slicing glue in plain JAX)."""
    net_t = jnp.transpose(net, (0, 2, 1))                     # (B, N, C_OUT)
    end_points = {}
    end_points['aggregated_vote_xyz'] = aggregated_xyz
    end_points['objectness_scores'] = net_t[:, :, 0:2]
    end_points['center'] = aggregated_xyz + net_t[:, :, 2:5]
    end_points['width'] = net_t[:, :, 5:6]
    end_points['quality'] = net_t[:, :, 6:7]
    end_points['angle_scores'] = net_t[:, :, 7:7 + num_angle_bin]
    arn = net_t[:, :, 7 + num_angle_bin:7 + 2 * num_angle_bin]
    end_points['angle_residuals_normalized'] = arn
    end_points['angle_residuals'] = arn * (np.pi / num_angle_bin)
    end_points['viewpoint_scores'] = net_t[:, :,
                                           7 + 2 * num_angle_bin:
                                           7 + 2 * num_angle_bin + num_viewpoint]
    return end_points


def proposal_module_forward(xyz, features, prep):
    net = proposal_net_pallas(features, prep)
    return decode_scores_jax(net, xyz, NUM_ANGLE_BIN, NUM_VIEWPOINT)


# ------------------------- deterministic parameters --------------------------
def init_params(key):
    ks = jax.random.split(key, 24)
    sc = 0.05

    def n(k, shape, s=sc):
        return jax.random.normal(k, shape, dtype=jnp.float32) * s

    # SpatialCGNL weights (1x1 convs, no bias)
    wt = n(ks[0], (PLANES, FEAT_DIM))
    wp = n(ks[1], (PLANES, FEAT_DIM))
    wg = n(ks[2], (PLANES, FEAT_DIM))
    wz = n(ks[3], (FEAT_DIM, PLANES // GROUPS))                # grouped conv z
    gn_gamma = 1.0 + n(ks[4], (FEAT_DIM, 1), 0.1)
    gn_beta = n(ks[5], (FEAT_DIM, 1), 0.1)

    def conv_bn(k0, k1, k2, k3, k4, k5):
        w = n(k0, (FEAT_DIM, FEAT_DIM))
        b = n(k1, (FEAT_DIM, 1), 0.1)
        gamma = 1.0 + n(k2, (FEAT_DIM, 1), 0.1)
        beta = n(k3, (FEAT_DIM, 1), 0.1)
        mean = n(k4, (FEAT_DIM, 1), 0.1)
        var = jax.random.uniform(k5, (FEAT_DIM, 1), jnp.float32, 0.5, 1.5)
        scale = gamma * lax.rsqrt(var + BN_EPS)
        shift = (b - mean) * scale + beta
        return w, scale, shift

    w1, s1, h1 = conv_bn(ks[6], ks[7], ks[8], ks[9], ks[10], ks[11])
    w2, s2, h2 = conv_bn(ks[12], ks[13], ks[14], ks[15], ks[16], ks[17])

    w3 = n(ks[18], (C_OUT, FEAT_DIM))
    b3 = n(ks[19], (C_OUT, 1), 0.1)

    return (wt, wp, wg, wz, gn_gamma, gn_beta,
            w1, s1, h1, w2, s2, h2, w3, b3)


# ------------------------------ pure-JAX reference ----------------------------
def _reference_net_single(x, pp):
    """Module-faithful math (bf16 matmul operands, f32 accum, two-pass GN)."""
    xb = x.astype(jnp.bfloat16)
    tpg = jnp.dot(pp['wtpg'], xb, preferred_element_type=jnp.float32)
    t, p, g = tpg[:PLANES], tpg[PLANES:2 * PLANES], tpg[2 * PLANES:]
    gc = PLANES // GROUPS
    att = jnp.stack([jnp.sum(p[i * gc:(i + 1) * gc] * g[i * gc:(i + 1) * gc])
                     for i in range(GROUPS)])
    y = (t * jnp.repeat(att, gc)[:, None]).astype(jnp.bfloat16)
    z = jnp.dot(pp['wz_bd'], y, preferred_element_type=jnp.float32)   # (128, 256)
    gch = FEAT_DIM // GROUPS
    zg = z.reshape(GROUPS, gch, NUM_PROPOSAL)
    mu = zg.mean(axis=(1, 2), keepdims=True)
    var = ((zg - mu) ** 2).mean(axis=(1, 2), keepdims=True)
    zn = ((zg - mu) * lax.rsqrt(var + GN_EPS)).reshape(FEAT_DIM, NUM_PROPOSAL)
    net = zn * pp['gng'] + pp['gnb'] + xb.astype(jnp.float32)
    net = jnp.maximum(jnp.dot(pp['w1s'], net.astype(jnp.bfloat16),
                              preferred_element_type=jnp.float32) + pp['h1'], 0.0)
    net = jnp.maximum(jnp.dot(pp['w2s'], net.astype(jnp.bfloat16),
                              preferred_element_type=jnp.float32) + pp['h2'], 0.0)
    return jnp.dot(pp['w3'], net.astype(jnp.bfloat16),
                   preferred_element_type=jnp.float32) + pp['b3']


# ----------------------------------- main -------------------------------------
if __name__ == "__main__":
    key = jax.random.PRNGKey(0)
    k_feat, k_xyz, k_param = jax.random.split(key, 3)

    params = init_params(k_param)
    prep = prepare_params(params)

    check_names = ['objectness_scores', 'center', 'width', 'quality',
                   'angle_scores', 'angle_residuals_normalized',
                   'angle_residuals', 'viewpoint_scores']

    # B=2 and B=8 exercise both the single-step and (on 2-TC parts) 2-step grids.
    for B in (2, 8):
        kf = jax.random.fold_in(k_feat, B)
        kx = jax.random.fold_in(k_xyz, B)
        features = jax.random.normal(kf, (B, FEAT_DIM, NUM_PROPOSAL), jnp.float32)
        xyz = jax.random.normal(kx, (B, NUM_PROPOSAL, 3), jnp.float32)

        end_points = jax.block_until_ready(
            proposal_module_forward(xyz, features, prep))

        net_ref = jax.vmap(lambda f: _reference_net_single(f, prep))(features)
        ep_ref = decode_scores_jax(net_ref, xyz, NUM_ANGLE_BIN, NUM_VIEWPOINT)

        for name in check_names:
            got = np.asarray(end_points[name])
            want = np.asarray(ep_ref[name])
            assert got.shape == want.shape, (name, got.shape, want.shape)
            np.testing.assert_allclose(got, want, rtol=2e-2, atol=2e-2,
                                       err_msg=f"B={B} {name}")

        assert end_points['objectness_scores'].shape == (B, NUM_PROPOSAL, 2)
        assert end_points['center'].shape == (B, NUM_PROPOSAL, 3)
        assert end_points['viewpoint_scores'].shape == (B, NUM_PROPOSAL, NUM_VIEWPOINT)

    print("KERNEL_OK")
</pallas_src>

<mosaic_0001>
module attributes {stable_mosaic.version = 11 : i64} {
  func.func @_proposal_kernel(%arg0: i32, %arg1: memref<128x512xbf16, #tpu.memory_space<vmem>>, %arg2: memref<8x512xbf16, #tpu.memory_space<vmem>>, %arg3: memref<512x8xbf16, #tpu.memory_space<vmem>>, %arg4: memref<192x128xbf16, #tpu.memory_space<vmem>>, %arg5: memref<64x64xbf16, #tpu.memory_space<vmem>>, %arg6: memref<128x64xbf16, #tpu.memory_space<vmem>>, %arg7: memref<4x128xbf16, #tpu.memory_space<vmem>>, %arg8: memref<128x4xbf16, #tpu.memory_space<vmem>>, %arg9: memref<128x128xbf16, #tpu.memory_space<vmem>>, %arg10: memref<128x128xbf16, #tpu.memory_space<vmem>>, %arg11: memref<48x128xbf16, #tpu.memory_space<vmem>>, %arg12: memref<384x1xf32, #tpu.memory_space<vmem>>, %arg13: memref<48x512xf32, #tpu.memory_space<vmem>>) attributes {dimension_semantics = [#tpu.dimension_semantics<parallel>], iteration_bounds = array<i64: 1>, scalar_prefetch = 0 : i64, scratch_operands = 0 : i64, tpu.core_type = #tpu.core_type<tc>, window_params = [{transform_indices = @transform_0, window_bounds = array<i64: 128, 512>}, {pipeline_mode = #tpu.pipeline_mode<synchronous>, transform_indices = @transform_1, window_bounds = array<i64: 8, 512>}, {pipeline_mode = #tpu.pipeline_mode<synchronous>, transform_indices = @transform_2, window_bounds = array<i64: 512, 8>}, {pipeline_mode = #tpu.pipeline_mode<synchronous>, transform_indices = @transform_3, window_bounds = array<i64: 192, 128>}, {pipeline_mode = #tpu.pipeline_mode<synchronous>, transform_indices = @transform_4, window_bounds = array<i64: 64, 64>}, {pipeline_mode = #tpu.pipeline_mode<synchronous>, transform_indices = @transform_5, window_bounds = array<i64: 128, 64>}, {pipeline_mode = #tpu.pipeline_mode<synchronous>, transform_indices = @transform_6, window_bounds = array<i64: 4, 128>}, {pipeline_mode = #tpu.pipeline_mode<synchronous>, transform_indices = @transform_7, window_bounds = array<i64: 128, 4>}, {pipeline_mode = #tpu.pipeline_mode<synchronous>, transform_indices = @transform_8, window_bounds = array<i64: 128, 128>}, {pipeline_mode = #tpu.pipeline_mode<synchronous>, transform_indices = @transform_9, window_bounds = array<i64: 128, 128>}, {pipeline_mode = #tpu.pipeline_mode<synchronous>, transform_indices = @transform_10, window_bounds = array<i64: 48, 128>}, {pipeline_mode = #tpu.pipeline_mode<synchronous>, transform_indices = @transform_11, window_bounds = array<i64: 384, 1>}, {transform_indices = @transform_12, window_bounds = array<i64: 48, 512>}]} {
    %c0 = arith.constant 0 : index
    %c0_0 = arith.constant 0 : index
    %0 = vector.load %arg1[%c0, %c0_0] : memref<128x512xbf16, #tpu.memory_space<vmem>>, vector<128x512xbf16>
    %c0_1 = arith.constant 0 : index
    %c0_2 = arith.constant 0 : index
    %1 = vector.load %arg4[%c0_1, %c0_2] : memref<192x128xbf16, #tpu.memory_space<vmem>>, vector<192x128xbf16>
    %cst = arith.constant dense<0.000000e+00> : vector<192x512xf32>
    %2 = tpu.matmul %1, %0, %cst {dimension_numbers = #tpu.dot_dimension_numbers<[1], [0], [0], [1], [0, 0, 1, 1], [], []>} : vector<192x128xbf16>, vector<128x512xbf16>, vector<192x512xf32> -> vector<192x512xf32>
    %3 = vector.extract_strided_slice %2 {offsets = [0, 0], sizes = [64, 512], strides = [1, 1]} : vector<192x512xf32> to vector<64x512xf32>
    %4 = vector.extract_strided_slice %2 {offsets = [64, 0], sizes = [64, 512], strides = [1, 1]} : vector<192x512xf32> to vector<64x512xf32>
    %5 = vector.extract_strided_slice %2 {offsets = [128, 0], sizes = [64, 512], strides = [1, 1]} : vector<192x512xf32> to vector<64x512xf32>
    %6 = arith.mulf %4, %5 : vector<64x512xf32>
    %7 = arith.truncf %6 : vector<64x512xf32> to vector<64x512xbf16>
    %c0_3 = arith.constant 0 : index
    %c0_4 = arith.constant 0 : index
    %8 = vector.load %arg3[%c0_3, %c0_4] : memref<512x8xbf16, #tpu.memory_space<vmem>>, vector<512x8xbf16>
    %cst_5 = arith.constant dense<0.000000e+00> : vector<64x8xf32>
    %9 = tpu.matmul %7, %8, %cst_5 {dimension_numbers = #tpu.dot_dimension_numbers<[1], [0], [0], [1], [0, 0, 1, 1], [], []>} : vector<64x512xbf16>, vector<512x8xbf16>, vector<64x8xf32> -> vector<64x8xf32>
    %c0_6 = arith.constant 0 : index
    %c0_7 = arith.constant 0 : index
    %10 = vector.load %arg5[%c0_6, %c0_7] : memref<64x64xbf16, #tpu.memory_space<vmem>>, vector<64x64xbf16>
    %11 = arith.truncf %9 : vector<64x8xf32> to vector<64x8xbf16>
    %cst_8 = arith.constant dense<0.000000e+00> : vector<64x8xf32>
    %12 = tpu.matmul %10, %11, %cst_8 {dimension_numbers = #tpu.dot_dimension_numbers<[1], [0], [0], [1], [0, 0, 1, 1], [], []>} : vector<64x64xbf16>, vector<64x8xbf16>, vector<64x8xf32> -> vector<64x8xf32>
    %13 = arith.truncf %12 : vector<64x8xf32> to vector<64x8xbf16>
    %c0_9 = arith.constant 0 : index
    %c0_10 = arith.constant 0 : index
    %14 = vector.load %arg2[%c0_9, %c0_10] : memref<8x512xbf16, #tpu.memory_space<vmem>>, vector<8x512xbf16>
    %cst_11 = arith.constant dense<0.000000e+00> : vector<64x512xf32>
    %15 = tpu.matmul %13, %14, %cst_11 {dimension_numbers = #tpu.dot_dimension_numbers<[1], [0], [0], [1], [0, 0, 1, 1], [], []>} : vector<64x8xbf16>, vector<8x512xbf16>, vector<64x512xf32> -> vector<64x512xf32>
    %16 = arith.mulf %3, %15 : vector<64x512xf32>
    %17 = arith.truncf %16 : vector<64x512xf32> to vector<64x512xbf16>
    %c0_12 = arith.constant 0 : index
    %c0_13 = arith.constant 0 : index
    %18 = vector.load %arg6[%c0_12, %c0_13] : memref<128x64xbf16, #tpu.memory_space<vmem>>, vector<128x64xbf16>
    %cst_14 = arith.constant dense<0.000000e+00> : vector<128x512xf32>
    %19 = tpu.matmul %18, %17, %cst_14 {dimension_numbers = #tpu.dot_dimension_numbers<[1], [0], [0], [1], [0, 0, 1, 1], [], []>} : vector<128x64xbf16>, vector<64x512xbf16>, vector<128x512xf32> -> vector<128x512xf32>
    %20 = arith.truncf %19 : vector<128x512xf32> to vector<128x512xbf16>
    %c0_15 = arith.constant 0 : index
    %c0_16 = arith.constant 0 : index
    %21 = vector.load %arg3[%c0_15, %c0_16] : memref<512x8xbf16, #tpu.memory_space<vmem>>, vector<512x8xbf16>
    %cst_17 = arith.constant dense<0.000000e+00> : vector<128x8xf32>
    %22 = tpu.matmul %20, %21, %cst_17 {dimension_numbers = #tpu.dot_dimension_numbers<[1], [0], [0], [1], [0, 0, 1, 1], [], []>} : vector<128x512xbf16>, vector<512x8xbf16>, vector<128x8xf32> -> vector<128x8xf32>
    %23 = arith.mulf %19, %19 : vector<128x512xf32>
    %24 = arith.truncf %23 : vector<128x512xf32> to vector<128x512xbf16>
    %c0_18 = arith.constant 0 : index
    %c0_19 = arith.constant 0 : index
    %25 = vector.load %arg3[%c0_18, %c0_19] : memref<512x8xbf16, #tpu.memory_space<vmem>>, vector<512x8xbf16>
    %cst_20 = arith.constant dense<0.000000e+00> : vector<128x8xf32>
    %26 = tpu.matmul %24, %25, %cst_20 {dimension_numbers = #tpu.dot_dimension_numbers<[1], [0], [0], [1], [0, 0, 1, 1], [], []>} : vector<128x512xbf16>, vector<512x8xbf16>, vector<128x8xf32> -> vector<128x8xf32>
    %c0_21 = arith.constant 0 : index
    %c0_22 = arith.constant 0 : index
    %27 = vector.load %arg7[%c0_21, %c0_22] : memref<4x128xbf16, #tpu.memory_space<vmem>>, vector<4x128xbf16>
    %28 = arith.truncf %22 : vector<128x8xf32> to vector<128x8xbf16>
    %cst_23 = arith.constant dense<0.000000e+00> : vector<4x8xf32>
    %29 = tpu.matmul %27, %28, %cst_23 {dimension_numbers = #tpu.dot_dimension_numbers<[1], [0], [0], [1], [0, 0, 1, 1], [], []>} : vector<4x128xbf16>, vector<128x8xbf16>, vector<4x8xf32> -> vector<4x8xf32>
    %cst_24 = arith.constant 1.22070313E-4 : f32
    %30 = vector.broadcast %cst_24 : f32 to vector<4x8xf32>
    %31 = arith.mulf %29, %30 : vector<4x8xf32>
    %c0_25 = arith.constant 0 : index
    %c0_26 = arith.constant 0 : index
    %32 = vector.load %arg7[%c0_25, %c0_26] : memref<4x128xbf16, #tpu.memory_space<vmem>>, vector<4x128xbf16>
    %33 = arith.truncf %26 : vector<128x8xf32> to vector<128x8xbf16>
    %cst_27 = arith.constant dense<0.000000e+00> : vector<4x8xf32>
    %34 = tpu.matmul %32, %33, %cst_27 {dimension_numbers = #tpu.dot_dimension_numbers<[1], [0], [0], [1], [0, 0, 1, 1], [], []>} : vector<4x128xbf16>, vector<128x8xbf16>, vector<4x8xf32> -> vector<4x8xf32>
    %cst_28 = arith.constant 1.22070313E-4 : f32
    %35 = vector.broadcast %cst_28 : f32 to vector<4x8xf32>
    %36 = arith.mulf %34, %35 : vector<4x8xf32>
    %37 = arith.mulf %31, %31 : vector<4x8xf32>
    %38 = arith.subf %36, %37 : vector<4x8xf32>
    %cst_29 = arith.constant 0.000000e+00 : f32
    %39 = vector.broadcast %cst_29 : f32 to vector<4x8xf32>
    %40 = arith.maximumf %38, %39 : vector<4x8xf32>
    %cst_30 = arith.constant 9.99999974E-6 : f32
    %41 = vector.broadcast %cst_30 : f32 to vector<4x8xf32>
    %42 = arith.addf %40, %41 : vector<4x8xf32>
    %43 = math.rsqrt %42 : vector<4x8xf32>
    %c0_31 = arith.constant 0 : index
    %c0_32 = arith.constant 0 : index
    %44 = vector.load %arg8[%c0_31, %c0_32] : memref<128x4xbf16, #tpu.memory_space<vmem>>, vector<128x4xbf16>
    %45 = arith.truncf %43 : vector<4x8xf32> to vector<4x8xbf16>
    %cst_33 = arith.constant dense<0.000000e+00> : vector<128x8xf32>
    %46 = tpu.matmul %44, %45, %cst_33 {dimension_numbers = #tpu.dot_dimension_numbers<[1], [0], [0], [1], [0, 0, 1, 1], [], []>} : vector<128x4xbf16>, vector<4x8xbf16>, vector<128x8xf32> -> vector<128x8xf32>
    %c0_34 = arith.constant 0 : index
    %c0_35 = arith.constant 0 : index
    %47 = vector.load %arg8[%c0_34, %c0_35] : memref<128x4xbf16, #tpu.memory_space<vmem>>, vector<128x4xbf16>
    %cst_36 = arith.constant 0.000000e+00 : f32
    %48 = vector.broadcast %cst_36 : f32 to vector<4x8xf32>
    %49 = arith.subf %48, %31 : vector<4x8xf32>
    %50 = arith.mulf %49, %43 : vector<4x8xf32>
    %51 = arith.truncf %50 : vector<4x8xf32> to vector<4x8xbf16>
    %cst_37 = arith.constant dense<0.000000e+00> : vector<128x8xf32>
    %52 = tpu.matmul %47, %51, %cst_37 {dimension_numbers = #tpu.dot_dimension_numbers<[1], [0], [0], [1], [0, 0, 1, 1], [], []>} : vector<128x4xbf16>, vector<4x8xbf16>, vector<128x8xf32> -> vector<128x8xf32>
    %53 = tpu.concatenate %46, %52 in 0 : vector<128x8xf32>, vector<128x8xf32> -> vector<256x8xf32>
    %54 = arith.truncf %53 : vector<256x8xf32> to vector<256x8xbf16>
    %c0_38 = arith.constant 0 : index
    %c0_39 = arith.constant 0 : index
    %55 = vector.load %arg2[%c0_38, %c0_39] : memref<8x512xbf16, #tpu.memory_space<vmem>>, vector<8x512xbf16>
    %cst_40 = arith.constant dense<0.000000e+00> : vector<256x512xf32>
    %56 = tpu.matmul %54, %55, %cst_40 {dimension_numbers = #tpu.dot_dimension_numbers<[1], [0], [0], [1], [0, 0, 1, 1], [], []>} : vector<256x8xbf16>, vector<8x512xbf16>, vector<256x512xf32> -> vector<256x512xf32>
    %57 = vector.extract_strided_slice %56 {offsets = [0, 0], sizes = [128, 512], strides = [1, 1]} : vector<256x512xf32> to vector<128x512xf32>
    %58 = arith.mulf %19, %57 : vector<128x512xf32>
    %59 = vector.extract_strided_slice %56 {offsets = [128, 0], sizes = [128, 512], strides = [1, 1]} : vector<256x512xf32> to vector<128x512xf32>
    %60 = arith.addf %58, %59 : vector<128x512xf32>
    %61 = arith.extf %0 : vector<128x512xbf16> to vector<128x512xf32>
    %62 = arith.addf %60, %61 : vector<128x512xf32>
    %c0_41 = arith.constant 0 : index
    %c0_42 = arith.constant 0 : index
    %63 = vector.load %arg9[%c0_41, %c0_42] : memref<128x128xbf16, #tpu.memory_space<vmem>>, vector<128x128xbf16>
    %64 = arith.truncf %62 : vector<128x512xf32> to vector<128x512xbf16>
    %cst_43 = arith.constant dense<0.000000e+00> : vector<128x512xf32>
    %65 = tpu.matmul %63, %64, %cst_43 {dimension_numbers = #tpu.dot_dimension_numbers<[1], [0], [0], [1], [0, 0, 1, 1], [], []>} : vector<128x128xbf16>, vector<128x512xbf16>, vector<128x512xf32> -> vector<128x512xf32>
    %c0_44 = arith.constant 0 : index
    %c0_45 = arith.constant 0 : index
    %66 = vector.load %arg12[%c0_44, %c0_45] : memref<384x1xf32, #tpu.memory_space<vmem>>, vector<128x1xf32>
    %67 = vector.broadcast %66 : vector<128x1xf32> to vector<128x512xf32>
    %68 = arith.addf %65, %67 : vector<128x512xf32>
    %cst_46 = arith.constant 0.000000e+00 : f32
    %69 = vector.broadcast %cst_46 : f32 to vector<128x512xf32>
    %70 = arith.maximumf %68, %69 : vector<128x512xf32>
    %c0_47 = arith.constant 0 : index
    %c0_48 = arith.constant 0 : index
    %71 = vector.load %arg10[%c0_47, %c0_48] : memref<128x128xbf16, #tpu.memory_space<vmem>>, vector<128x128xbf16>
    %72 = arith.truncf %70 : vector<128x512xf32> to vector<128x512xbf16>
    %cst_49 = arith.constant dense<0.000000e+00> : vector<128x512xf32>
    %73 = tpu.matmul %71, %72, %cst_49 {dimension_numbers = #tpu.dot_dimension_numbers<[1], [0], [0], [1], [0, 0, 1, 1], [], []>} : vector<128x128xbf16>, vector<128x512xbf16>, vector<128x512xf32> -> vector<128x512xf32>
    %c128 = arith.constant 128 : index
    %c0_50 = arith.constant 0 : index
    %74 = vector.load %arg12[%c128, %c0_50] : memref<384x1xf32, #tpu.memory_space<vmem>>, vector<128x1xf32>
    %75 = vector.broadcast %74 : vector<128x1xf32> to vector<128x512xf32>
    %76 = arith.addf %73, %75 : vector<128x512xf32>
    %cst_51 = arith.constant 0.000000e+00 : f32
    %77 = vector.broadcast %cst_51 : f32 to vector<128x512xf32>
    %78 = arith.maximumf %76, %77 : vector<128x512xf32>
    %c0_52 = arith.constant 0 : index
    %c0_53 = arith.constant 0 : index
    %79 = vector.load %arg11[%c0_52, %c0_53] : memref<48x128xbf16, #tpu.memory_space<vmem>>, vector<48x128xbf16>
    %80 = arith.truncf %78 : vector<128x512xf32> to vector<128x512xbf16>
    %cst_54 = arith.constant dense<0.000000e+00> : vector<48x512xf32>
    %81 = tpu.matmul %79, %80, %cst_54 {dimension_numbers = #tpu.dot_dimension_numbers<[1], [0], [0], [1], [0, 0, 1, 1], [], []>} : vector<48x128xbf16>, vector<128x512xbf16>, vector<48x512xf32> -> vector<48x512xf32>
    %c256 = arith.constant 256 : index
    %c0_55 = arith.constant 0 : index
    %82 = vector.load %arg12[%c256, %c0_55] : memref<384x1xf32, #tpu.memory_space<vmem>>, vector<48x1xf32>
    %83 = vector.broadcast %82 : vector<48x1xf32> to vector<48x512xf32>
    %84 = arith.addf %81, %83 : vector<48x512xf32>
    %c0_56 = arith.constant 0 : index
    %c0_57 = arith.constant 0 : index
    %85 = vector.load %arg13[%c0_56, %c0_57] : memref<48x512xf32, #tpu.memory_space<vmem>>, vector<48x512xf32>
    tpu.vector_store %arg13[%c0_56, %c0_57], %84 {strides = array<i32>} : memref<48x512xf32, #tpu.memory_space<vmem>>, vector<48x512xf32>,
    return
  }
  func.func @transform_0(%arg0: i32) -> (i32, i32) {
    %c0_i32 = arith.constant 0 : i32
    %c0_i32_0 = arith.constant 0 : i32
    return %c0_i32, %arg0 : i32, i32
  }
  func.func @transform_1(%arg0: i32) -> (i32, i32) {
    %c0_i32 = arith.constant 0 : i32
    %c0_i32_0 = arith.constant 0 : i32
    %c0_i32_1 = arith.constant 0 : i32
    return %c0_i32, %c0_i32_0 : i32, i32
  }
  func.func @transform_2(%arg0: i32) -> (i32, i32) {
    %c0_i32 = arith.constant 0 : i32
    %c0_i32_0 = arith.constant 0 : i32
    %c0_i32_1 = arith.constant 0 : i32
    return %c0_i32, %c0_i32_0 : i32, i32
  }
  func.func @transform_3(%arg0: i32) -> (i32, i32) {
    %c0_i32 = arith.constant 0 : i32
    %c0_i32_0 = arith.constant 0 : i32
    %c0_i32_1 = arith.constant 0 : i32
    return %c0_i32, %c0_i32_0 : i32, i32
  }
  func.func @transform_4(%arg0: i32) -> (i32, i32) {
    %c0_i32 = arith.constant 0 : i32
    %c0_i32_0 = arith.constant 0 : i32
    %c0_i32_1 = arith.constant 0 : i32
    return %c0_i32, %c0_i32_0 : i32, i32
  }
  func.func @transform_5(%arg0: i32) -> (i32, i32) {
    %c0_i32 = arith.constant 0 : i32
    %c0_i32_0 = arith.constant 0 : i32
    %c0_i32_1 = arith.constant 0 : i32
    return %c0_i32, %c0_i32_0 : i32, i32
  }
  func.func @transform_6(%arg0: i32) -> (i32, i32) {
    %c0_i32 = arith.constant 0 : i32
    %c0_i32_0 = arith.constant 0 : i32
    %c0_i32_1 = arith.constant 0 : i32
    return %c0_i32, %c0_i32_0 : i32, i32
  }
  func.func @transform_7(%arg0: i32) -> (i32, i32) {
    %c0_i32 = arith.constant 0 : i32
    %c0_i32_0 = arith.constant 0 : i32
    %c0_i32_1 = arith.constant 0 : i32
    return %c0_i32, %c0_i32_0 : i32, i32
  }
  func.func @transform_8(%arg0: i32) -> (i32, i32) {
    %c0_i32 = arith.constant 0 : i32
    %c0_i32_0 = arith.constant 0 : i32
    %c0_i32_1 = arith.constant 0 : i32
    return %c0_i32, %c0_i32_0 : i32, i32
  }
  func.func @transform_9(%arg0: i32) -> (i32, i32) {
    %c0_i32 = arith.constant 0 : i32
    %c0_i32_0 = arith.constant 0 : i32
    %c0_i32_1 = arith.constant 0 : i32
    return %c0_i32, %c0_i32_0 : i32, i32
  }
  func.func @transform_10(%arg0: i32) -> (i32, i32) {
    %c0_i32 = arith.constant 0 : i32
    %c0_i32_0 = arith.constant 0 : i32
    %c0_i32_1 = arith.constant 0 : i32
    return %c0_i32, %c0_i32_0 : i32, i32
  }
  func.func @transform_11(%arg0: i32) -> (i32, i32) {
    %c0_i32 = arith.constant 0 : i32
    %c0_i32_0 = arith.constant 0 : i32
    %c0_i32_1 = arith.constant 0 : i32
    return %c0_i32, %c0_i32_0 : i32, i32
  }
  func.func @transform_12(%arg0: i32) -> (i32, i32) {
    %c0_i32 = arith.constant 0 : i32
    %c0_i32_0 = arith.constant 0 : i32
    return %c0_i32, %arg0 : i32, i32
  }
}

</mosaic_0001>

<llo_original>
// kernel: tpu_custom_call.1
$region0: #{tpu_custom_call.1}
  #allocation0 [shape = 'u32[]', space=smem, size = 0x4, offset = 0x4, fixed_abs, tag = 'smem constant byte address 0x4 - core index']
  #allocation1 [shape = 'u32[144,128]{1,0:T(1,128)}', space=vmem, size = 0x12000, scoped, tag = 'internal scratch']
  %s0 = inlined_call_operand.vmem [shape: bf16[128,512], index: 0, kind: input, shape index: {}]
  %s1 = inlined_call_operand.vmem [shape: bf16[8,512], index: 1, kind: input, shape index: {}]
  %s2 = inlined_call_operand.vmem [shape: bf16[512,8], index: 2, kind: input, shape index: {}]
  %s3 = inlined_call_operand.vmem [shape: bf16[192,128], index: 3, kind: input, shape index: {}]
  %s4 = inlined_call_operand.vmem [shape: bf16[64,64], index: 4, kind: input, shape index: {}]
  %s5 = inlined_call_operand.vmem [shape: bf16[128,64], index: 5, kind: input, shape index: {}]
  %s6 = inlined_call_operand.vmem [shape: bf16[4,128], index: 6, kind: input, shape index: {}]
  %s7 = inlined_call_operand.vmem [shape: bf16[128,4], index: 7, kind: input, shape index: {}]
  %s8 = inlined_call_operand.vmem [shape: bf16[128,128], index: 8, kind: input, shape index: {}]
  %s9 = inlined_call_operand.vmem [shape: bf16[128,128], index: 9, kind: input, shape index: {}]
  %s10 = inlined_call_operand.vmem [shape: bf16[48,128], index: 10, kind: input, shape index: {}]
  %s11 = inlined_call_operand.vmem [shape: f32[384,1], index: 11, kind: input, shape index: {}]
  %s12 = inlined_call_operand.hbm [shape: f32[48,512], index: 12, kind: output, shape index: {}]
  %s13 = sld [smem:[#allocation0]]
  $region58: #{tpu_custom_call.1} parent=0
    _
  %s15 = ssub.s32 1, %s13
  %s16 = scalar_select 0, %s15, %s13
  $region1: #{tpu_custom_call.1} parent=0
    #allocation2 [shape = 'u8[98304]{0}', space=vmem, size = 0x18000, scoped, tag = 'output window, operand 0, single buffered']
    #allocation3 [shape = 's32[1]{0}', space=sflag, size = 0x4, scoped, tag = 'scoped memory for tpu_custom_call.1']
    %17 = vsyncpa [#allocation3], 0
    // Predicated region
    $region2: #{tpu_custom_call.1} parent=1 // pred_check
      _
    $region3: #{tpu_custom_call.1} parent=1 // pred_check_branch
      %19 = sbr.rel (0) target = $region5
    $region4: #{tpu_custom_call.1} parent=1 // pred_region
      _
    $region5: #{tpu_custom_call.1} parent=1 // pred_fallthru
      _
    // Predicated region
    $region6: #{tpu_custom_call.1} parent=1 // pred_check
      _
    $region7: #{tpu_custom_call.1} parent=1 // pred_check_branch
      %21 = sbr.rel (0) target = $region9
    $region8: #{tpu_custom_call.1} parent=1 // pred_region
      _
    $region9: #{tpu_custom_call.1} parent=1 // pred_fallthru
      _
    // Predicated region
    $region10: #{tpu_custom_call.1} parent=1 // pred_check
      _
    $region11: #{tpu_custom_call.1} parent=1 // pred_check_branch
      %23 = sbr.rel (0) target = $region13
    $region12: #{tpu_custom_call.1} parent=1 // pred_region
      _
    $region13: #{tpu_custom_call.1} parent=1 // pred_fallthru
      _
    // Predicated region
    $region14: #{tpu_custom_call.1} parent=1 // pred_check
      _
    $region15: #{tpu_custom_call.1} parent=1 // pred_check_branch
      %25 = sbr.rel (0) target = $region17
    $region16: #{tpu_custom_call.1} parent=1 // pred_region
      _
    $region17: #{tpu_custom_call.1} parent=1 // pred_fallthru
      _
    // Predicated region
    $region18: #{tpu_custom_call.1} parent=1 // pred_check
      _
    $region19: #{tpu_custom_call.1} parent=1 // pred_check_branch
      %27 = sbr.rel (0) target = $region21
    $region20: #{tpu_custom_call.1} parent=1 // pred_region
      _
    $region21: #{tpu_custom_call.1} parent=1 // pred_fallthru
      _
    // Predicated region
    $region22: #{tpu_custom_call.1} parent=1 // pred_check
      _
    $region23: #{tpu_custom_call.1} parent=1 // pred_check_branch
      %29 = sbr.rel (0) target = $region25
    $region24: #{tpu_custom_call.1} parent=1 // pred_region
      _
    $region25: #{tpu_custom_call.1} parent=1 // pred_fallthru
      _
    // Predicated region
    $region26: #{tpu_custom_call.1} parent=1 // pred_check
      _
    $region27: #{tpu_custom_call.1} parent=1 // pred_check_branch
      %31 = sbr.rel (0) target = $region29
    $region28: #{tpu_custom_call.1} parent=1 // pred_region
      _
    $region29: #{tpu_custom_call.1} parent=1 // pred_fallthru
      _
    // Predicated region
    $region30: #{tpu_custom_call.1} parent=1 // pred_check
      _
    $region31: #{tpu_custom_call.1} parent=1 // pred_check_branch
      %33 = sbr.rel (0) target = $region33
    $region32: #{tpu_custom_call.1} parent=1 // pred_region
      _
    $region33: #{tpu_custom_call.1} parent=1 // pred_fallthru
      _
    // Predicated region
    $region34: #{tpu_custom_call.1} parent=1 // pred_check
      _
    $region35: #{tpu_custom_call.1} parent=1 // pred_check_branch
      %35 = sbr.rel (0) target = $region37
    $region36: #{tpu_custom_call.1} parent=1 // pred_region
      _
    $region37: #{tpu_custom_call.1} parent=1 // pred_fallthru
      _
    // Predicated region
    $region38: #{tpu_custom_call.1} parent=1 // pred_check
      _
    $region39: #{tpu_custom_call.1} parent=1 // pred_check_branch
      %37 = sbr.rel (0) target = $region41
    $region40: #{tpu_custom_call.1} parent=1 // pred_region
      _
    $region41: #{tpu_custom_call.1} parent=1 // pred_fallthru
      _
    // Predicated region
    $region42: #{tpu_custom_call.1} parent=1 // pred_check
      _
    $region43: #{tpu_custom_call.1} parent=1 // pred_check_branch
      %39 = sbr.rel (0) target = $region45
    $region44: #{tpu_custom_call.1} parent=1 // pred_region
      _
    $region45: #{tpu_custom_call.1} parent=1 // pred_fallthru
      _
    // Predicated region
    $region46: #{tpu_custom_call.1} parent=1 // pred_check
      _
    $region47: #{tpu_custom_call.1} parent=1 // pred_check_branch
      %41 = sbr.rel (0) target = $region49
    $region48: #{tpu_custom_call.1} parent=1 // pred_region
      _
    $region49: #{tpu_custom_call.1} parent=1 // pred_fallthru
      _
    %v43 = vld [vmem:[%s0] sm:$0xff]
    %v44 = vld [vmem:[%s0 + $0x8] sm:$0xff]
    %v45 = vld [vmem:[%s0 + $0x10] sm:$0xff]
    %v46 = vld [vmem:[%s0 + $0x18] sm:$0xff]
    %v47 = vld [vmem:[%s0 + $0x20] sm:$0xff]
    %v48 = vld [vmem:[%s0 + $0x28] sm:$0xff]
    %v49 = vld [vmem:[%s0 + $0x30] sm:$0xff]
    %v50 = vld [vmem:[%s0 + $0x38] sm:$0xff]
    %v51 = vld [vmem:[%s0 + $0x40] sm:$0xff]
    %v52 = vld [vmem:[%s0 + $0x48] sm:$0xff]
    %v53 = vld [vmem:[%s0 + $0x50] sm:$0xff]
    %v54 = vld [vmem:[%s0 + $0x58] sm:$0xff]
    %v55 = vld [vmem:[%s0 + $0x60] sm:$0xff]
    %v56 = vld [vmem:[%s0 + $0x68] sm:$0xff]
    %v57 = vld [vmem:[%s0 + $0x70] sm:$0xff]
    %v58 = vld [vmem:[%s0 + $0x78] sm:$0xff]
    %v59 = vld [vmem:[%s0 + $0x80] sm:$0xff]
    %v60 = vld [vmem:[%s0 + $0x88] sm:$0xff]
    %v61 = vld [vmem:[%s0 + $0x90] sm:$0xff]
    %v62 = vld [vmem:[%s0 + $0x98] sm:$0xff]
    %v63 = vld [vmem:[%s0 + $0xa0] sm:$0xff]
    %v64 = vld [vmem:[%s0 + $0xa8] sm:$0xff]
    %v65 = vld [vmem:[%s0 + $0xb0] sm:$0xff]
    %v66 = vld [vmem:[%s0 + $0xb8] sm:$0xff]
    %v67 = vld [vmem:[%s0 + $0xc0] sm:$0xff]
    %v68 = vld [vmem:[%s0 + $0xc8] sm:$0xff]
    %v69 = vld [vmem:[%s0 + $0xd0] sm:$0xff]
    %v70 = vld [vmem:[%s0 + $0xd8] sm:$0xff]
    %v71 = vld [vmem:[%s0 + $0xe0] sm:$0xff]
    %v72 = vld [vmem:[%s0 + $0xe8] sm:$0xff]
    %v73 = vld [vmem:[%s0 + $0xf0] sm:$0xff]
    %v74 = vld [vmem:[%s0 + $0xf8] sm:$0xff]
    %v75 = vld [vmem:[%s3] sm:$0xf]
    %v76 = vld [vmem:[%s3 + $0x4] sm:$0xf]
    %v77 = vld [vmem:[%s3 + $0x8] sm:$0xf]
    %v78 = vld [vmem:[%s3 + $0xc] sm:$0xf]
    %v79 = vld [vmem:[%s3 + $0x10] sm:$0xf]
    %v80 = vld [vmem:[%s3 + $0x14] sm:$0xf]
    %v81 = vld [vmem:[%s3 + $0x18] sm:$0xf]
    %v82 = vld [vmem:[%s3 + $0x1c] sm:$0xf]
    %v83 = vld [vmem:[%s3 + $0x20] sm:$0xf]
    %v84 = vld [vmem:[%s3 + $0x24] sm:$0xf]
    %v85 = vld [vmem:[%s3 + $0x28] sm:$0xf]
    %v86 = vld [vmem:[%s3 + $0x2c] sm:$0xf]
    %v87 = vld [vmem:[%s3 + $0x30] sm:$0xf]
    %v88 = vld [vmem:[%s3 + $0x34] sm:$0xf]
    %v89 = vld [vmem:[%s3 + $0x38] sm:$0xf]
    %v90 = vld [vmem:[%s3 + $0x3c] sm:$0xf]
    %v91 = vld [vmem:[%s3 + $0x40] sm:$0xf]
    %v92 = vld [vmem:[%s3 + $0x44] sm:$0xf]
    %v93 = vld [vmem:[%s3 + $0x48] sm:$0xf]
    %v94 = vld [vmem:[%s3 + $0x4c] sm:$0xf]
    %v95 = vld [vmem:[%s3 + $0x50] sm:$0xf]
    %v96 = vld [vmem:[%s3 + $0x54] sm:$0xf]
    %v97 = vld [vmem:[%s3 + $0x58] sm:$0xf]
    %v98 = vld [vmem:[%s3 + $0x5c] sm:$0xf]
    %v123 = vunpack.c.l.b16 %v75
    %v124 = vunpack.c.l.b16 %v76
    %v125 = vunpack.c.l.b16 %v77
    %v126 = vunpack.c.l.b16 %v78
    %v127 = vunpack.c.l.b16 %v79
    %v128 = vunpack.c.l.b16 %v80
    %v129 = vunpack.c.l.b16 %v81
    %v130 = vunpack.c.l.b16 %v82
    %v131 = vunpack.c.l.b16 %v83
    %v132 = vunpack.c.l.b16 %v84
    %v133 = vunpack.c.l.b16 %v85
    %v134 = vunpack.c.l.b16 %v86
    %v135 = vunpack.c.l.b16 %v87
    %v136 = vunpack.c.l.b16 %v88
    %v137 = vunpack.c.l.b16 %v89
    %v138 = vunpack.c.l.b16 %v90
    %v139 = vunpack.c.l.b16 %v91
    %v140 = vunpack.c.l.b16 %v92
    %v141 = vunpack.c.l.b16 %v93
    %v142 = vunpack.c.l.b16 %v94
    %v143 = vunpack.c.l.b16 %v95
    %v144 = vunpack.c.l.b16 %v96
    %v145 = vunpack.c.l.b16 %v97
    %v146 = vunpack.c.l.b16 %v98
    %v147 = vpack.c.b16 %v124, %v123
    %v148 = vpack.c.b16 %v126, %v125
    %v149 = vpack.c.b16 %v128, %v127
    %v150 = vpack.c.b16 %v130, %v129
    %v151 = vpack.c.b16 %v132, %v131
    %v152 = vpack.c.b16 %v134, %v133
    %v153 = vpack.c.b16 %v136, %v135
    %v154 = vpack.c.b16 %v138, %v137
    %v155 = vpack.c.b16 %v140, %v139
    %v156 = vpack.c.b16 %v142, %v141
    %v157 = vpack.c.b16 %v144, %v143
    %v158 = vpack.c.b16 %v146, %v145
    %v203 = vunpack.c.l.b16 %v43
    %v204 = vunpack.c.h.b16 %v43
    %v205 = vunpack.c.l.b16 %v44
    %v206 = vunpack.c.h.b16 %v44
    %v207 = vunpack.c.l.b16 %v45
    %v208 = vunpack.c.h.b16 %v45
    %v209 = vunpack.c.l.b16 %v46
    %v210 = vunpack.c.h.b16 %v46
    %v211 = vunpack.c.l.b16 %v47
    %v212 = vunpack.c.h.b16 %v47
    %v213 = vunpack.c.l.b16 %v48
    %v214 = vunpack.c.h.b16 %v48
    %v215 = vunpack.c.l.b16 %v49
    %v216 = vunpack.c.h.b16 %v49
    %v217 = vunpack.c.l.b16 %v50
    %v218 = vunpack.c.h.b16 %v50
    %v219 = vunpack.c.l.b16 %v51
    %v220 = vunpack.c.h.b16 %v51
    %v221 = vunpack.c.l.b16 %v52
    %v222 = vunpack.c.h.b16 %v52
    %v223 = vunpack.c.l.b16 %v53
    %v224 = vunpack.c.h.b16 %v53
    %v225 = vunpack.c.l.b16 %v54
    %v226 = vunpack.c.h.b16 %v54
    %v227 = vunpack.c.l.b16 %v55
    %v228 = vunpack.c.h.b16 %v55
    %v229 = vunpack.c.l.b16 %v56
    %v230 = vunpack.c.h.b16 %v56
    %v231 = vunpack.c.l.b16 %v57
    %v232 = vunpack.c.h.b16 %v57
    %v233 = vunpack.c.l.b16 %v58
    %v234 = vunpack.c.h.b16 %v58
    %v235 = vunpack.c.l.b16 %v59
    %v236 = vunpack.c.h.b16 %v59
    %v237 = vunpack.c.l.b16 %v60
    %v238 = vunpack.c.h.b16 %v60
    %v239 = vunpack.c.l.b16 %v61
    %v240 = vunpack.c.h.b16 %v61
    %v241 = vunpack.c.l.b16 %v62
    %v242 = vunpack.c.h.b16 %v62
    %v243 = vunpack.c.l.b16 %v63
    %v244 = vunpack.c.h.b16 %v63
    %v245 = vunpack.c.l.b16 %v64
    %v246 = vunpack.c.h.b16 %v64
    %v247 = vunpack.c.l.b16 %v65
    %v248 = vunpack.c.h.b16 %v65
    %v249 = vunpack.c.l.b16 %v66
    %v250 = vunpack.c.h.b16 %v66
    %v251 = vunpack.c.l.b16 %v67
    %v252 = vunpack.c.h.b16 %v67
    %v253 = vunpack.c.l.b16 %v68
    %v254 = vunpack.c.h.b16 %v68
    %v255 = vunpack.c.l.b16 %v69
    %v256 = vunpack.c.h.b16 %v69
    %v257 = vunpack.c.l.b16 %v70
    %v258 = vunpack.c.h.b16 %v70
    %v259 = vunpack.c.l.b16 %v71
    %v260 = vunpack.c.h.b16 %v71
    %v261 = vunpack.c.l.b16 %v72
    %v262 = vunpack.c.h.b16 %v72
    %v263 = vunpack.c.l.b16 %v73
    %v264 = vunpack.c.h.b16 %v73
    %v265 = vunpack.c.l.b16 %v74
    %v266 = vunpack.c.h.b16 %v74
    %v267 = vpack.c.b16 %v207, %v203
    %v268 = vpack.c.b16 %v208, %v204
    %v269 = vpack.c.b16 %v209, %v205
    %v270 = vpack.c.b16 %v210, %v206
    %v271 = vpack.c.b16 %v215, %v211
    %v272 = vpack.c.b16 %v216, %v212
    %v273 = vpack.c.b16 %v217, %v213
    %v274 = vpack.c.b16 %v218, %v214
    %v275 = vpack.c.b16 %v223, %v219
    %v276 = vpack.c.b16 %v224, %v220
    %v277 = vpack.c.b16 %v225, %v221
    %v278 = vpack.c.b16 %v226, %v222
    %v279 = vpack.c.b16 %v231, %v227
    %v280 = vpack.c.b16 %v232, %v228
    %v281 = vpack.c.b16 %v233, %v229
    %v282 = vpack.c.b16 %v234, %v230
    %v283 = vpack.c.b16 %v239, %v235
    %v284 = vpack.c.b16 %v240, %v236
    %v285 = vpack.c.b16 %v241, %v237
    %v286 = vpack.c.b16 %v242, %v238
    %v287 = vpack.c.b16 %v247, %v243
    %v288 = vpack.c.b16 %v248, %v244
    %v289 = vpack.c.b16 %v249, %v245
    %v290 = vpack.c.b16 %v250, %v246
    %v291 = vpack.c.b16 %v255, %v251
    %v292 = vpack.c.b16 %v256, %v252
    %v293 = vpack.c.b16 %v257, %v253
    %v294 = vpack.c.b16 %v258, %v254
    %v295 = vpack.c.b16 %v263, %v259
    %v296 = vpack.c.b16 %v264, %v260
    %v297 = vpack.c.b16 %v265, %v261
    %v298 = vpack.c.b16 %v266, %v262
    %331 = vmatprep.subr.bf16.mxu0 %v268
    %332 = vmatpush1.bf16.msra.mxu0 %v267
    %333 = vmatprep.subr.bf16.mxu0 %v272
    %334 = vmatpush1.bf16.msra.mxu0 %v271
    %335 = vmatprep.subr.bf16.mxu0 %v276
    %336 = vmatpush1.bf16.msra.mxu0 %v275
    %337 = vmatprep.subr.bf16.mxu0 %v280
    %338 = vmatpush1.bf16.msra.mxu0 %v279
    %339 = vmatprep.subr.bf16.mxu0 %v284
    %340 = vmatpush1.bf16.msra.mxu0 %v283
    %341 = vmatprep.subr.bf16.mxu0 %v288
    %342 = vmatpush1.bf16.msra.mxu0 %v287
    %343 = vmatprep.subr.bf16.mxu0 %v292
    %344 = vmatpush1.bf16.msra.mxu0 %v291
    %345 = vmatprep.subr.bf16.mxu0 %v296
    %346 = vmatpush1.bf16.msra.mxu0 %v295
    %347 = vmatprep.subr.bf16.mxu0 0
    %348 = vmatpush1.bf16.msra.mxu0 0
    %349 = vmatprep.subr.bf16.mxu0 0
    %350 = vmatpush1.bf16.msra.mxu0 0
    %351 = vmatprep.subr.bf16.mxu0 0
    %352 = vmatpush1.bf16.msra.mxu0 0
    %353 = vmatprep.subr.bf16.mxu0 0
    %354 = vmatpush1.bf16.msra.mxu0 0
    %355 = vmatprep.subr.bf16.mxu0 0
    %356 = vmatpush1.bf16.msra.mxu0 0
    %357 = vmatprep.subr.bf16.mxu0 0
    %358 = vmatpush1.bf16.msra.mxu0 0
    %359 = vmatprep.subr.bf16.mxu0 0
    %360 = vmatpush1.bf16.msra.mxu0 0
    %361 = vmatprep.subr.bf16.mxu0 0
    %362 = vmatpush1.bf16.msra.mxu0 0
    %363 = vmatprep.mubr.bf16.mxu0 0
    %364 = vmatmul.mubr.bf16.gmra.mrb[0].mxu0 %v147
    %v365 = vpop.f32.mrb[0].mxu0
    %v366 = vadd.f32 0.0, %v365
    %v367 = vpop.f32.mrb[0].mxu0
    %v368 = vadd.f32 0.0, %v367
    %v369 = vpop.f32.mrb[0].mxu0
    %v370 = vadd.f32 0.0, %v369
    %v371 = vpop.f32.mrb[0].mxu0
    %v372 = vadd.f32 0.0, %v371
    %373 = vmatprep.mubr.bf16.mxu0 0
    %374 = vmatmul.mubr.bf16.gmra.mrb[0].mxu0 %v148
    %v375 = vpop.f32.mrb[0].mxu0
    %v376 = vadd.f32 0.0, %v375
    %v377 = vpop.f32.mrb[0].mxu0
    %v378 = vadd.f32 0.0, %v377
    %v379 = vpop.f32.mrb[0].mxu0
    %v380 = vadd.f32 0.0, %v379
    %v381 = vpop.f32.mrb[0].mxu0
    %v382 = vadd.f32 0.0, %v381
    %383 = vmatprep.mubr.bf16.mxu0 0
    %384 = vmatmul.mubr.bf16.gmra.mrb[0].mxu0 %v149
    %v385 = vpop.f32.mrb[0].mxu0
    %v386 = vadd.f32 0.0, %v385
    %v387 = vpop.f32.mrb[0].mxu0
    %v388 = vadd.f32 0.0, %v387
    %v389 = vpop.f32.mrb[0].mxu0
    %v390 = vadd.f32 0.0, %v389
    %v391 = vpop.f32.mrb[0].mxu0
    %v392 = vadd.f32 0.0, %v391
    %393 = vmatprep.mubr.bf16.mxu0 0
    %394 = vmatmul.mubr.bf16.gmra.mrb[0].mxu0 %v150
    %v395 = vpop.f32.mrb[0].mxu0
    %v396 = vadd.f32 0.0, %v395
    %v397 = vpop.f32.mrb[0].mxu0
    %v398 = vadd.f32 0.0, %v397
    %v399 = vpop.f32.mrb[0].mxu0
    %v400 = vadd.f32 0.0, %v399
    %v401 = vpop.f32.mrb[0].mxu0
    %v402 = vadd.f32 0.0, %v401
    %403 = vmatprep.mubr.bf16.mxu0 0
    %404 = vmatmul.mubr.bf16.gmra.mrb[0].mxu0 %v151
    %v405 = vpop.f32.mrb[0].mxu0
    %v406 = vadd.f32 0.0, %v405
    %v407 = vpop.f32.mrb[0].mxu0
    %v408 = vadd.f32 0.0, %v407
    %v409 = vpop.f32.mrb[0].mxu0
    %v410 = vadd.f32 0.0, %v409
    %v411 = vpop.f32.mrb[0].mxu0
    %v412 = vadd.f32 0.0, %v411
    %413 = vmatprep.mubr.bf16.mxu0 0
    %414 = vmatmul.mubr.bf16.gmra.mrb[0].mxu0 %v152
    %v415 = vpop.f32.mrb[0].mxu0
    %v416 = vadd.f32 0.0, %v415
    %v417 = vpop.f32.mrb[0].mxu0
    %v418 = vadd.f32 0.0, %v417
    %v419 = vpop.f32.mrb[0].mxu0
    %v420 = vadd.f32 0.0, %v419
    %v421 = vpop.f32.mrb[0].mxu0
    %v422 = vadd.f32 0.0, %v421
    %423 = vmatprep.mubr.bf16.mxu0 0
    %424 = vmatmul.mubr.bf16.gmra.mrb[0].mxu0 %v153
    %v425 = vpop.f32.mrb[0].mxu0
    %v426 = vadd.f32 0.0, %v425
    %v427 = vpop.f32.mrb[0].mxu0
    %v428 = vadd.f32 0.0, %v427
    %v429 = vpop.f32.mrb[0].mxu0
    %v430 = vadd.f32 0.0, %v429
    %v431 = vpop.f32.mrb[0].mxu0
    %v432 = vadd.f32 0.0, %v431
    %433 = vmatprep.mubr.bf16.mxu0 0
    %434 = vmatmul.mubr.bf16.gmra.mrb[0].mxu0 %v154
    %v435 = vpop.f32.mrb[0].mxu0
    %v436 = vadd.f32 0.0, %v435
    %v437 = vpop.f32.mrb[0].mxu0
    %v438 = vadd.f32 0.0, %v437
    %v439 = vpop.f32.mrb[0].mxu0
    %v440 = vadd.f32 0.0, %v439
    %v441 = vpop.f32.mrb[0].mxu0
    %v442 = vadd.f32 0.0, %v441
    %443 = vmatprep.mubr.bf16.mxu0 0
    %444 = vmatmul.mubr.bf16.gmra.mrb[0].mxu0 %v155
    %v445 = vpop.f32.mrb[0].mxu0
    %v446 = vadd.f32 0.0, %v445
    %v447 = vpop.f32.mrb[0].mxu0
    %v448 = vadd.f32 0.0, %v447
    %v449 = vpop.f32.mrb[0].mxu0
    %v450 = vadd.f32 0.0, %v449
    %v451 = vpop.f32.mrb[0].mxu0
    %v452 = vadd.f32 0.0, %v451
    %453 = vmatprep.mubr.bf16.mxu0 0
    %454 = vmatmul.mubr.bf16.gmra.mrb[0].mxu0 %v156
    %v455 = vpop.f32.mrb[0].mxu0
    %v456 = vadd.f32 0.0, %v455
    %v457 = vpop.f32.mrb[0].mxu0
    %v458 = vadd.f32 0.0, %v457
    %v459 = vpop.f32.mrb[0].mxu0
    %v460 = vadd.f32 0.0, %v459
    %v461 = vpop.f32.mrb[0].mxu0
    %v462 = vadd.f32 0.0, %v461
    %463 = vmatprep.mubr.bf16.mxu0 0
    %464 = vmatmul.mubr.bf16.gmra.mrb[0].mxu0 %v157
    %v465 = vpop.f32.mrb[0].mxu0
    %v466 = vadd.f32 0.0, %v465
    %v467 = vpop.f32.mrb[0].mxu0
    %v468 = vadd.f32 0.0, %v467
    %v469 = vpop.f32.mrb[0].mxu0
    %v470 = vadd.f32 0.0, %v469
    %v471 = vpop.f32.mrb[0].mxu0
    %v472 = vadd.f32 0.0, %v471
    %473 = vmatprep.mubr.bf16.mxu0 0
    %474 = vmatmul.mubr.bf16.gmra.mrb[0].mxu0 %v158
    %v475 = vpop.f32.mrb[0].mxu0
    %v476 = vadd.f32 0.0, %v475
    %v477 = vpop.f32.mrb[0].mxu0
    %v478 = vadd.f32 0.0, %v477
    %v479 = vpop.f32.mrb[0].mxu0
    %v480 = vadd.f32 0.0, %v479
    %v481 = vpop.f32.mrb[0].mxu0
    %v482 = vadd.f32 0.0, %v481
    %483 = vdwg.mxu0
    %484 = vmatprep.subr.bf16.mxu0 %v270
    %485 = vmatpush1.bf16.msra.mxu0 %v269
    %486 = vmatprep.subr.bf16.mxu0 %v274
    %487 = vmatpush1.bf16.msra.mxu0 %v273
    %488 = vmatprep.subr.bf16.mxu0 %v278
    %489 = vmatpush1.bf16.msra.mxu0 %v277
    %490 = vmatprep.subr.bf16.mxu0 %v282
    %491 = vmatpush1.bf16.msra.mxu0 %v281
    %492 = vmatprep.subr.bf16.mxu0 %v286
    %493 = vmatpush1.bf16.msra.mxu0 %v285
    %494 = vmatprep.subr.bf16.mxu0 %v290
    %495 = vmatpush1.bf16.msra.mxu0 %v289
    %496 = vmatprep.subr.bf16.mxu0 %v294
    %497 = vmatpush1.bf16.msra.mxu0 %v293
    %498 = vmatprep.subr.bf16.mxu0 %v298
    %499 = vmatpush1.bf16.msra.mxu0 %v297
    %500 = vmatprep.subr.bf16.mxu0 0
    %501 = vmatpush1.bf16.msra.mxu0 0
    %502 = vmatprep.subr.bf16.mxu0 0
    %503 = vmatpush1.bf16.msra.mxu0 0
    %504 = vmatprep.subr.bf16.mxu0 0
    %505 = vmatpush1.bf16.msra.mxu0 0
    %506 = vmatprep.subr.bf16.mxu0 0
    %507 = vmatpush1.bf16.msra.mxu0 0
    %508 = vmatprep.subr.bf16.mxu0 0
    %509 = vmatpush1.bf16.msra.mxu0 0
    %510 = vmatprep.subr.bf16.mxu0 0
    %511 = vmatpush1.bf16.msra.mxu0 0
    %512 = vmatprep.subr.bf16.mxu0 0
    %513 = vmatpush1.bf16.msra.mxu0 0
    %514 = vmatprep.subr.bf16.mxu0 0
    %515 = vmatpush1.bf16.msra.mxu0 0
    %516 = vmatprep.mubr.bf16.mxu0 0
    %517 = vmatmul.mubr.bf16.gmra.mrb[0].mxu0 %v147
    %v518 = vpop.f32.mrb[0].mxu0
    %v519 = vadd.f32 0.0, %v518
    %v520 = vpop.f32.mrb[0].mxu0
    %v521 = vadd.f32 0.0, %v520
    %v522 = vpop.f32.mrb[0].mxu0
    %v523 = vadd.f32 0.0, %v522
    %v524 = vpop.f32.mrb[0].mxu0
    %v525 = vadd.f32 0.0, %v524
    %526 = vmatprep.mubr.bf16.mxu0 0
    %527 = vmatmul.mubr.bf16.gmra.mrb[0].mxu0 %v148
    %v528 = vpop.f32.mrb[0].mxu0
    %v529 = vadd.f32 0.0, %v528
    %v530 = vpop.f32.mrb[0].mxu0
    %v531 = vadd.f32 0.0, %v530
    %v532 = vpop.f32.mrb[0].mxu0
    %v533 = vadd.f32 0.0, %v532
    %v534 = vpop.f32.mrb[0].mxu0
    %v535 = vadd.f32 0.0, %v534
    %536 = vmatprep.mubr.bf16.mxu0 0
    %537 = vmatmul.mubr.bf16.gmra.mrb[0].mxu0 %v149
    %v538 = vpop.f32.mrb[0].mxu0
    %v539 = vadd.f32 0.0, %v538
    %v540 = vpop.f32.mrb[0].mxu0
    %v541 = vadd.f32 0.0, %v540
    %v542 = vpop.f32.mrb[0].mxu0
    %v543 = vadd.f32 0.0, %v542
    %v544 = vpop.f32.mrb[0].mxu0
    %v545 = vadd.f32 0.0, %v544
    %546 = vmatprep.mubr.bf16.mxu0 0
    %547 = vmatmul.mubr.bf16.gmra.mrb[0].mxu0 %v150
    %v548 = vpop.f32.mrb[0].mxu0
    %v549 = vadd.f32 0.0, %v548
    %v550 = vpop.f32.mrb[0].mxu0
    %v551 = vadd.f32 0.0, %v550
    %v552 = vpop.f32.mrb[0].mxu0
    %v553 = vadd.f32 0.0, %v552
    %v554 = vpop.f32.mrb[0].mxu0
    %v555 = vadd.f32 0.0, %v554
    %556 = vmatprep.mubr.bf16.mxu0 0
    %557 = vmatmul.mubr.bf16.gmra.mrb[0].mxu0 %v151
    %v558 = vpop.f32.mrb[0].mxu0
    %v559 = vadd.f32 0.0, %v558
    %v560 = vpop.f32.mrb[0].mxu0
    %v561 = vadd.f32 0.0, %v560
    %v562 = vpop.f32.mrb[0].mxu0
    %v563 = vadd.f32 0.0, %v562
    %v564 = vpop.f32.mrb[0].mxu0
    %v565 = vadd.f32 0.0, %v564
    %566 = vmatprep.mubr.bf16.mxu0 0
    %567 = vmatmul.mubr.bf16.gmra.mrb[0].mxu0 %v152
    %v568 = vpop.f32.mrb[0].mxu0
    %v569 = vadd.f32 0.0, %v568
    %v570 = vpop.f32.mrb[0].mxu0
    %v571 = vadd.f32 0.0, %v570
    %v572 = vpop.f32.mrb[0].mxu0
    %v573 = vadd.f32 0.0, %v572
    %v574 = vpop.f32.mrb[0].mxu0
    %v575 = vadd.f32 0.0, %v574
    %576 = vmatprep.mubr.bf16.mxu0 0
    %577 = vmatmul.mubr.bf16.gmra.mrb[0].mxu0 %v153
    %v578 = vpop.f32.mrb[0].mxu0
    %v579 = vadd.f32 0.0, %v578
    %v580 = vpop.f32.mrb[0].mxu0
    %v581 = vadd.f32 0.0, %v580
    %v582 = vpop.f32.mrb[0].mxu0
    %v583 = vadd.f32 0.0, %v582
    %v584 = vpop.f32.mrb[0].mxu0
    %v585 = vadd.f32 0.0, %v584
    %586 = vmatprep.mubr.bf16.mxu0 0
    %587 = vmatmul.mubr.bf16.gmra.mrb[0].mxu0 %v154
    %v588 = vpop.f32.mrb[0].mxu0
    %v589 = vadd.f32 0.0, %v588
    %v590 = vpop.f32.mrb[0].mxu0
    %v591 = vadd.f32 0.0, %v590
    %v592 = vpop.f32.mrb[0].mxu0
    %v593 = vadd.f32 0.0, %v592
    %v594 = vpop.f32.mrb[0].mxu0
    %v595 = vadd.f32 0.0, %v594
    %596 = vmatprep.mubr.bf16.mxu0 0
    %597 = vmatmul.mubr.bf16.gmra.mrb[0].mxu0 %v155
    %v598 = vpop.f32.mrb[0].mxu0
    %v599 = vadd.f32 0.0, %v598
    %v600 = vpop.f32.mrb[0].mxu0
    %v601 = vadd.f32 0.0, %v600
    %v602 = vpop.f32.mrb[0].mxu0
    %v603 = vadd.f32 0.0, %v602
    %v604 = vpop.f32.mrb[0].mxu0
    %v605 = vadd.f32 0.0, %v604
    %606 = vmatprep.mubr.bf16.mxu0 0
    %607 = vmatmul.mubr.bf16.gmra.mrb[0].mxu0 %v156
    %v608 = vpop.f32.mrb[0].mxu0
    %v609 = vadd.f32 0.0, %v608
    %v610 = vpop.f32.mrb[0].mxu0
    %v611 = vadd.f32 0.0, %v610
    %v612 = vpop.f32.mrb[0].mxu0
    %v613 = vadd.f32 0.0, %v612
    %v614 = vpop.f32.mrb[0].mxu0
    %v615 = vadd.f32 0.0, %v614
    %616 = vmatprep.mubr.bf16.mxu0 0
    %617 = vmatmul.mubr.bf16.gmra.mrb[0].mxu0 %v157
    %v618 = vpop.f32.mrb[0].mxu0
    %v619 = vadd.f32 0.0, %v618
    %v620 = vpop.f32.mrb[0].mxu0
    %v621 = vadd.f32 0.0, %v620
    %v622 = vpop.f32.mrb[0].mxu0
    %v623 = vadd.f32 0.0, %v622
    %v624 = vpop.f32.mrb[0].mxu0
    %v625 = vadd.f32 0.0, %v624
    %626 = vmatprep.mubr.bf16.mxu0 0
    %627 = vmatmul.mubr.bf16.gmra.mrb[0].mxu0 %v158
    %v628 = vpop.f32.mrb[0].mxu0
    %v629 = vadd.f32 0.0, %v628
    %v630 = vpop.f32.mrb[0].mxu0
    %v631 = vadd.f32 0.0, %v630
    %v632 = vpop.f32.mrb[0].mxu0
    %v633 = vadd.f32 0.0, %v632
    %v634 = vpop.f32.mrb[0].mxu0
    %v635 = vadd.f32 0.0, %v634
    %636 = vdwg.mxu0
    %v637 = vmul.f32 %v406, %v446
    %v638 = vmul.f32 %v408, %v448
    %v639 = vmul.f32 %v559, %v599
    %v640 = vmul.f32 %v561, %v601
    %v641 = vmul.f32 %v410, %v450
    %v642 = vmul.f32 %v412, %v452
    %v643 = vmul.f32 %v563, %v603
    %v644 = vmul.f32 %v565, %v605
    %v645 = vmul.f32 %v416, %v456
    %v646 = vmul.f32 %v418, %v458
    %v647 = vmul.f32 %v569, %v609
    %v648 = vmul.f32 %v571, %v611
    %v649 = vmul.f32 %v420, %v460
    %v650 = vmul.f32 %v422, %v462
    %v651 = vmul.f32 %v573, %v613
    %v652 = vmul.f32 %v575, %v615
    %v653 = vmul.f32 %v426, %v466
    %v654 = vmul.f32 %v428, %v468
    %v655 = vmul.f32 %v579, %v619
    %v656 = vmul.f32 %v581, %v621
    %v657 = vmul.f32 %v430, %v470
    %v658 = vmul.f32 %v432, %v472
    %v659 = vmul.f32 %v583, %v623
    %v660 = vmul.f32 %v585, %v625
    %v661 = vmul.f32 %v436, %v476
    %v662 = vmul.f32 %v438, %v478
    %v663 = vmul.f32 %v589, %v629
    %v664 = vmul.f32 %v591, %v631
    %v665 = vmul.f32 %v440, %v480
    %v666 = vmul.f32 %v442, %v482
    %v667 = vmul.f32 %v593, %v633
    %v668 = vmul.f32 %v595, %v635
    %v669 = vpack.c.bf16 %v641, %v637
    %v670 = vpack.c.bf16 %v642, %v638
    %v671 = vpack.c.bf16 %v643, %v639
    %v672 = vpack.c.bf16 %v644, %v640
    %v673 = vpack.c.bf16 %v649, %v645
    %v674 = vpack.c.bf16 %v650, %v646
    %v675 = vpack.c.bf16 %v651, %v647
    %v676 = vpack.c.bf16 %v652, %v648
    %v677 = vpack.c.bf16 %v657, %v653
    %v678 = vpack.c.bf16 %v658, %v654
    %v679 = vpack.c.bf16 %v659, %v655
    %v680 = vpack.c.bf16 %v660, %v656
    %v681 = vpack.c.bf16 %v665, %v661
    %v682 = vpack.c.bf16 %v666, %v662
    %v683 = vpack.c.bf16 %v667, %v663
    %v684 = vpack.c.bf16 %v668, %v664
    %v685 = vld [vmem:[%s2] sm:$0xf]
    %v686 = vld [vmem:[%s2 + $0x4] sm:$0xf]
    %v687 = vld [vmem:[%s2 + $0x8] sm:$0xf]
    %v688 = vld [vmem:[%s2 + $0xc] sm:$0xf]
    %v689 = vld [vmem:[%s2 + $0x10] sm:$0xf]
    %v690 = vld [vmem:[%s2 + $0x14] sm:$0xf]
    %v691 = vld [vmem:[%s2 + $0x18] sm:$0xf]
    %v692 = vld [vmem:[%s2 + $0x1c] sm:$0xf]
    %v693 = vld [vmem:[%s2 + $0x20] sm:$0xf]
    %v694 = vld [vmem:[%s2 + $0x24] sm:$0xf]
    %v695 = vld [vmem:[%s2 + $0x28] sm:$0xf]
    %v696 = vld [vmem:[%s2 + $0x2c] sm:$0xf]
    %v697 = vld [vmem:[%s2 + $0x30] sm:$0xf]
    %v698 = vld [vmem:[%s2 + $0x34] sm:$0xf]
    %v699 = vld [vmem:[%s2 + $0x38] sm:$0xf]
    %v700 = vld [vmem:[%s2 + $0x3c] sm:$0xf]
    %v701 = vld [vmem:[%s2 + $0x40] sm:$0xf]
    %v702 = vld [vmem:[%s2 + $0x44] sm:$0xf]
    %v703 = vld [vmem:[%s2 + $0x48] sm:$0xf]
    %v704 = vld [vmem:[%s2 + $0x4c] sm:$0xf]
    %v705 = vld [vmem:[%s2 + $0x50] sm:$0xf]
    %v706 = vld [vmem:[%s2 + $0x54] sm:$0xf]
    %v707 = vld [vmem:[%s2 + $0x58] sm:$0xf]
    %v708 = vld [vmem:[%s2 + $0x5c] sm:$0xf]
    %v709 = vld [vmem:[%s2 + $0x60] sm:$0xf]
    %v710 = vld [vmem:[%s2 + $0x64] sm:$0xf]
    %v711 = vld [vmem:[%s2 + $0x68] sm:$0xf]
    %v712 = vld [vmem:[%s2 + $0x6c] sm:$0xf]
    %v713 = vld [vmem:[%s2 + $0x70] sm:$0xf]
    %v714 = vld [vmem:[%s2 + $0x74] sm:$0xf]
    %v715 = vld [vmem:[%s2 + $0x78] sm:$0xf]
    %v716 = vld [vmem:[%s2 + $0x7c] sm:$0xf]
    %v717 = vld [vmem:[%s2 + $0x80] sm:$0xf]
    %v718 = vld [vmem:[%s2 + $0x84] sm:$0xf]
    %v719 = vld [vmem:[%s2 + $0x88] sm:$0xf]
    %v720 = vld [vmem:[%s2 + $0x8c] sm:$0xf]
    %v721 = vld [vmem:[%s2 + $0x90] sm:$0xf]
    %v722 = vld [vmem:[%s2 + $0x94] sm:$0xf]
    %v723 = vld [vmem:[%s2 + $0x98] sm:$0xf]
    %v724 = vld [vmem:[%s2 + $0x9c] sm:$0xf]
    %v725 = vld [vmem:[%s2 + $0xa0] sm:$0xf]
    %v726 = vld [vmem:[%s2 + $0xa4] sm:$0xf]
    %v727 = vld [vmem:[%s2 + $0xa8] sm:$0xf]
    %v728 = vld [vmem:[%s2 + $0xac] sm:$0xf]
    %v729 = vld [vmem:[%s2 + $0xb0] sm:$0xf]
    %v730 = vld [vmem:[%s2 + $0xb4] sm:$0xf]
    %v731 = vld [vmem:[%s2 + $0xb8] sm:$0xf]
    %v732 = vld [vmem:[%s2 + $0xbc] sm:$0xf]
    %v733 = vld [vmem:[%s2 + $0xc0] sm:$0xf]
    %v734 = vld [vmem:[%s2 + $0xc4] sm:$0xf]
    %v735 = vld [vmem:[%s2 + $0xc8] sm:$0xf]
    %v736 = vld [vmem:[%s2 + $0xcc] sm:$0xf]
    %v737 = vld [vmem:[%s2 + $0xd0] sm:$0xf]
    %v738 = vld [vmem:[%s2 + $0xd4] sm:$0xf]
    %v739 = vld [vmem:[%s2 + $0xd8] sm:$0xf]
    %v740 = vld [vmem:[%s2 + $0xdc] sm:$0xf]
    %v741 = vld [vmem:[%s2 + $0xe0] sm:$0xf]
    %v742 = vld [vmem:[%s2 + $0xe4] sm:$0xf]
    %v743 = vld [vmem:[%s2 + $0xe8] sm:$0xf]
    %v744 = vld [vmem:[%s2 + $0xec] sm:$0xf]
    %v745 = vld [vmem:[%s2 + $0xf0] sm:$0xf]
    %v746 = vld [vmem:[%s2 + $0xf4] sm:$0xf]
    %v747 = vld [vmem:[%s2 + $0xf8] sm:$0xf]
    %v748 = vld [vmem:[%s2 + $0xfc] sm:$0xf]
    %v813 = vunpack.c.l.b16 %v685
    %v814 = vunpack.c.l.b16 %v686
    %v815 = vunpack.c.l.b16 %v687
    %v816 = vunpack.c.l.b16 %v688
    %v817 = vunpack.c.l.b16 %v689
    %v818 = vunpack.c.l.b16 %v690
    %v819 = vunpack.c.l.b16 %v691
    %v820 = vunpack.c.l.b16 %v692
    %v821 = vunpack.c.l.b16 %v693
    %v822 = vunpack.c.l.b16 %v694
    %v823 = vunpack.c.l.b16 %v695
    %v824 = vunpack.c.l.b16 %v696
    %v825 = vunpack.c.l.b16 %v697
    %v826 = vunpack.c.l.b16 %v698
    %v827 = vunpack.c.l.b16 %v699
    %v828 = vunpack.c.l.b16 %v700
    %v829 = vunpack.c.l.b16 %v701
    %v830 = vunpack.c.l.b16 %v702
    %v831 = vunpack.c.l.b16 %v703
    %v832 = vunpack.c.l.b16 %v704
    %v833 = vunpack.c.l.b16 %v705
    %v834 = vunpack.c.l.b16 %v706
    %v835 = vunpack.c.l.b16 %v707
    %v836 = vunpack.c.l.b16 %v708
    %v837 = vunpack.c.l.b16 %v709
    %v838 = vunpack.c.l.b16 %v710
    %v839 = vunpack.c.l.b16 %v711
    %v840 = vunpack.c.l.b16 %v712
    %v841 = vunpack.c.l.b16 %v713
    %v842 = vunpack.c.l.b16 %v714
    %v843 = vunpack.c.l.b16 %v715
    %v844 = vunpack.c.l.b16 %v716
    %v845 = vunpack.c.l.b16 %v717
    %v846 = vunpack.c.l.b16 %v718
    %v847 = vunpack.c.l.b16 %v719
    %v848 = vunpack.c.l.b16 %v720
    %v849 = vunpack.c.l.b16 %v721
    %v850 = vunpack.c.l.b16 %v722
    %v851 = vunpack.c.l.b16 %v723
    %v852 = vunpack.c.l.b16 %v724
    %v853 = vunpack.c.l.b16 %v725
    %v854 = vunpack.c.l.b16 %v726
    %v855 = vunpack.c.l.b16 %v727
    %v856 = vunpack.c.l.b16 %v728
    %v857 = vunpack.c.l.b16 %v729
    %v858 = vunpack.c.l.b16 %v730
    %v859 = vunpack.c.l.b16 %v731
    %v860 = vunpack.c.l.b16 %v732
    %v861 = vunpack.c.l.b16 %v733
    %v862 = vunpack.c.l.b16 %v734
    %v863 = vunpack.c.l.b16 %v735
    %v864 = vunpack.c.l.b16 %v736
    %v865 = vunpack.c.l.b16 %v737
    %v866 = vunpack.c.l.b16 %v738
    %v867 = vunpack.c.l.b16 %v739
    %v868 = vunpack.c.l.b16 %v740
    %v869 = vunpack.c.l.b16 %v741
    %v870 = vunpack.c.l.b16 %v742
    %v871 = vunpack.c.l.b16 %v743
    %v872 = vunpack.c.l.b16 %v744
    %v873 = vunpack.c.l.b16 %v745
    %v874 = vunpack.c.l.b16 %v746
    %v875 = vunpack.c.l.b16 %v747
    %v876 = vunpack.c.l.b16 %v748
    %v877 = vpack.c.b16 %v814, %v813
    %v878 = vpack.c.b16 %v816, %v815
    %v879 = vpack.c.b16 %v818, %v817
    %v880 = vpack.c.b16 %v820, %v819
    %v881 = vpack.c.b16 %v822, %v821
    %v882 = vpack.c.b16 %v824, %v823
    %v883 = vpack.c.b16 %v826, %v825
    %v884 = vpack.c.b16 %v828, %v827
    %v885 = vpack.c.b16 %v830, %v829
    %v886 = vpack.c.b16 %v832, %v831
    %v887 = vpack.c.b16 %v834, %v833
    %v888 = vpack.c.b16 %v836, %v835
    %v889 = vpack.c.b16 %v838, %v837
    %v890 = vpack.c.b16 %v840, %v839
    %v891 = vpack.c.b16 %v842, %v841
    %v892 = vpack.c.b16 %v844, %v843
    %v893 = vpack.c.b16 %v846, %v845
    %v894 = vpack.c.b16 %v848, %v847
    %v895 = vpack.c.b16 %v850, %v849
    %v896 = vpack.c.b16 %v852, %v851
    %v897 = vpack.c.b16 %v854, %v853
    %v898 = vpack.c.b16 %v856, %v855
    %v899 = vpack.c.b16 %v858, %v857
    %v900 = vpack.c.b16 %v860, %v859
    %v901 = vpack.c.b16 %v862, %v861
    %v902 = vpack.c.b16 %v864, %v863
    %v903 = vpack.c.b16 %v866, %v865
    %v904 = vpack.c.b16 %v868, %v867
    %v905 = vpack.c.b16 %v870, %v869
    %v906 = vpack.c.b16 %v872, %v871
    %v907 = vpack.c.b16 %v874, %v873
    %v908 = vpack.c.b16 %v876, %v875
    %941 = vmatprep.subr.bf16.mxu0 0
    %942 = vmatpush1.bf16.msra.mxu0 %v877
    %943 = vmatprep.subr.bf16.mxu0 0
    %944 = vmatpush1.bf16.msra.mxu0 %v878
    %945 = vmatprep.subr.bf16.mxu0 0
    %946 = vmatpush1.bf16.msra.mxu0 %v879
    %947 = vmatprep.subr.bf16.mxu0 0
    %948 = vmatpush1.bf16.msra.mxu0 %v880
    %949 = vmatprep.subr.bf16.mxu0 0
    %950 = vmatpush1.bf16.msra.mxu0 %v881
    %951 = vmatprep.subr.bf16.mxu0 0
    %952 = vmatpush1.bf16.msra.mxu0 %v882
    %953 = vmatprep.subr.bf16.mxu0 0
    %954 = vmatpush1.bf16.msra.mxu0 %v883
    %955 = vmatprep.subr.bf16.mxu0 0
    %956 = vmatpush1.bf16.msra.mxu0 %v884
    %957 = vmatprep.subr.bf16.mxu0 0
    %958 = vmatpush1.bf16.msra.mxu0 %v885
    %959 = vmatprep.subr.bf16.mxu0 0
    %960 = vmatpush1.bf16.msra.mxu0 %v886
    %961 = vmatprep.subr.bf16.mxu0 0
    %962 = vmatpush1.bf16.msra.mxu0 %v887
    %963 = vmatprep.subr.bf16.mxu0 0
    %964 = vmatpush1.bf16.msra.mxu0 %v888
    %965 = vmatprep.subr.bf16.mxu0 0
    %966 = vmatpush1.bf16.msra.mxu0 %v889
    %967 = vmatprep.subr.bf16.mxu0 0
    %968 = vmatpush1.bf16.msra.mxu0 %v890
    %969 = vmatprep.subr.bf16.mxu0 0
    %970 = vmatpush1.bf16.msra.mxu0 %v891
    %971 = vmatprep.subr.bf16.mxu0 0
    %972 = vmatpush1.bf16.msra.mxu0 %v892
    %973 = vmatprep.mubr.bf16.mxu0 %v670
    %974 = vmatmul.mubr.bf16.gmra.mrb[0].mxu0 %v669
    %v975 = vpop.f32.mrb[0].mxu0
    %v976 = vadd.f32 0.0, %v975
    %v977 = vpop.f32.mrb[0].mxu0
    %v978 = vpop.f32.mrb[0].mxu0
    %v979 = vadd.f32 0.0, %v978
    %v980 = vpop.f32.mrb[0].mxu0
    %981 = vmatprep.mubr.bf16.mxu0 %v674
    %982 = vmatmul.mubr.bf16.gmra.mrb[0].mxu0 %v673
    %v983 = vpop.f32.mrb[0].mxu0
    %v984 = vadd.f32 0.0, %v983
    %v985 = vpop.f32.mrb[0].mxu0
    %v986 = vpop.f32.mrb[0].mxu0
    %v987 = vadd.f32 0.0, %v986
    %v988 = vpop.f32.mrb[0].mxu0
    %989 = vmatprep.mubr.bf16.mxu0 %v678
    %990 = vmatmul.mubr.bf16.gmra.mrb[0].mxu0 %v677
    %v991 = vpop.f32.mrb[0].mxu0
    %v992 = vadd.f32 0.0, %v991
    %v993 = vpop.f32.mrb[0].mxu0
    %v994 = vpop.f32.mrb[0].mxu0
    %v995 = vadd.f32 0.0, %v994
    %v996 = vpop.f32.mrb[0].mxu0
    %997 = vmatprep.mubr.bf16.mxu0 %v682
    %998 = vmatmul.mubr.bf16.gmra.mrb[0].mxu0 %v681
    %v999 = vpop.f32.mrb[0].mxu0
    %v1000 = vadd.f32 0.0, %v999
    %v1001 = vpop.f32.mrb[0].mxu0
    %v1002 = vpop.f32.mrb[0].mxu0
    %v1003 = vadd.f32 0.0, %v1002
    %v1004 = vpop.f32.mrb[0].mxu0
    %1005 = vdwg.mxu0
    %1006 = vmatprep.subr.bf16.mxu0 0
    %1007 = vmatpush1.bf16.msra.mxu0 %v893
    %1008 = vmatprep.subr.bf16.mxu0 0
    %1009 = vmatpush1.bf16.msra.mxu0 %v894
    %1010 = vmatprep.subr.bf16.mxu0 0
    %1011 = vmatpush1.bf16.msra.mxu0 %v895
    %1012 = vmatprep.subr.bf16.mxu0 0
    %1013 = vmatpush1.bf16.msra.mxu0 %v896
    %1014 = vmatprep.subr.bf16.mxu0 0
    %1015 = vmatpush1.bf16.msra.mxu0 %v897
    %1016 = vmatprep.subr.bf16.mxu0 0
    %1017 = vmatpush1.bf16.msra.mxu0 %v898
    %1018 = vmatprep.subr.bf16.mxu0 0
    %1019 = vmatpush1.bf16.msra.mxu0 %v899
    %1020 = vmatprep.subr.bf16.mxu0 0
    %1021 = vmatpush1.bf16.msra.mxu0 %v900
    %1022 = vmatprep.subr.bf16.mxu0 0
    %1023 = vmatpush1.bf16.msra.mxu0 %v901
    %1024 = vmatprep.subr.bf16.mxu0 0
    %1025 = vmatpush1.bf16.msra.mxu0 %v902
    %1026 = vmatprep.subr.bf16.mxu0 0
    %1027 = vmatpush1.bf16.msra.mxu0 %v903
    %1028 = vmatprep.subr.bf16.mxu0 0
    %1029 = vmatpush1.bf16.msra.mxu0 %v904
    %1030 = vmatprep.subr.bf16.mxu0 0
    %1031 = vmatpush1.bf16.msra.mxu0 %v905
    %1032 = vmatprep.subr.bf16.mxu0 0
    %1033 = vmatpush1.bf16.msra.mxu0 %v906
    %1034 = vmatprep.subr.bf16.mxu0 0
    %1035 = vmatpush1.bf16.msra.mxu0 %v907
    %1036 = vmatprep.subr.bf16.mxu0 0
    %1037 = vmatpush1.bf16.msra.mxu0 %v908
    %1038 = vmatprep.mubr.bf16.mxu0 %v672
    %1039 = vmatmul.mubr.bf16.gmra.mrb[0].mxu0 %v671
    %v1040 = vpop.f32.mrb[0].mxu0
    %v1041 = vadd.f32 %v976, %v1040
    %v1042 = vpop.f32.mrb[0].mxu0
    %v1043 = vpop.f32.mrb[0].mxu0
    %v1044 = vadd.f32 %v979, %v1043
    %v1045 = vpop.f32.mrb[0].mxu0
    %1046 = vmatprep.mubr.bf16.mxu0 %v676
    %1047 = vmatmul.mubr.bf16.gmra.mrb[0].mxu0 %v675
    %v1048 = vpop.f32.mrb[0].mxu0
    %v1049 = vadd.f32 %v984, %v1048
    %v1050 = vpop.f32.mrb[0].mxu0
    %v1051 = vpop.f32.mrb[0].mxu0
    %v1052 = vadd.f32 %v987, %v1051
    %v1053 = vpop.f32.mrb[0].mxu0
    %1054 = vmatprep.mubr.bf16.mxu0 %v680
    %1055 = vmatmul.mubr.bf16.gmra.mrb[0].mxu0 %v679
    %v1056 = vpop.f32.mrb[0].mxu0
    %v1057 = vadd.f32 %v992, %v1056
    %v1058 = vpop.f32.mrb[0].mxu0
    %v1059 = vpop.f32.mrb[0].mxu0
    %v1060 = vadd.f32 %v995, %v1059
    %v1061 = vpop.f32.mrb[0].mxu0
    %1062 = vmatprep.mubr.bf16.mxu0 %v684
    %1063 = vmatmul.mubr.bf16.gmra.mrb[0].mxu0 %v683
    %v1064 = vpop.f32.mrb[0].mxu0
    %v1065 = vadd.f32 %v1000, %v1064
    %v1066 = vpop.f32.mrb[0].mxu0
    %v1067 = vpop.f32.mrb[0].mxu0
    %v1068 = vadd.f32 %v1003, %v1067
    %v1069 = vpop.f32.mrb[0].mxu0
    %1070 = vdwg.mxu0
    %v1071 = vld [vmem:[%s4] sm:$0xf]
    %v1072 = vld [vmem:[%s4 + $0x4] sm:$0xf]
    %v1073 = vld [vmem:[%s4 + $0x8] sm:$0xf]
    %v1074 = vld [vmem:[%s4 + $0xc] sm:$0xf]
    %v1075 = vld [vmem:[%s4 + $0x10] sm:$0xf]
    %v1076 = vld [vmem:[%s4 + $0x14] sm:$0xf]
    %v1077 = vld [vmem:[%s4 + $0x18] sm:$0xf]
    %v1078 = vld [vmem:[%s4 + $0x1c] sm:$0xf]
    %v1079 = vpack.c.bf16 %v1044, %v1041
    %v1080 = vpack.c.bf16 %v1052, %v1049
    %v1081 = vpack.c.bf16 %v1060, %v1057
    %v1082 = vpack.c.bf16 %v1068, %v1065
    %v1091 = vunpack.c.l.b16 %v1071
    %v1092 = vunpack.c.l.b16 %v1072
    %v1093 = vunpack.c.l.b16 %v1073
    %v1094 = vunpack.c.l.b16 %v1074
    %v1095 = vunpack.c.l.b16 %v1075
    %v1096 = vunpack.c.l.b16 %v1076
    %v1097 = vunpack.c.l.b16 %v1077
    %v1098 = vunpack.c.l.b16 %v1078
    %v1099 = vpack.c.b16 %v1092, %v1091
    %v1100 = vpack.c.b16 %v1094, %v1093
    %v1101 = vpack.c.b16 %v1096, %v1095
    %v1102 = vpack.c.b16 %v1098, %v1097
    %vm1103 = vcmask 523264
    %v1105 = vsel %vm1103, %v1099, 0
    %v1108 = vsel %vm1103, %v1100, 0
    %v1111 = vsel %vm1103, %v1101, 0
    %v1114 = vsel %vm1103, %v1102, 0
    %1116 = vmatprep.subr.bf16.mxu0 0
    %1117 = vmatpush1.bf16.msra.mxu0 %v1079
    %1118 = vmatprep.subr.bf16.mxu0 0
    %1119 = vmatpush1.bf16.msra.mxu0 %v1080
    %1120 = vmatprep.subr.bf16.mxu0 0
    %1121 = vmatpush1.bf16.msra.mxu0 %v1081
    %1122 = vmatprep.subr.bf16.mxu0 0
    %1123 = vmatpush1.bf16.msra.mxu0 %v1082
    %1124 = vmatprep.subr.bf16.mxu0 0
    %1125 = vmatpush1.bf16.msra.mxu0 0
    %1126 = vmatprep.subr.bf16.mxu0 0
    %1127 = vmatpush1.bf16.msra.mxu0 0
    %1128 = vmatprep.subr.bf16.mxu0 0
    %1129 = vmatpush1.bf16.msra.mxu0 0
    %1130 = vmatprep.subr.bf16.mxu0 0
    %1131 = vmatpush1.bf16.msra.mxu0 0
    %1132 = vmatprep.subr.bf16.mxu0 0
    %1133 = vmatpush1.bf16.msra.mxu0 0
    %1134 = vmatprep.subr.bf16.mxu0 0
    %1135 = vmatpush1.bf16.msra.mxu0 0
    %1136 = vmatprep.subr.bf16.mxu0 0
    %1137 = vmatpush1.bf16.msra.mxu0 0
    %1138 = vmatprep.subr.bf16.mxu0 0
    %1139 = vmatpush1.bf16.msra.mxu0 0
    %1140 = vmatprep.subr.bf16.mxu0 0
    %1141 = vmatpush1.bf16.msra.mxu0 0
    %1142 = vmatprep.subr.bf16.mxu0 0
    %1143 = vmatpush1.bf16.msra.mxu0 0
    %1144 = vmatprep.subr.bf16.mxu0 0
    %1145 = vmatpush1.bf16.msra.mxu0 0
    %1146 = vmatprep.subr.bf16.mxu0 0
    %1147 = vmatpush1.bf16.msra.mxu0 0
    %1148 = vmatprep.mubr.bf16.mxu0 0
    %1149 = vmatmul.mubr.bf16.gmra.mrb[0].mxu0 %v1105
    %v1150 = vpop.f32.mrb[0].mxu0
    %v1151 = vadd.f32 0.0, %v1150
    %v1152 = vpop.f32.mrb[0].mxu0
    %v1153 = vpop.f32.mrb[0].mxu0
    %v1154 = vadd.f32 0.0, %v1153
    %v1155 = vpop.f32.mrb[0].mxu0
    %1156 = vmatprep.mubr.bf16.mxu0 0
    %1157 = vmatmul.mubr.bf16.gmra.mrb[0].mxu0 %v1108
    %v1158 = vpop.f32.mrb[0].mxu0
    %v1159 = vadd.f32 0.0, %v1158
    %v1160 = vpop.f32.mrb[0].mxu0
    %v1161 = vpop.f32.mrb[0].mxu0
    %v1162 = vadd.f32 0.0, %v1161
    %v1163 = vpop.f32.mrb[0].mxu0
    %1164 = vmatprep.mubr.bf16.mxu0 0
    %1165 = vmatmul.mubr.bf16.gmra.mrb[0].mxu0 %v1111
    %v1166 = vpop.f32.mrb[0].mxu0
    %v1167 = vadd.f32 0.0, %v1166
    %v1168 = vpop.f32.mrb[0].mxu0
    %v1169 = vpop.f32.mrb[0].mxu0
    %v1170 = vadd.f32 0.0, %v1169
    %v1171 = vpop.f32.mrb[0].mxu0
    %1172 = vmatprep.mubr.bf16.mxu0 0
    %1173 = vmatmul.mubr.bf16.gmra.mrb[0].mxu0 %v1114
    %v1174 = vpop.f32.mrb[0].mxu0
    %v1175 = vadd.f32 0.0, %v1174
    %v1176 = vpop.f32.mrb[0].mxu0
    %v1177 = vpop.f32.mrb[0].mxu0
    %v1178 = vadd.f32 0.0, %v1177
    %v1179 = vpop.f32.mrb[0].mxu0
    %1180 = vdwg.mxu0
    %v1181 = vpack.c.bf16 %v1154, %v1151
    %v1182 = vpack.c.bf16 %v1162, %v1159
    %v1183 = vpack.c.bf16 %v1170, %v1167
    %v1184 = vpack.c.bf16 %v1178, %v1175
    %v1185 = vld [vmem:[%s1] sm:$0xff]
    %v1186 = vld [vmem:[%s1 + $0x8] sm:$0xff]
    %v1189 = vunpack.c.l.b16 %v1185
    %v1190 = vunpack.c.h.b16 %v1185
    %v1191 = vunpack.c.l.b16 %v1186
    %v1192 = vunpack.c.h.b16 %v1186
    %v1193 = vpack.c.b16 %v1189, %v1189
    %v1194 = vpack.c.b16 %v1190, %v1190
    %v1195 = vpack.c.b16 %v1191, %v1191
    %v1196 = vpack.c.b16 %v1192, %v1192
    %vm1197 = vcmask 64512
    %v1199 = vsel %vm1197, %v1181, 0
    %v1202 = vsel %vm1197, %v1182, 0
    %v1205 = vsel %vm1197, %v1183, 0
    %v1208 = vsel %vm1197, %v1184, 0
    %vm1210 = vcmask 1043456
    %v1212 = vsel %vm1210, %v1193, 0
    %v1215 = vsel %vm1210, %v1194, 0
    %v1218 = vsel %vm1210, %v1195, 0
    %v1221 = vsel %vm1210, %v1196, 0
    %1223 = vmatprep.subr.bf16.mxu0 %v1215
    %1224 = vmatpush1.bf16.msra.mxu0 %v1212
    %1225 = vmatprep.subr.bf16.mxu0 0
    %1226 = vmatpush1.bf16.msra.mxu0 0
    %1227 = vmatprep.subr.bf16.mxu0 0
    %1228 = vmatpush1.bf16.msra.mxu0 0
    %1229 = vmatprep.subr.bf16.mxu0 0
    %1230 = vmatpush1.bf16.msra.mxu0 0
    %1231 = vmatprep.subr.bf16.mxu0 0
    %1232 = vmatpush1.bf16.msra.mxu0 0
    %1233 = vmatprep.subr.bf16.mxu0 0
    %1234 = vmatpush1.bf16.msra.mxu0 0
    %1235 = vmatprep.subr.bf16.mxu0 0
    %1236 = vmatpush1.bf16.msra.mxu0 0
    %1237 = vmatprep.subr.bf16.mxu0 0
    %1238 = vmatpush1.bf16.msra.mxu0 0
    %1239 = vmatprep.subr.bf16.mxu0 0
    %1240 = vmatpush1.bf16.msra.mxu0 0
    %1241 = vmatprep.subr.bf16.mxu0 0
    %1242 = vmatpush1.bf16.msra.mxu0 0
    %1243 = vmatprep.subr.bf16.mxu0 0
    %1244 = vmatpush1.bf16.msra.mxu0 0
    %1245 = vmatprep.subr.bf16.mxu0 0
    %1246 = vmatpush1.bf16.msra.mxu0 0
    %1247 = vmatprep.subr.bf16.mxu0 0
    %1248 = vmatpush1.bf16.msra.mxu0 0
    %1249 = vmatprep.subr.bf16.mxu0 0
    %1250 = vmatpush1.bf16.msra.mxu0 0
    %1251 = vmatprep.subr.bf16.mxu0 0
    %1252 = vmatpush1.bf16.msra.mxu0 0
    %1253 = vmatprep.subr.bf16.mxu0 0
    %1254 = vmatpush1.bf16.msra.mxu0 0
    %1255 = vmatprep.mubr.bf16.mxu0 0
    %1256 = vmatmul.mubr.bf16.gmra.mrb[0].mxu0 %v1199
    %v1257 = vpop.f32.mrb[0].mxu0
    %v1258 = vadd.f32 0.0, %v1257
    %v1259 = vpop.f32.mrb[0].mxu0
    %v1260 = vadd.f32 0.0, %v1259
    %v1261 = vpop.f32.mrb[0].mxu0
    %v1262 = vadd.f32 0.0, %v1261
    %v1263 = vpop.f32.mrb[0].mxu0
    %v1264 = vadd.f32 0.0, %v1263
    %1265 = vmatprep.mubr.bf16.mxu0 0
    %1266 = vmatmul.mubr.bf16.gmra.mrb[0].mxu0 %v1202
    %v1267 = vpop.f32.mrb[0].mxu0
    %v1268 = vadd.f32 0.0, %v1267
    %v1269 = vpop.f32.mrb[0].mxu0
    %v1270 = vadd.f32 0.0, %v1269
    %v1271 = vpop.f32.mrb[0].mxu0
    %v1272 = vadd.f32 0.0, %v1271
    %v1273 = vpop.f32.mrb[0].mxu0
    %v1274 = vadd.f32 0.0, %v1273
    %1275 = vmatprep.mubr.bf16.mxu0 0
    %1276 = vmatmul.mubr.bf16.gmra.mrb[0].mxu0 %v1205
    %v1277 = vpop.f32.mrb[0].mxu0
    %v1278 = vadd.f32 0.0, %v1277
    %v1279 = vpop.f32.mrb[0].mxu0
    %v1280 = vadd.f32 0.0, %v1279
    %v1281 = vpop.f32.mrb[0].mxu0
    %v1282 = vadd.f32 0.0, %v1281
    %v1283 = vpop.f32.mrb[0].mxu0
    %v1284 = vadd.f32 0.0, %v1283
    %1285 = vmatprep.mubr.bf16.mxu0 0
    %1286 = vmatmul.mubr.bf16.gmra.mrb[0].mxu0 %v1208
    %v1287 = vpop.f32.mrb[0].mxu0
    %v1288 = vadd.f32 0.0, %v1287
    %v1289 = vpop.f32.mrb[0].mxu0
    %v1290 = vadd.f32 0.0, %v1289
    %v1291 = vpop.f32.mrb[0].mxu0
    %v1292 = vadd.f32 0.0, %v1291
    %v1293 = vpop.f32.mrb[0].mxu0
    %v1294 = vadd.f32 0.0, %v1293
    %1295 = vdwg.mxu0
    %1296 = vmatprep.subr.bf16.mxu0 %v1221
    %1297 = vmatpush1.bf16.msra.mxu0 %v1218
    %1298 = vmatprep.subr.bf16.mxu0 0
    %1299 = vmatpush1.bf16.msra.mxu0 0
    %1300 = vmatprep.subr.bf16.mxu0 0
    %1301 = vmatpush1.bf16.msra.mxu0 0
    %1302 = vmatprep.subr.bf16.mxu0 0
    %1303 = vmatpush1.bf16.msra.mxu0 0
    %1304 = vmatprep.subr.bf16.mxu0 0
    %1305 = vmatpush1.bf16.msra.mxu0 0
    %1306 = vmatprep.subr.bf16.mxu0 0
    %1307 = vmatpush1.bf16.msra.mxu0 0
    %1308 = vmatprep.subr.bf16.mxu0 0
    %1309 = vmatpush1.bf16.msra.mxu0 0
    %1310 = vmatprep.subr.bf16.mxu0 0
    %1311 = vmatpush1.bf16.msra.mxu0 0
    %1312 = vmatprep.subr.bf16.mxu0 0
    %1313 = vmatpush1.bf16.msra.mxu0 0
    %1314 = vmatprep.subr.bf16.mxu0 0
    %1315 = vmatpush1.bf16.msra.mxu0 0
    %1316 = vmatprep.subr.bf16.mxu0 0
    %1317 = vmatpush1.bf16.msra.mxu0 0
    %1318 = vmatprep.subr.bf16.mxu0 0
    %1319 = vmatpush1.bf16.msra.mxu0 0
    %1320 = vmatprep.subr.bf16.mxu0 0
    %1321 = vmatpush1.bf16.msra.mxu0 0
    %1322 = vmatprep.subr.bf16.mxu0 0
    %1323 = vmatpush1.bf16.msra.mxu0 0
    %1324 = vmatprep.subr.bf16.mxu0 0
    %1325 = vmatpush1.bf16.msra.mxu0 0
    %1326 = vmatprep.subr.bf16.mxu0 0
    %1327 = vmatpush1.bf16.msra.mxu0 0
    %1328 = vmatprep.mubr.bf16.mxu0 0
    %1329 = vmatmul.mubr.bf16.gmra.mrb[0].mxu0 %v1199
    %v1330 = vpop.f32.mrb[0].mxu0
    %v1331 = vadd.f32 0.0, %v1330
    %v1332 = vpop.f32.mrb[0].mxu0
    %v1333 = vadd.f32 0.0, %v1332
    %v1334 = vpop.f32.mrb[0].mxu0
    %v1335 = vadd.f32 0.0, %v1334
    %v1336 = vpop.f32.mrb[0].mxu0
    %v1337 = vadd.f32 0.0, %v1336
    %1338 = vmatprep.mubr.bf16.mxu0 0
    %1339 = vmatmul.mubr.bf16.gmra.mrb[0].mxu0 %v1202
    %v1340 = vpop.f32.mrb[0].mxu0
    %v1341 = vadd.f32 0.0, %v1340
    %v1342 = vpop.f32.mrb[0].mxu0
    %v1343 = vadd.f32 0.0, %v1342
    %v1344 = vpop.f32.mrb[0].mxu0
    %v1345 = vadd.f32 0.0, %v1344
    %v1346 = vpop.f32.mrb[0].mxu0
    %v1347 = vadd.f32 0.0, %v1346
    %1348 = vmatprep.mubr.bf16.mxu0 0
    %1349 = vmatmul.mubr.bf16.gmra.mrb[0].mxu0 %v1205
    %v1350 = vpop.f32.mrb[0].mxu0
    %v1351 = vadd.f32 0.0, %v1350
    %v1352 = vpop.f32.mrb[0].mxu0
    %v1353 = vadd.f32 0.0, %v1352
    %v1354 = vpop.f32.mrb[0].mxu0
    %v1355 = vadd.f32 0.0, %v1354
    %v1356 = vpop.f32.mrb[0].mxu0
    %v1357 = vadd.f32 0.0, %v1356
    %1358 = vmatprep.mubr.bf16.mxu0 0
    %1359 = vmatmul.mubr.bf16.gmra.mrb[0].mxu0 %v1208
    %v1360 = vpop.f32.mrb[0].mxu0
    %v1361 = vadd.f32 0.0, %v1360
    %v1362 = vpop.f32.mrb[0].mxu0
    %v1363 = vadd.f32 0.0, %v1362
    %v1364 = vpop.f32.mrb[0].mxu0
    %v1365 = vadd.f32 0.0, %v1364
    %v1366 = vpop.f32.mrb[0].mxu0
    %v1367 = vadd.f32 0.0, %v1366
    %1368 = vdwg.mxu0
    %v1369 = vmul.f32 %v366, %v1258
    %v1370 = vmul.f32 %v368, %v1260
    %v1371 = vmul.f32 %v519, %v1331
    %v1372 = vmul.f32 %v521, %v1333
    %v1373 = vmul.f32 %v370, %v1262
    %v1374 = vmul.f32 %v372, %v1264
    %v1375 = vmul.f32 %v523, %v1335
    %v1376 = vmul.f32 %v525, %v1337
    %v1377 = vmul.f32 %v376, %v1268
    %v1378 = vmul.f32 %v378, %v1270
    %v1379 = vmul.f32 %v529, %v1341
    %v1380 = vmul.f32 %v531, %v1343
    %v1381 = vmul.f32 %v380, %v1272
    %v1382 = vmul.f32 %v382, %v1274
    %v1383 = vmul.f32 %v533, %v1345
    %v1384 = vmul.f32 %v535, %v1347
    %v1385 = vmul.f32 %v386, %v1278
    %v1386 = vmul.f32 %v388, %v1280
    %v1387 = vmul.f32 %v539, %v1351
    %v1388 = vmul.f32 %v541, %v1353
    %v1389 = vmul.f32 %v390, %v1282
    %v1390 = vmul.f32 %v392, %v1284
    %v1391 = vmul.f32 %v543, %v1355
    %v1392 = vmul.f32 %v545, %v1357
    %v1393 = vmul.f32 %v396, %v1288
    %v1394 = vmul.f32 %v398, %v1290
    %v1395 = vmul.f32 %v549, %v1361
    %v1396 = vmul.f32 %v551, %v1363
    %v1397 = vmul.f32 %v400, %v1292
    %v1398 = vmul.f32 %v402, %v1294
    %v1399 = vmul.f32 %v553, %v1365
    %v1400 = vmul.f32 %v555, %v1367
    %v1401 = vpack.c.bf16 %v1373, %v1369
    %v1402 = vpack.c.bf16 %v1374, %v1370
    %v1403 = vpack.c.bf16 %v1375, %v1371
    %v1404 = vpack.c.bf16 %v1376, %v1372
    %v1405 = vpack.c.bf16 %v1381, %v1377
    %v1406 = vpack.c.bf16 %v1382, %v1378
    %v1407 = vpack.c.bf16 %v1383, %v1379
    %v1408 = vpack.c.bf16 %v1384, %v1380
    %v1409 = vpack.c.bf16 %v1389, %v1385
    %v1410 = vpack.c.bf16 %v1390, %v1386
    %v1411 = vpack.c.bf16 %v1391, %v1387
    %v1412 = vpack.c.bf16 %v1392, %v1388
    %v1413 = vpack.c.bf16 %v1397, %v1393
    %v1414 = vpack.c.bf16 %v1398, %v1394
    %v1415 = vpack.c.bf16 %v1399, %v1395
    %v1416 = vpack.c.bf16 %v1400, %v1396
    %v1417 = vld [vmem:[%s5] sm:$0xf]
    %v1418 = vld [vmem:[%s5 + $0x4] sm:$0xf]
    %v1419 = vld [vmem:[%s5 + $0x8] sm:$0xf]
    %v1420 = vld [vmem:[%s5 + $0xc] sm:$0xf]
    %v1421 = vld [vmem:[%s5 + $0x10] sm:$0xf]
    %v1422 = vld [vmem:[%s5 + $0x14] sm:$0xf]
    %v1423 = vld [vmem:[%s5 + $0x18] sm:$0xf]
    %v1424 = vld [vmem:[%s5 + $0x1c] sm:$0xf]
    %v1425 = vld [vmem:[%s5 + $0x20] sm:$0xf]
    %v1426 = vld [vmem:[%s5 + $0x24] sm:$0xf]
    %v1427 = vld [vmem:[%s5 + $0x28] sm:$0xf]
    %v1428 = vld [vmem:[%s5 + $0x2c] sm:$0xf]
    %v1429 = vld [vmem:[%s5 + $0x30] sm:$0xf]
    %v1430 = vld [vmem:[%s5 + $0x34] sm:$0xf]
    %v1431 = vld [vmem:[%s5 + $0x38] sm:$0xf]
    %v1432 = vld [vmem:[%s5 + $0x3c] sm:$0xf]
    %v1449 = vunpack.c.l.b16 %v1417
    %v1450 = vunpack.c.l.b16 %v1418
    %v1451 = vunpack.c.l.b16 %v1419
    %v1452 = vunpack.c.l.b16 %v1420
    %v1453 = vunpack.c.l.b16 %v1421
    %v1454 = vunpack.c.l.b16 %v1422
    %v1455 = vunpack.c.l.b16 %v1423
    %v1456 = vunpack.c.l.b16 %v1424
    %v1457 = vunpack.c.l.b16 %v1425
    %v1458 = vunpack.c.l.b16 %v1426
    %v1459 = vunpack.c.l.b16 %v1427
    %v1460 = vunpack.c.l.b16 %v1428
    %v1461 = vunpack.c.l.b16 %v1429
    %v1462 = vunpack.c.l.b16 %v1430
    %v1463 = vunpack.c.l.b16 %v1431
    %v1464 = vunpack.c.l.b16 %v1432
    %v1465 = vpack.c.b16 %v1450, %v1449
    %v1466 = vpack.c.b16 %v1452, %v1451
    %v1467 = vpack.c.b16 %v1454, %v1453
    %v1468 = vpack.c.b16 %v1456, %v1455
    %v1469 = vpack.c.b16 %v1458, %v1457
    %v1470 = vpack.c.b16 %v1460, %v1459
    %v1471 = vpack.c.b16 %v1462, %v1461
    %v1472 = vpack.c.b16 %v1464, %v1463
    %v1474 = vsel %vm1103, %v1465, 0
    %v1477 = vsel %vm1103, %v1466, 0
    %v1480 = vsel %vm1103, %v1467, 0
    %v1483 = vsel %vm1103, %v1468, 0
    %v1486 = vsel %vm1103, %v1469, 0
    %v1489 = vsel %vm1103, %v1470, 0
    %v1492 = vsel %vm1103, %v1471, 0
    %v1495 = vsel %vm1103, %v1472, 0
    %1497 = vmatprep.subr.bf16.mxu0 %v1402
    %1498 = vmatpush1.bf16.msra.mxu0 %v1401
    %1499 = vmatprep.subr.bf16.mxu0 %v1406
    %1500 = vmatpush1.bf16.msra.mxu0 %v1405
    %1501 = vmatprep.subr.bf16.mxu0 %v1410
    %1502 = vmatpush1.bf16.msra.mxu0 %v1409
    %1503 = vmatprep.subr.bf16.mxu0 %v1414
    %1504 = vmatpush1.bf16.msra.mxu0 %v1413
    %1505 = vmatprep.subr.bf16.mxu0 0
    %1506 = vmatpush1.bf16.msra.mxu0 0
    %1507 = vmatprep.subr.bf16.mxu0 0
    %1508 = vmatpush1.bf16.msra.mxu0 0
    %1509 = vmatprep.subr.bf16.mxu0 0
    %1510 = vmatpush1.bf16.msra.mxu0 0
    %1511 = vmatprep.subr.bf16.mxu0 0
    %1512 = vmatpush1.bf16.msra.mxu0 0
    %1513 = vmatprep.subr.bf16.mxu0 0
    %1514 = vmatpush1.bf16.msra.mxu0 0
    %1515 = vmatprep.subr.bf16.mxu0 0
    %1516 = vmatpush1.bf16.msra.mxu0 0
    %1517 = vmatprep.subr.bf16.mxu0 0
    %1518 = vmatpush1.bf16.msra.mxu0 0
    %1519 = vmatprep.subr.bf16.mxu0 0
    %1520 = vmatpush1.bf16.msra.mxu0 0
    %1521 = vmatprep.subr.bf16.mxu0 0
    %1522 = vmatpush1.bf16.msra.mxu0 0
    %1523 = vmatprep.subr.bf16.mxu0 0
    %1524 = vmatpush1.bf16.msra.mxu0 0
    %1525 = vmatprep.subr.bf16.mxu0 0
    %1526 = vmatpush1.bf16.msra.mxu0 0
    %1527 = vmatprep.subr.bf16.mxu0 0
    %1528 = vmatpush1.bf16.msra.mxu0 0
    %1529 = vmatprep.mubr.bf16.mxu0 0
    %1530 = vmatmul.mubr.bf16.gmra.mrb[0].mxu0 %v1474
    %v1531 = vpop.f32.mrb[0].mxu0
    %v1532 = vadd.f32 0.0, %v1531
    %v1533 = vpop.f32.mrb[0].mxu0
    %v1534 = vadd.f32 0.0, %v1533
    %v1535 = vpop.f32.mrb[0].mxu0
    %v1536 = vadd.f32 0.0, %v1535
    %v1537 = vpop.f32.mrb[0].mxu0
    %v1538 = vadd.f32 0.0, %v1537
    %1539 = vmatprep.mubr.bf16.mxu0 0
    %1540 = vmatmul.mubr.bf16.gmra.mrb[0].mxu0 %v1477
    %v1541 = vpop.f32.mrb[0].mxu0
    %v1542 = vadd.f32 0.0, %v1541
    %v1543 = vpop.f32.mrb[0].mxu0
    %v1544 = vadd.f32 0.0, %v1543
    %v1545 = vpop.f32.mrb[0].mxu0
    %v1546 = vadd.f32 0.0, %v1545
    %v1547 = vpop.f32.mrb[0].mxu0
    %v1548 = vadd.f32 0.0, %v1547
    %1549 = vmatprep.mubr.bf16.mxu0 0
    %1550 = vmatmul.mubr.bf16.gmra.mrb[0].mxu0 %v1480
    %v1551 = vpop.f32.mrb[0].mxu0
    %v1552 = vadd.f32 0.0, %v1551
    %v1553 = vpop.f32.mrb[0].mxu0
    %v1554 = vadd.f32 0.0, %v1553
    %v1555 = vpop.f32.mrb[0].mxu0
    %v1556 = vadd.f32 0.0, %v1555
    %v1557 = vpop.f32.mrb[0].mxu0
    %v1558 = vadd.f32 0.0, %v1557
    %1559 = vmatprep.mubr.bf16.mxu0 0
    %1560 = vmatmul.mubr.bf16.gmra.mrb[0].mxu0 %v1483
    %v1561 = vpop.f32.mrb[0].mxu0
    %v1562 = vadd.f32 0.0, %v1561
    %v1563 = vpop.f32.mrb[0].mxu0
    %v1564 = vadd.f32 0.0, %v1563
    %v1565 = vpop.f32.mrb[0].mxu0
    %v1566 = vadd.f32 0.0, %v1565
    %v1567 = vpop.f32.mrb[0].mxu0
    %v1568 = vadd.f32 0.0, %v1567
    %1569 = vmatprep.mubr.bf16.mxu0 0
    %1570 = vmatmul.mubr.bf16.gmra.mrb[0].mxu0 %v1486
    %v1571 = vpop.f32.mrb[0].mxu0
    %v1572 = vadd.f32 0.0, %v1571
    %v1573 = vpop.f32.mrb[0].mxu0
    %v1574 = vadd.f32 0.0, %v1573
    %v1575 = vpop.f32.mrb[0].mxu0
    %v1576 = vadd.f32 0.0, %v1575
    %v1577 = vpop.f32.mrb[0].mxu0
    %v1578 = vadd.f32 0.0, %v1577
    %1579 = vmatprep.mubr.bf16.mxu0 0
    %1580 = vmatmul.mubr.bf16.gmra.mrb[0].mxu0 %v1489
    %v1581 = vpop.f32.mrb[0].mxu0
    %v1582 = vadd.f32 0.0, %v1581
    %v1583 = vpop.f32.mrb[0].mxu0
    %v1584 = vadd.f32 0.0, %v1583
    %v1585 = vpop.f32.mrb[0].mxu0
    %v1586 = vadd.f32 0.0, %v1585
    %v1587 = vpop.f32.mrb[0].mxu0
    %v1588 = vadd.f32 0.0, %v1587
    %1589 = vmatprep.mubr.bf16.mxu0 0
    %1590 = vmatmul.mubr.bf16.gmra.mrb[0].mxu0 %v1492
    %v1591 = vpop.f32.mrb[0].mxu0
    %v1592 = vadd.f32 0.0, %v1591
    %v1593 = vpop.f32.mrb[0].mxu0
    %v1594 = vadd.f32 0.0, %v1593
    %v1595 = vpop.f32.mrb[0].mxu0
    %v1596 = vadd.f32 0.0, %v1595
    %v1597 = vpop.f32.mrb[0].mxu0
    %v1598 = vadd.f32 0.0, %v1597
    %1599 = vmatprep.mubr.bf16.mxu0 0
    %1600 = vmatmul.mubr.bf16.gmra.mrb[0].mxu0 %v1495
    %v1601 = vpop.f32.mrb[0].mxu0
    %v1602 = vadd.f32 0.0, %v1601
    %v1603 = vpop.f32.mrb[0].mxu0
    %v1604 = vadd.f32 0.0, %v1603
    %v1605 = vpop.f32.mrb[0].mxu0
    %v1606 = vadd.f32 0.0, %v1605
    %v1607 = vpop.f32.mrb[0].mxu0
    %v1608 = vadd.f32 0.0, %v1607
    %1609 = vdwg.mxu0
    %1610 = vmatprep.subr.bf16.mxu0 %v1404
    %1611 = vmatpush1.bf16.msra.mxu0 %v1403
    %1612 = vmatprep.subr.bf16.mxu0 %v1408
    %1613 = vmatpush1.bf16.msra.mxu0 %v1407
    %1614 = vmatprep.subr.bf16.mxu0 %v1412
    %1615 = vmatpush1.bf16.msra.mxu0 %v1411
    %1616 = vmatprep.subr.bf16.mxu0 %v1416
    %1617 = vmatpush1.bf16.msra.mxu0 %v1415
    %1618 = vmatprep.subr.bf16.mxu0 0
    %1619 = vmatpush1.bf16.msra.mxu0 0
    %1620 = vmatprep.subr.bf16.mxu0 0
    %1621 = vmatpush1.bf16.msra.mxu0 0
    %1622 = vmatprep.subr.bf16.mxu0 0
    %1623 = vmatpush1.bf16.msra.mxu0 0
    %1624 = vmatprep.subr.bf16.mxu0 0
    %1625 = vmatpush1.bf16.msra.mxu0 0
    %1626 = vmatprep.subr.bf16.mxu0 0
    %1627 = vmatpush1.bf16.msra.mxu0 0
    %1628 = vmatprep.subr.bf16.mxu0 0
    %1629 = vmatpush1.bf16.msra.mxu0 0
    %1630 = vmatprep.subr.bf16.mxu0 0
    %1631 = vmatpush1.bf16.msra.mxu0 0
    %1632 = vmatprep.subr.bf16.mxu0 0
    %1633 = vmatpush1.bf16.msra.mxu0 0
    %1634 = vmatprep.subr.bf16.mxu0 0
    %1635 = vmatpush1.bf16.msra.mxu0 0
    %1636 = vmatprep.subr.bf16.mxu0 0
    %1637 = vmatpush1.bf16.msra.mxu0 0
    %1638 = vmatprep.subr.bf16.mxu0 0
    %1639 = vmatpush1.bf16.msra.mxu0 0
    %1640 = vmatprep.subr.bf16.mxu0 0
    %1641 = vmatpush1.bf16.msra.mxu0 0
    %1642 = vmatprep.mubr.bf16.mxu0 0
    %1643 = vmatmul.mubr.bf16.gmra.mrb[0].mxu0 %v1474
    %v1644 = vpop.f32.mrb[0].mxu0
    %v1645 = vadd.f32 0.0, %v1644
    %v1646 = vpop.f32.mrb[0].mxu0
    %v1647 = vadd.f32 0.0, %v1646
    %v1648 = vpop.f32.mrb[0].mxu0
    %v1649 = vadd.f32 0.0, %v1648
    %v1650 = vpop.f32.mrb[0].mxu0
    %v1651 = vadd.f32 0.0, %v1650
    %1652 = vmatprep.mubr.bf16.mxu0 0
    %1653 = vmatmul.mubr.bf16.gmra.mrb[0].mxu0 %v1477
    %v1654 = vpop.f32.mrb[0].mxu0
    %v1655 = vadd.f32 0.0, %v1654
    %v1656 = vpop.f32.mrb[0].mxu0
    %v1657 = vadd.f32 0.0, %v1656
    %v1658 = vpop.f32.mrb[0].mxu0
    %v1659 = vadd.f32 0.0, %v1658
    %v1660 = vpop.f32.mrb[0].mxu0
    %v1661 = vadd.f32 0.0, %v1660
    %1662 = vmatprep.mubr.bf16.mxu0 0
    %1663 = vmatmul.mubr.bf16.gmra.mrb[0].mxu0 %v1480
    %v1664 = vpop.f32.mrb[0].mxu0
    %v1665 = vadd.f32 0.0, %v1664
    %v1666 = vpop.f32.mrb[0].mxu0
    %v1667 = vadd.f32 0.0, %v1666
    %v1668 = vpop.f32.mrb[0].mxu0
    %v1669 = vadd.f32 0.0, %v1668
    %v1670 = vpop.f32.mrb[0].mxu0
    %v1671 = vadd.f32 0.0, %v1670
    %1672 = vmatprep.mubr.bf16.mxu0 0
    %1673 = vmatmul.mubr.bf16.gmra.mrb[0].mxu0 %v1483
    %v1674 = vpop.f32.mrb[0].mxu0
    %v1675 = vadd.f32 0.0, %v1674
    %v1676 = vpop.f32.mrb[0].mxu0
    %v1677 = vadd.f32 0.0, %v1676
    %v1678 = vpop.f32.mrb[0].mxu0
    %v1679 = vadd.f32 0.0, %v1678
    %v1680 = vpop.f32.mrb[0].mxu0
    %v1681 = vadd.f32 0.0, %v1680
    %1682 = vmatprep.mubr.bf16.mxu0 0
    %1683 = vmatmul.mubr.bf16.gmra.mrb[0].mxu0 %v1486
    %v1684 = vpop.f32.mrb[0].mxu0
    %v1685 = vadd.f32 0.0, %v1684
    %v1686 = vpop.f32.mrb[0].mxu0
    %v1687 = vadd.f32 0.0, %v1686
    %v1688 = vpop.f32.mrb[0].mxu0
    %v1689 = vadd.f32 0.0, %v1688
    %v1690 = vpop.f32.mrb[0].mxu0
    %v1691 = vadd.f32 0.0, %v1690
    %1692 = vmatprep.mubr.bf16.mxu0 0
    %1693 = vmatmul.mubr.bf16.gmra.mrb[0].mxu0 %v1489
    %v1694 = vpop.f32.mrb[0].mxu0
    %v1695 = vadd.f32 0.0, %v1694
    %v1696 = vpop.f32.mrb[0].mxu0
    %v1697 = vadd.f32 0.0, %v1696
    %v1698 = vpop.f32.mrb[0].mxu0
    %v1699 = vadd.f32 0.0, %v1698
    %v1700 = vpop.f32.mrb[0].mxu0
    %v1701 = vadd.f32 0.0, %v1700
    %1702 = vmatprep.mubr.bf16.mxu0 0
    %1703 = vmatmul.mubr.bf16.gmra.mrb[0].mxu0 %v1492
    %v1704 = vpop.f32.mrb[0].mxu0
    %v1705 = vadd.f32 0.0, %v1704
    %v1706 = vpop.f32.mrb[0].mxu0
    %v1707 = vadd.f32 0.0, %v1706
    %v1708 = vpop.f32.mrb[0].mxu0
    %v1709 = vadd.f32 0.0, %v1708
    %v1710 = vpop.f32.mrb[0].mxu0
    %v1711 = vadd.f32 0.0, %v1710
    %1712 = vmatprep.mubr.bf16.mxu0 0
    %1713 = vmatmul.mubr.bf16.gmra.mrb[0].mxu0 %v1495
    %v1714 = vpop.f32.mrb[0].mxu0
    %v1715 = vadd.f32 0.0, %v1714
    %v1716 = vpop.f32.mrb[0].mxu0
    %v1717 = vadd.f32 0.0, %v1716
    %v1718 = vpop.f32.mrb[0].mxu0
    %v1719 = vadd.f32 0.0, %v1718
    %v1720 = vpop.f32.mrb[0].mxu0
    %v1721 = vadd.f32 0.0, %v1720
    %1722 = vdwg.mxu0
    %v1723 = vpack.c.bf16 %v1536, %v1532
    %v1724 = vpack.c.bf16 %v1538, %v1534
    %v1725 = vpack.c.bf16 %v1649, %v1645
    %v1726 = vpack.c.bf16 %v1651, %v1647
    %v1727 = vpack.c.bf16 %v1546, %v1542
    %v1728 = vpack.c.bf16 %v1548, %v1544
    %v1729 = vpack.c.bf16 %v1659, %v1655
    %v1730 = vpack.c.bf16 %v1661, %v1657
    %v1731 = vpack.c.bf16 %v1556, %v1552
    %v1732 = vpack.c.bf16 %v1558, %v1554
    %v1733 = vpack.c.bf16 %v1669, %v1665
    %v1734 = vpack.c.bf16 %v1671, %v1667
    %v1735 = vpack.c.bf16 %v1566, %v1562
    %v1736 = vpack.c.bf16 %v1568, %v1564
    %v1737 = vpack.c.bf16 %v1679, %v1675
    %v1738 = vpack.c.bf16 %v1681, %v1677
    %v1739 = vpack.c.bf16 %v1576, %v1572
    %v1740 = vpack.c.bf16 %v1578, %v1574
    %v1741 = vpack.c.bf16 %v1689, %v1685
    %v1742 = vpack.c.bf16 %v1691, %v1687
    %v1743 = vpack.c.bf16 %v1586, %v1582
    %v1744 = vpack.c.bf16 %v1588, %v1584
    %v1745 = vpack.c.bf16 %v1699, %v1695
    %v1746 = vpack.c.bf16 %v1701, %v1697
    %v1747 = vpack.c.bf16 %v1596, %v1592
    %v1748 = vpack.c.bf16 %v1598, %v1594
    %v1749 = vpack.c.bf16 %v1709, %v1705
    %v1750 = vpack.c.bf16 %v1711, %v1707
    %v1751 = vpack.c.bf16 %v1606, %v1602
    %v1752 = vpack.c.bf16 %v1608, %v1604
    %v1753 = vpack.c.bf16 %v1719, %v1715
    %v1754 = vpack.c.bf16 %v1721, %v1717
    %1755 = vmatprep.subr.bf16.mxu0 0
    %1756 = vmatpush1.bf16.msra.mxu0 %v877
    %1757 = vmatprep.subr.bf16.mxu0 0
    %1758 = vmatpush1.bf16.msra.mxu0 %v878
    %1759 = vmatprep.subr.bf16.mxu0 0
    %1760 = vmatpush1.bf16.msra.mxu0 %v879
    %1761 = vmatprep.subr.bf16.mxu0 0
    %1762 = vmatpush1.bf16.msra.mxu0 %v880
    %1763 = vmatprep.subr.bf16.mxu0 0
    %1764 = vmatpush1.bf16.msra.mxu0 %v881
    %1765 = vmatprep.subr.bf16.mxu0 0
    %1766 = vmatpush1.bf16.msra.mxu0 %v882
    %1767 = vmatprep.subr.bf16.mxu0 0
    %1768 = vmatpush1.bf16.msra.mxu0 %v883
    %1769 = vmatprep.subr.bf16.mxu0 0
    %1770 = vmatpush1.bf16.msra.mxu0 %v884
    %1771 = vmatprep.subr.bf16.mxu0 0
    %1772 = vmatpush1.bf16.msra.mxu0 %v885
    %1773 = vmatprep.subr.bf16.mxu0 0
    %1774 = vmatpush1.bf16.msra.mxu0 %v886
    %1775 = vmatprep.subr.bf16.mxu0 0
    %1776 = vmatpush1.bf16.msra.mxu0 %v887
    %1777 = vmatprep.subr.bf16.mxu0 0
    %1778 = vmatpush1.bf16.msra.mxu0 %v888
    %1779 = vmatprep.subr.bf16.mxu0 0
    %1780 = vmatpush1.bf16.msra.mxu0 %v889
    %1781 = vmatprep.subr.bf16.mxu0 0
    %1782 = vmatpush1.bf16.msra.mxu0 %v890
    %1783 = vmatprep.subr.bf16.mxu0 0
    %1784 = vmatpush1.bf16.msra.mxu0 %v891
    %1785 = vmatprep.subr.bf16.mxu0 0
    %1786 = vmatpush1.bf16.msra.mxu0 %v892
    %1787 = vmatprep.mubr.bf16.mxu0 %v1724
    %1788 = vmatmul.mubr.bf16.gmra.mrb[0].mxu0 %v1723
    %v1789 = vpop.f32.mrb[0].mxu0
    %v1790 = vadd.f32 0.0, %v1789
    %v1791 = vpop.f32.mrb[0].mxu0
    %v1792 = vpop.f32.mrb[0].mxu0
    %v1793 = vadd.f32 0.0, %v1792
    %v1794 = vpop.f32.mrb[0].mxu0
    %1795 = vmatprep.mubr.bf16.mxu0 %v1728
    %1796 = vmatmul.mubr.bf16.gmra.mrb[0].mxu0 %v1727
    %v1797 = vpop.f32.mrb[0].mxu0
    %v1798 = vadd.f32 0.0, %v1797
    %v1799 = vpop.f32.mrb[0].mxu0
    %v1800 = vpop.f32.mrb[0].mxu0
    %v1801 = vadd.f32 0.0, %v1800
    %v1802 = vpop.f32.mrb[0].mxu0
    %1803 = vmatprep.mubr.bf16.mxu0 %v1732
    %1804 = vmatmul.mubr.bf16.gmra.mrb[0].mxu0 %v1731
    %v1805 = vpop.f32.mrb[0].mxu0
    %v1806 = vadd.f32 0.0, %v1805
    %v1807 = vpop.f32.mrb[0].mxu0
    %v1808 = vpop.f32.mrb[0].mxu0
    %v1809 = vadd.f32 0.0, %v1808
    %v1810 = vpop.f32.mrb[0].mxu0
    %1811 = vmatprep.mubr.bf16.mxu0 %v1736
    %1812 = vmatmul.mubr.bf16.gmra.mrb[0].mxu0 %v1735
    %v1813 = vpop.f32.mrb[0].mxu0
    %v1814 = vadd.f32 0.0, %v1813
    %v1815 = vpop.f32.mrb[0].mxu0
    %v1816 = vpop.f32.mrb[0].mxu0
    %v1817 = vadd.f32 0.0, %v1816
    %v1818 = vpop.f32.mrb[0].mxu0
    %1819 = vmatprep.mubr.bf16.mxu0 %v1740
    %1820 = vmatmul.mubr.bf16.gmra.mrb[0].mxu0 %v1739
    %v1821 = vpop.f32.mrb[0].mxu0
    %v1822 = vadd.f32 0.0, %v1821
    %v1823 = vpop.f32.mrb[0].mxu0
    %v1824 = vpop.f32.mrb[0].mxu0
    %v1825 = vadd.f32 0.0, %v1824
    %v1826 = vpop.f32.mrb[0].mxu0
    %1827 = vmatprep.mubr.bf16.mxu0 %v1744
    %1828 = vmatmul.mubr.bf16.gmra.mrb[0].mxu0 %v1743
    %v1829 = vpop.f32.mrb[0].mxu0
    %v1830 = vadd.f32 0.0, %v1829
    %v1831 = vpop.f32.mrb[0].mxu0
    %v1832 = vpop.f32.mrb[0].mxu0
    %v1833 = vadd.f32 0.0, %v1832
    %v1834 = vpop.f32.mrb[0].mxu0
    %1835 = vmatprep.mubr.bf16.mxu0 %v1748
    %1836 = vmatmul.mubr.bf16.gmra.mrb[0].mxu0 %v1747
    %v1837 = vpop.f32.mrb[0].mxu0
    %v1838 = vadd.f32 0.0, %v1837
    %v1839 = vpop.f32.mrb[0].mxu0
    %v1840 = vpop.f32.mrb[0].mxu0
    %v1841 = vadd.f32 0.0, %v1840
    %v1842 = vpop.f32.mrb[0].mxu0
    %1843 = vmatprep.mubr.bf16.mxu0 %v1752
    %1844 = vmatmul.mubr.bf16.gmra.mrb[0].mxu0 %v1751
    %v1845 = vpop.f32.mrb[0].mxu0
    %v1846 = vadd.f32 0.0, %v1845
    %v1847 = vpop.f32.mrb[0].mxu0
    %v1848 = vpop.f32.mrb[0].mxu0
    %v1849 = vadd.f32 0.0, %v1848
    %v1850 = vpop.f32.mrb[0].mxu0
    %1851 = vdwg.mxu0
    %1852 = vmatprep.subr.bf16.mxu0 0
    %1853 = vmatpush1.bf16.msra.mxu0 %v893
    %1854 = vmatprep.subr.bf16.mxu0 0
    %1855 = vmatpush1.bf16.msra.mxu0 %v894
    %1856 = vmatprep.subr.bf16.mxu0 0
    %1857 = vmatpush1.bf16.msra.mxu0 %v895
    %1858 = vmatprep.subr.bf16.mxu0 0
    %1859 = vmatpush1.bf16.msra.mxu0 %v896
    %1860 = vmatprep.subr.bf16.mxu0 0
    %1861 = vmatpush1.bf16.msra.mxu0 %v897
    %1862 = vmatprep.subr.bf16.mxu0 0
    %1863 = vmatpush1.bf16.msra.mxu0 %v898
    %1864 = vmatprep.subr.bf16.mxu0 0
    %1865 = vmatpush1.bf16.msra.mxu0 %v899
    %1866 = vmatprep.subr.bf16.mxu0 0
    %1867 = vmatpush1.bf16.msra.mxu0 %v900
    %1868 = vmatprep.subr.bf16.mxu0 0
    %1869 = vmatpush1.bf16.msra.mxu0 %v901
    %1870 = vmatprep.subr.bf16.mxu0 0
    %1871 = vmatpush1.bf16.msra.mxu0 %v902
    %1872 = vmatprep.subr.bf16.mxu0 0
    %1873 = vmatpush1.bf16.msra.mxu0 %v903
    %1874 = vmatprep.subr.bf16.mxu0 0
    %1875 = vmatpush1.bf16.msra.mxu0 %v904
    %1876 = vmatprep.subr.bf16.mxu0 0
    %1877 = vmatpush1.bf16.msra.mxu0 %v905
    %1878 = vmatprep.subr.bf16.mxu0 0
    %1879 = vmatpush1.bf16.msra.mxu0 %v906
    %1880 = vmatprep.subr.bf16.mxu0 0
    %1881 = vmatpush1.bf16.msra.mxu0 %v907
    %1882 = vmatprep.subr.bf16.mxu0 0
    %1883 = vmatpush1.bf16.msra.mxu0 %v908
    %1884 = vmatprep.mubr.bf16.mxu0 %v1726
    %1885 = vmatmul.mubr.bf16.gmra.mrb[0].mxu0 %v1725
    %v1886 = vpop.f32.mrb[0].mxu0
    %v1887 = vadd.f32 %v1790, %v1886
    %v1888 = vpop.f32.mrb[0].mxu0
    %v1889 = vpop.f32.mrb[0].mxu0
    %v1890 = vadd.f32 %v1793, %v1889
    %v1891 = vpop.f32.mrb[0].mxu0
    %1892 = vmatprep.mubr.bf16.mxu0 %v1730
    %1893 = vmatmul.mubr.bf16.gmra.mrb[0].mxu0 %v1729
    %v1894 = vpop.f32.mrb[0].mxu0
    %v1895 = vadd.f32 %v1798, %v1894
    %v1896 = vpop.f32.mrb[0].mxu0
    %v1897 = vpop.f32.mrb[0].mxu0
    %v1898 = vadd.f32 %v1801, %v1897
    %v1899 = vpop.f32.mrb[0].mxu0
    %1900 = vmatprep.mubr.bf16.mxu0 %v1734
    %1901 = vmatmul.mubr.bf16.gmra.mrb[0].mxu0 %v1733
    %v1902 = vpop.f32.mrb[0].mxu0
    %v1903 = vadd.f32 %v1806, %v1902
    %v1904 = vpop.f32.mrb[0].mxu0
    %v1905 = vpop.f32.mrb[0].mxu0
    %v1906 = vadd.f32 %v1809, %v1905
    %v1907 = vpop.f32.mrb[0].mxu0
    %1908 = vmatprep.mubr.bf16.mxu0 %v1738
    %1909 = vmatmul.mubr.bf16.gmra.mrb[0].mxu0 %v1737
    %v1910 = vpop.f32.mrb[0].mxu0
    %v1911 = vadd.f32 %v1814, %v1910
    %v1912 = vpop.f32.mrb[0].mxu0
    %v1913 = vpop.f32.mrb[0].mxu0
    %v1914 = vadd.f32 %v1817, %v1913
    %v1915 = vpop.f32.mrb[0].mxu0
    %1916 = vmatprep.mubr.bf16.mxu0 %v1742
    %1917 = vmatmul.mubr.bf16.gmra.mrb[0].mxu0 %v1741
    %v1918 = vpop.f32.mrb[0].mxu0
    %v1919 = vadd.f32 %v1822, %v1918
    %v1920 = vpop.f32.mrb[0].mxu0
    %v1921 = vpop.f32.mrb[0].mxu0
    %v1922 = vadd.f32 %v1825, %v1921
    %v1923 = vpop.f32.mrb[0].mxu0
    %1924 = vmatprep.mubr.bf16.mxu0 %v1746
    %1925 = vmatmul.mubr.bf16.gmra.mrb[0].mxu0 %v1745
    %v1926 = vpop.f32.mrb[0].mxu0
    %v1927 = vadd.f32 %v1830, %v1926
    %v1928 = vpop.f32.mrb[0].mxu0
    %v1929 = vpop.f32.mrb[0].mxu0
    %v1930 = vadd.f32 %v1833, %v1929
    %v1931 = vpop.f32.mrb[0].mxu0
    %1932 = vmatprep.mubr.bf16.mxu0 %v1750
    %1933 = vmatmul.mubr.bf16.gmra.mrb[0].mxu0 %v1749
    %v1934 = vpop.f32.mrb[0].mxu0
    %v1935 = vadd.f32 %v1838, %v1934
    %v1936 = vpop.f32.mrb[0].mxu0
    %v1937 = vpop.f32.mrb[0].mxu0
    %v1938 = vadd.f32 %v1841, %v1937
    %v1939 = vpop.f32.mrb[0].mxu0
    %1940 = vmatprep.mubr.bf16.mxu0 %v1754
    %1941 = vmatmul.mubr.bf16.gmra.mrb[0].mxu0 %v1753
    %v1942 = vpop.f32.mrb[0].mxu0
    %v1943 = vadd.f32 %v1846, %v1942
    %v1944 = vpop.f32.mrb[0].mxu0
    %v1945 = vpop.f32.mrb[0].mxu0
    %v1946 = vadd.f32 %v1849, %v1945
    %v1947 = vpop.f32.mrb[0].mxu0
    %1948 = vdwg.mxu0
    %v1949 = vmul.f32 %v1532, %v1532
    %v1950 = vmul.f32 %v1534, %v1534
    %v1951 = vmul.f32 %v1645, %v1645
    %v1952 = vmul.f32 %v1647, %v1647
    %v1953 = vmul.f32 %v1536, %v1536
    %v1954 = vmul.f32 %v1538, %v1538
    %v1955 = vmul.f32 %v1649, %v1649
    %v1956 = vmul.f32 %v1651, %v1651
    %v1957 = vmul.f32 %v1542, %v1542
    %v1958 = vmul.f32 %v1544, %v1544
    %v1959 = vmul.f32 %v1655, %v1655
    %v1960 = vmul.f32 %v1657, %v1657
    %v1961 = vmul.f32 %v1546, %v1546
    %v1962 = vmul.f32 %v1548, %v1548
    %v1963 = vmul.f32 %v1659, %v1659
    %v1964 = vmul.f32 %v1661, %v1661
    %v1965 = vmul.f32 %v1552, %v1552
    %v1966 = vmul.f32 %v1554, %v1554
    %v1967 = vmul.f32 %v1665, %v1665
    %v1968 = vmul.f32 %v1667, %v1667
    %v1969 = vmul.f32 %v1556, %v1556
    %v1970 = vmul.f32 %v1558, %v1558
    %v1971 = vmul.f32 %v1669, %v1669
    %v1972 = vmul.f32 %v1671, %v1671
    %v1973 = vmul.f32 %v1562, %v1562
    %v1974 = vmul.f32 %v1564, %v1564
    %v1975 = vmul.f32 %v1675, %v1675
    %v1976 = vmul.f32 %v1677, %v1677
    %v1977 = vmul.f32 %v1566, %v1566
    %v1978 = vmul.f32 %v1568, %v1568
    %v1979 = vmul.f32 %v1679, %v1679
    %v1980 = vmul.f32 %v1681, %v1681
    %v1981 = vmul.f32 %v1572, %v1572
    %v1982 = vmul.f32 %v1574, %v1574
    %v1983 = vmul.f32 %v1685, %v1685
    %v1984 = vmul.f32 %v1687, %v1687
    %v1985 = vmul.f32 %v1576, %v1576
    %v1986 = vmul.f32 %v1578, %v1578
    %v1987 = vmul.f32 %v1689, %v1689
    %v1988 = vmul.f32 %v1691, %v1691
    %v1989 = vmul.f32 %v1582, %v1582
    %v1990 = vmul.f32 %v1584, %v1584
    %v1991 = vmul.f32 %v1695, %v1695
    %v1992 = vmul.f32 %v1697, %v1697
    %v1993 = vmul.f32 %v1586, %v1586
    %v1994 = vmul.f32 %v1588, %v1588
    %v1995 = vmul.f32 %v1699, %v1699
    %v1996 = vmul.f32 %v1701, %v1701
    %v1997 = vmul.f32 %v1592, %v1592
    %v1998 = vmul.f32 %v1594, %v1594
    %v1999 = vmul.f32 %v1705, %v1705
    %v2000 = vmul.f32 %v1707, %v1707
    %v2001 = vmul.f32 %v1596, %v1596
    %v2002 = vmul.f32 %v1598, %v1598
    %v2003 = vmul.f32 %v1709, %v1709
    %v2004 = vmul.f32 %v1711, %v1711
    %v2005 = vmul.f32 %v1602, %v1602
    %v2006 = vmul.f32 %v1604, %v1604
    %v2007 = vmul.f32 %v1715, %v1715
    %v2008 = vmul.f32 %v1717, %v1717
    %v2009 = vmul.f32 %v1606, %v1606
    %v2010 = vmul.f32 %v1608, %v1608
    %v2011 = vmul.f32 %v1719, %v1719
    %v2012 = vmul.f32 %v1721, %v1721
    %v2013 = vpack.c.bf16 %v1953, %v1949
    %v2014 = vpack.c.bf16 %v1954, %v1950
    %v2015 = vpack.c.bf16 %v1955, %v1951
    %v2016 = vpack.c.bf16 %v1956, %v1952
    %v2017 = vpack.c.bf16 %v1961, %v1957
    %v2018 = vpack.c.bf16 %v1962, %v1958
    %v2019 = vpack.c.bf16 %v1963, %v1959
    %v2020 = vpack.c.bf16 %v1964, %v1960
    %v2021 = vpack.c.bf16 %v1969, %v1965
    %v2022 = vpack.c.bf16 %v1970, %v1966
    %v2023 = vpack.c.bf16 %v1971, %v1967
    %v2024 = vpack.c.bf16 %v1972, %v1968
    %v2025 = vpack.c.bf16 %v1977, %v1973
    %v2026 = vpack.c.bf16 %v1978, %v1974
    %v2027 = vpack.c.bf16 %v1979, %v1975
    %v2028 = vpack.c.bf16 %v1980, %v1976
    %v2029 = vpack.c.bf16 %v1985, %v1981
    %v2030 = vpack.c.bf16 %v1986, %v1982
    %v2031 = vpack.c.bf16 %v1987, %v1983
    %v2032 = vpack.c.bf16 %v1988, %v1984
    %v2033 = vpack.c.bf16 %v1993, %v1989
    %v2034 = vpack.c.bf16 %v1994, %v1990
    %v2035 = vpack.c.bf16 %v1995, %v1991
    %v2036 = vpack.c.bf16 %v1996, %v1992
    %v2037 = vpack.c.bf16 %v2001, %v1997
    %v2038 = vpack.c.bf16 %v2002, %v1998
    %v2039 = vpack.c.bf16 %v2003, %v1999
    %v2040 = vpack.c.bf16 %v2004, %v2000
    %v2041 = vpack.c.bf16 %v2009, %v2005
    %v2042 = vpack.c.bf16 %v2010, %v2006
    %v2043 = vpack.c.bf16 %v2011, %v2007
    %v2044 = vpack.c.bf16 %v2012, %v2008
    %2045 = vmatprep.subr.bf16.mxu0 0
    %2046 = vmatpush1.bf16.msra.mxu0 %v877
    %2047 = vmatprep.subr.bf16.mxu0 0
    %2048 = vmatpush1.bf16.msra.mxu0 %v878
    %2049 = vmatprep.subr.bf16.mxu0 0
    %2050 = vmatpush1.bf16.msra.mxu0 %v879
    %2051 = vmatprep.subr.bf16.mxu0 0
    %2052 = vmatpush1.bf16.msra.mxu0 %v880
    %2053 = vmatprep.subr.bf16.mxu0 0
    %2054 = vmatpush1.bf16.msra.mxu0 %v881
    %2055 = vmatprep.subr.bf16.mxu0 0
    %2056 = vmatpush1.bf16.msra.mxu0 %v882
    %2057 = vmatprep.subr.bf16.mxu0 0
    %2058 = vmatpush1.bf16.msra.mxu0 %v883
    %2059 = vmatprep.subr.bf16.mxu0 0
    %2060 = vmatpush1.bf16.msra.mxu0 %v884
    %2061 = vmatprep.subr.bf16.mxu0 0
    %2062 = vmatpush1.bf16.msra.mxu0 %v885
    %2063 = vmatprep.subr.bf16.mxu0 0
    %2064 = vmatpush1.bf16.msra.mxu0 %v886
    %2065 = vmatprep.subr.bf16.mxu0 0
    %2066 = vmatpush1.bf16.msra.mxu0 %v887
    %2067 = vmatprep.subr.bf16.mxu0 0
    %2068 = vmatpush1.bf16.msra.mxu0 %v888
    %2069 = vmatprep.subr.bf16.mxu0 0
    %2070 = vmatpush1.bf16.msra.mxu0 %v889
    %2071 = vmatprep.subr.bf16.mxu0 0
    %2072 = vmatpush1.bf16.msra.mxu0 %v890
    %2073 = vmatprep.subr.bf16.mxu0 0
    %2074 = vmatpush1.bf16.msra.mxu0 %v891
    %2075 = vmatprep.subr.bf16.mxu0 0
    %2076 = vmatpush1.bf16.msra.mxu0 %v892
    %2077 = vmatprep.mubr.bf16.mxu0 %v2014
    %2078 = vmatmul.mubr.bf16.gmra.mrb[0].mxu0 %v2013
    %v2079 = vpop.f32.mrb[0].mxu0
    %v2080 = vadd.f32 0.0, %v2079
    %v2081 = vpop.f32.mrb[0].mxu0
    %v2082 = vpop.f32.mrb[0].mxu0
    %v2083 = vadd.f32 0.0, %v2082
    %v2084 = vpop.f32.mrb[0].mxu0
    %2085 = vmatprep.mubr.bf16.mxu0 %v2018
    %2086 = vmatmul.mubr.bf16.gmra.mrb[0].mxu0 %v2017
    %v2087 = vpop.f32.mrb[0].mxu0
    %v2088 = vadd.f32 0.0, %v2087
    %v2089 = vpop.f32.mrb[0].mxu0
    %v2090 = vpop.f32.mrb[0].mxu0
    %v2091 = vadd.f32 0.0, %v2090
    %v2092 = vpop.f32.mrb[0].mxu0
    %2093 = vmatprep.mubr.bf16.mxu0 %v2022
    %2094 = vmatmul.mubr.bf16.gmra.mrb[0].mxu0 %v2021
    %v2095 = vpop.f32.mrb[0].mxu0
    %v2096 = vadd.f32 0.0, %v2095
    %v2097 = vpop.f32.mrb[0].mxu0
    %v2098 = vpop.f32.mrb[0].mxu0
    %v2099 = vadd.f32 0.0, %v2098
    %v2100 = vpop.f32.mrb[0].mxu0
    %2101 = vmatprep.mubr.bf16.mxu0 %v2026
    %2102 = vmatmul.mubr.bf16.gmra.mrb[0].mxu0 %v2025
    %v2103 = vpop.f32.mrb[0].mxu0
    %v2104 = vadd.f32 0.0, %v2103
    %v2105 = vpop.f32.mrb[0].mxu0
    %v2106 = vpop.f32.mrb[0].mxu0
    %v2107 = vadd.f32 0.0, %v2106
    %v2108 = vpop.f32.mrb[0].mxu0
    %2109 = vmatprep.mubr.bf16.mxu0 %v2030
    %2110 = vmatmul.mubr.bf16.gmra.mrb[0].mxu0 %v2029
    %v2111 = vpop.f32.mrb[0].mxu0
    %v2112 = vadd.f32 0.0, %v2111
    %v2113 = vpop.f32.mrb[0].mxu0
    %v2114 = vpop.f32.mrb[0].mxu0
    %v2115 = vadd.f32 0.0, %v2114
    %v2116 = vpop.f32.mrb[0].mxu0
    %2117 = vmatprep.mubr.bf16.mxu0 %v2034
    %2118 = vmatmul.mubr.bf16.gmra.mrb[0].mxu0 %v2033
    %v2119 = vpop.f32.mrb[0].mxu0
    %v2120 = vadd.f32 0.0, %v2119
    %v2121 = vpop.f32.mrb[0].mxu0
    %v2122 = vpop.f32.mrb[0].mxu0
    %v2123 = vadd.f32 0.0, %v2122
    %v2124 = vpop.f32.mrb[0].mxu0
    %2125 = vmatprep.mubr.bf16.mxu0 %v2038
    %2126 = vmatmul.mubr.bf16.gmra.mrb[0].mxu0 %v2037
    %v2127 = vpop.f32.mrb[0].mxu0
    %v2128 = vadd.f32 0.0, %v2127
    %v2129 = vpop.f32.mrb[0].mxu0
    %v2130 = vpop.f32.mrb[0].mxu0
    %v2131 = vadd.f32 0.0, %v2130
    %v2132 = vpop.f32.mrb[0].mxu0
    %2133 = vmatprep.mubr.bf16.mxu0 %v2042
    %2134 = vmatmul.mubr.bf16.gmra.mrb[0].mxu0 %v2041
    %v2135 = vpop.f32.mrb[0].mxu0
    %v2136 = vadd.f32 0.0, %v2135
    %v2137 = vpop.f32.mrb[0].mxu0
    %v2138 = vpop.f32.mrb[0].mxu0
    %v2139 = vadd.f32 0.0, %v2138
    %v2140 = vpop.f32.mrb[0].mxu0
    %2141 = vdwg.mxu0
    %2142 = vmatprep.subr.bf16.mxu0 0
    %2143 = vmatpush1.bf16.msra.mxu0 %v893
    %2144 = vmatprep.subr.bf16.mxu0 0
    %2145 = vmatpush1.bf16.msra.mxu0 %v894
    %2146 = vmatprep.subr.bf16.mxu0 0
    %2147 = vmatpush1.bf16.msra.mxu0 %v895
    %2148 = vmatprep.subr.bf16.mxu0 0
    %2149 = vmatpush1.bf16.msra.mxu0 %v896
    %2150 = vmatprep.subr.bf16.mxu0 0
    %2151 = vmatpush1.bf16.msra.mxu0 %v897
    %2152 = vmatprep.subr.bf16.mxu0 0
    %2153 = vmatpush1.bf16.msra.mxu0 %v898
    %2154 = vmatprep.subr.bf16.mxu0 0
    %2155 = vmatpush1.bf16.msra.mxu0 %v899
    %2156 = vmatprep.subr.bf16.mxu0 0
    %2157 = vmatpush1.bf16.msra.mxu0 %v900
    %2158 = vmatprep.subr.bf16.mxu0 0
    %2159 = vmatpush1.bf16.msra.mxu0 %v901
    %2160 = vmatprep.subr.bf16.mxu0 0
    %2161 = vmatpush1.bf16.msra.mxu0 %v902
    %2162 = vmatprep.subr.bf16.mxu0 0
    %2163 = vmatpush1.bf16.msra.mxu0 %v903
    %2164 = vmatprep.subr.bf16.mxu0 0
    %2165 = vmatpush1.bf16.msra.mxu0 %v904
    %2166 = vmatprep.subr.bf16.mxu0 0
    %2167 = vmatpush1.bf16.msra.mxu0 %v905
    %2168 = vmatprep.subr.bf16.mxu0 0
    %2169 = vmatpush1.bf16.msra.mxu0 %v906
    %2170 = vmatprep.subr.bf16.mxu0 0
    %2171 = vmatpush1.bf16.msra.mxu0 %v907
    %2172 = vmatprep.subr.bf16.mxu0 0
    %2173 = vmatpush1.bf16.msra.mxu0 %v908
    %2174 = vmatprep.mubr.bf16.mxu0 %v2016
    %2175 = vmatmul.mubr.bf16.gmra.mrb[0].mxu0 %v2015
    %v2176 = vpop.f32.mrb[0].mxu0
    %v2177 = vadd.f32 %v2080, %v2176
    %v2178 = vpop.f32.mrb[0].mxu0
    %v2179 = vpop.f32.mrb[0].mxu0
    %v2180 = vadd.f32 %v2083, %v2179
    %v2181 = vpop.f32.mrb[0].mxu0
    %2182 = vmatprep.mubr.bf16.mxu0 %v2020
    %2183 = vmatmul.mubr.bf16.gmra.mrb[0].mxu0 %v2019
    %v2184 = vpop.f32.mrb[0].mxu0
    %v2185 = vadd.f32 %v2088, %v2184
    %v2186 = vpop.f32.mrb[0].mxu0
    %v2187 = vpop.f32.mrb[0].mxu0
    %v2188 = vadd.f32 %v2091, %v2187
    %v2189 = vpop.f32.mrb[0].mxu0
    %2190 = vmatprep.mubr.bf16.mxu0 %v2024
    %2191 = vmatmul.mubr.bf16.gmra.mrb[0].mxu0 %v2023
    %v2192 = vpop.f32.mrb[0].mxu0
    %v2193 = vadd.f32 %v2096, %v2192
    %v2194 = vpop.f32.mrb[0].mxu0
    %v2195 = vpop.f32.mrb[0].mxu0
    %v2196 = vadd.f32 %v2099, %v2195
    %v2197 = vpop.f32.mrb[0].mxu0
    %2198 = vmatprep.mubr.bf16.mxu0 %v2028
    %2199 = vmatmul.mubr.bf16.gmra.mrb[0].mxu0 %v2027
    %v2200 = vpop.f32.mrb[0].mxu0
    %v2201 = vadd.f32 %v2104, %v2200
    %v2202 = vpop.f32.mrb[0].mxu0
    %v2203 = vpop.f32.mrb[0].mxu0
    %v2204 = vadd.f32 %v2107, %v2203
    %v2205 = vpop.f32.mrb[0].mxu0
    %2206 = vmatprep.mubr.bf16.mxu0 %v2032
    %2207 = vmatmul.mubr.bf16.gmra.mrb[0].mxu0 %v2031
    %v2208 = vpop.f32.mrb[0].mxu0
    %v2209 = vadd.f32 %v2112, %v2208
    %v2210 = vpop.f32.mrb[0].mxu0
    %v2211 = vpop.f32.mrb[0].mxu0
    %v2212 = vadd.f32 %v2115, %v2211
    %v2213 = vpop.f32.mrb[0].mxu0
    %2214 = vmatprep.mubr.bf16.mxu0 %v2036
    %2215 = vmatmul.mubr.bf16.gmra.mrb[0].mxu0 %v2035
    %v2216 = vpop.f32.mrb[0].mxu0
    %v2217 = vadd.f32 %v2120, %v2216
    %v2218 = vpop.f32.mrb[0].mxu0
    %v2219 = vpop.f32.mrb[0].mxu0
    %v2220 = vadd.f32 %v2123, %v2219
    %v2221 = vpop.f32.mrb[0].mxu0
    %2222 = vmatprep.mubr.bf16.mxu0 %v2040
    %2223 = vmatmul.mubr.bf16.gmra.mrb[0].mxu0 %v2039
    %v2224 = vpop.f32.mrb[0].mxu0
    %v2225 = vadd.f32 %v2128, %v2224
    %v2226 = vpop.f32.mrb[0].mxu0
    %v2227 = vpop.f32.mrb[0].mxu0
    %v2228 = vadd.f32 %v2131, %v2227
    %v2229 = vpop.f32.mrb[0].mxu0
    %2230 = vmatprep.mubr.bf16.mxu0 %v2044
    %2231 = vmatmul.mubr.bf16.gmra.mrb[0].mxu0 %v2043
    %v2232 = vpop.f32.mrb[0].mxu0
    %v2233 = vadd.f32 %v2136, %v2232
    %v2234 = vpop.f32.mrb[0].mxu0
    %v2235 = vpop.f32.mrb[0].mxu0
    %v2236 = vadd.f32 %v2139, %v2235
    %v2237 = vpop.f32.mrb[0].mxu0
    %2238 = vdwg.mxu0
    %v2239 = vld [vmem:[%s6] sm:$0x3]
    %v2240 = vpack.c.bf16 %v1890, %v1887
    %v2241 = vpack.c.bf16 %v1898, %v1895
    %v2242 = vpack.c.bf16 %v1906, %v1903
    %v2243 = vpack.c.bf16 %v1914, %v1911
    %v2244 = vpack.c.bf16 %v1922, %v1919
    %v2245 = vpack.c.bf16 %v1930, %v1927
    %v2246 = vpack.c.bf16 %v1938, %v1935
    %v2247 = vpack.c.bf16 %v1946, %v1943
    %2248 = vmatprep.subr.bf16.mxu0 0
    %2249 = vmatpush1.bf16.msra.mxu0 %v2240
    %2250 = vmatprep.subr.bf16.mxu0 0
    %2251 = vmatpush1.bf16.msra.mxu0 %v2241
    %2252 = vmatprep.subr.bf16.mxu0 0
    %2253 = vmatpush1.bf16.msra.mxu0 %v2242
    %2254 = vmatprep.subr.bf16.mxu0 0
    %2255 = vmatpush1.bf16.msra.mxu0 %v2243
    %2256 = vmatprep.subr.bf16.mxu0 0
    %2257 = vmatpush1.bf16.msra.mxu0 %v2244
    %2258 = vmatprep.subr.bf16.mxu0 0
    %2259 = vmatpush1.bf16.msra.mxu0 %v2245
    %2260 = vmatprep.subr.bf16.mxu0 0
    %2261 = vmatpush1.bf16.msra.mxu0 %v2246
    %2262 = vmatprep.subr.bf16.mxu0 0
    %2263 = vmatpush1.bf16.msra.mxu0 %v2247
    %2264 = vmatprep.subr.bf16.mxu0 0
    %2265 = vmatpush1.bf16.msra.mxu0 0
    %2266 = vmatprep.subr.bf16.mxu0 0
    %2267 = vmatpush1.bf16.msra.mxu0 0
    %2268 = vmatprep.subr.bf16.mxu0 0
    %2269 = vmatpush1.bf16.msra.mxu0 0
    %2270 = vmatprep.subr.bf16.mxu0 0
    %2271 = vmatpush1.bf16.msra.mxu0 0
    %2272 = vmatprep.subr.bf16.mxu0 0
    %2273 = vmatpush1.bf16.msra.mxu0 0
    %2274 = vmatprep.subr.bf16.mxu0 0
    %2275 = vmatpush1.bf16.msra.mxu0 0
    %2276 = vmatprep.subr.bf16.mxu0 0
    %2277 = vmatpush1.bf16.msra.mxu0 0
    %2278 = vmatprep.subr.bf16.mxu0 0
    %2279 = vmatpush1.bf16.msra.mxu0 0
    %2280 = vmatprep.mubr.bf16.mxu0 0
    %2281 = vmatmul.mubr.bf16.gmra.mrb[0].mxu0 %v2239
    %v2282 = vpop.f32.mrb[0].mxu0
    %v2283 = vadd.f32 0.0, %v2282
    %v2284 = vpop.f32.mrb[0].mxu0
    %v2285 = vpop.f32.mrb[0].mxu0
    %v2286 = vpop.f32.mrb[0].mxu0
    %2287 = vdwg.mxu0
    %v2288 = vmul.f32 %v2283, 0.00012207031
    %v2289 = vpack.c.bf16 %v2180, %v2177
    %v2290 = vpack.c.bf16 %v2188, %v2185
    %v2291 = vpack.c.bf16 %v2196, %v2193
    %v2292 = vpack.c.bf16 %v2204, %v2201
    %v2293 = vpack.c.bf16 %v2212, %v2209
    %v2294 = vpack.c.bf16 %v2220, %v2217
    %v2295 = vpack.c.bf16 %v2228, %v2225
    %v2296 = vpack.c.bf16 %v2236, %v2233
    %2297 = vmatprep.subr.bf16.mxu0 0
    %2298 = vmatpush1.bf16.msra.mxu0 %v2289
    %2299 = vmatprep.subr.bf16.mxu0 0
    %2300 = vmatpush1.bf16.msra.mxu0 %v2290
    %2301 = vmatprep.subr.bf16.mxu0 0
    %2302 = vmatpush1.bf16.msra.mxu0 %v2291
    %2303 = vmatprep.subr.bf16.mxu0 0
    %2304 = vmatpush1.bf16.msra.mxu0 %v2292
    %2305 = vmatprep.subr.bf16.mxu0 0
    %2306 = vmatpush1.bf16.msra.mxu0 %v2293
    %2307 = vmatprep.subr.bf16.mxu0 0
    %2308 = vmatpush1.bf16.msra.mxu0 %v2294
    %2309 = vmatprep.subr.bf16.mxu0 0
    %2310 = vmatpush1.bf16.msra.mxu0 %v2295
    %2311 = vmatprep.subr.bf16.mxu0 0
    %2312 = vmatpush1.bf16.msra.mxu0 %v2296
    %2313 = vmatprep.subr.bf16.mxu0 0
    %2314 = vmatpush1.bf16.msra.mxu0 0
    %2315 = vmatprep.subr.bf16.mxu0 0
    %2316 = vmatpush1.bf16.msra.mxu0 0
    %2317 = vmatprep.subr.bf16.mxu0 0
    %2318 = vmatpush1.bf16.msra.mxu0 0
    %2319 = vmatprep.subr.bf16.mxu0 0
    %2320 = vmatpush1.bf16.msra.mxu0 0
    %2321 = vmatprep.subr.bf16.mxu0 0
    %2322 = vmatpush1.bf16.msra.mxu0 0
    %2323 = vmatprep.subr.bf16.mxu0 0
    %2324 = vmatpush1.bf16.msra.mxu0 0
    %2325 = vmatprep.subr.bf16.mxu0 0
    %2326 = vmatpush1.bf16.msra.mxu0 0
    %2327 = vmatprep.subr.bf16.mxu0 0
    %2328 = vmatpush1.bf16.msra.mxu0 0
    %2329 = vmatprep.mubr.bf16.mxu0 0
    %2330 = vmatmul.mubr.bf16.gmra.mrb[0].mxu0 %v2239
    %v2331 = vpop.f32.mrb[0].mxu0
    %v2332 = vadd.f32 0.0, %v2331
    %v2333 = vpop.f32.mrb[0].mxu0
    %v2334 = vpop.f32.mrb[0].mxu0
    %v2335 = vpop.f32.mrb[0].mxu0
    %2336 = vdwg.mxu0
    %v2337 = vmul.f32 %v2332, 0.00012207031
    %v2338 = vmul.f32 %v2288, %v2288
    %v2339 = vsub.f32 %v2337, %v2338
    %v2340 = vmax.f32 %v2339, 0.0
    %v2341 = vadd.f32 %v2340, 1e-05
    %v2342 = vrsqrt.pop %v2341
    %v2343 = vld [vmem:[%s7] sm:$0xf]
    %v2344 = vld [vmem:[%s7 + $0x4] sm:$0xf]
    %v2345 = vld [vmem:[%s7 + $0x8] sm:$0xf]
    %v2346 = vld [vmem:[%s7 + $0xc] sm:$0xf]
    %v2347 = vld [vmem:[%s7 + $0x10] sm:$0xf]
    %v2348 = vld [vmem:[%s7 + $0x14] sm:$0xf]
    %v2349 = vld [vmem:[%s7 + $0x18] sm:$0xf]
    %v2350 = vld [vmem:[%s7 + $0x1c] sm:$0xf]
    %v2351 = vld [vmem:[%s7 + $0x20] sm:$0xf]
    %v2352 = vld [vmem:[%s7 + $0x24] sm:$0xf]
    %v2353 = vld [vmem:[%s7 + $0x28] sm:$0xf]
    %v2354 = vld [vmem:[%s7 + $0x2c] sm:$0xf]
    %v2355 = vld [vmem:[%s7 + $0x30] sm:$0xf]
    %v2356 = vld [vmem:[%s7 + $0x34] sm:$0xf]
    %v2357 = vld [vmem:[%s7 + $0x38] sm:$0xf]
    %v2358 = vld [vmem:[%s7 + $0x3c] sm:$0xf]
    %v2359 = vpack.c.bf16 %v2342, %v2342
    %v2376 = vunpack.c.l.b16 %v2343
    %v2377 = vunpack.c.l.b16 %v2344
    %v2378 = vunpack.c.l.b16 %v2345
    %v2379 = vunpack.c.l.b16 %v2346
    %v2380 = vunpack.c.l.b16 %v2347
    %v2381 = vunpack.c.l.b16 %v2348
    %v2382 = vunpack.c.l.b16 %v2349
    %v2383 = vunpack.c.l.b16 %v2350
    %v2384 = vunpack.c.l.b16 %v2351
    %v2385 = vunpack.c.l.b16 %v2352
    %v2386 = vunpack.c.l.b16 %v2353
    %v2387 = vunpack.c.l.b16 %v2354
    %v2388 = vunpack.c.l.b16 %v2355
    %v2389 = vunpack.c.l.b16 %v2356
    %v2390 = vunpack.c.l.b16 %v2357
    %v2391 = vunpack.c.l.b16 %v2358
    %v2392 = vpack.c.b16 %v2377, %v2376
    %v2393 = vpack.c.b16 %v2379, %v2378
    %v2394 = vpack.c.b16 %v2381, %v2380
    %v2395 = vpack.c.b16 %v2383, %v2382
    %v2396 = vpack.c.b16 %v2385, %v2384
    %v2397 = vpack.c.b16 %v2387, %v2386
    %v2398 = vpack.c.b16 %v2389, %v2388
    %v2399 = vpack.c.b16 %v2391, %v2390
    %vm2400 = vcmask 31744
    %v2402 = vsel %vm2400, %v2392, 0
    %v2405 = vsel %vm2400, %v2393, 0
    %v2408 = vsel %vm2400, %v2394, 0
    %v2411 = vsel %vm2400, %v2395, 0
    %v2414 = vsel %vm2400, %v2396, 0
    %v2417 = vsel %vm2400, %v2397, 0
    %v2420 = vsel %vm2400, %v2398, 0
    %v2423 = vsel %vm2400, %v2399, 0
    %vm2425 = vcmask 1041408
    %v2427 = vsel %vm2425, %v2359, 0
    %2429 = vmatprep.subr.bf16.mxu0 0
    %2430 = vmatpush1.bf16.msra.mxu0 %v2427
    %2431 = vmatprep.subr.bf16.mxu0 0
    %2432 = vmatpush1.bf16.msra.mxu0 0
    %2433 = vmatprep.subr.bf16.mxu0 0
    %2434 = vmatpush1.bf16.msra.mxu0 0
    %2435 = vmatprep.subr.bf16.mxu0 0
    %2436 = vmatpush1.bf16.msra.mxu0 0
    %2437 = vmatprep.subr.bf16.mxu0 0
    %2438 = vmatpush1.bf16.msra.mxu0 0
    %2439 = vmatprep.subr.bf16.mxu0 0
    %2440 = vmatpush1.bf16.msra.mxu0 0
    %2441 = vmatprep.subr.bf16.mxu0 0
    %2442 = vmatpush1.bf16.msra.mxu0 0
    %2443 = vmatprep.subr.bf16.mxu0 0
    %2444 = vmatpush1.bf16.msra.mxu0 0
    %2445 = vmatprep.subr.bf16.mxu0 0
    %2446 = vmatpush1.bf16.msra.mxu0 0
    %2447 = vmatprep.subr.bf16.mxu0 0
    %2448 = vmatpush1.bf16.msra.mxu0 0
    %2449 = vmatprep.subr.bf16.mxu0 0
    %2450 = vmatpush1.bf16.msra.mxu0 0
    %2451 = vmatprep.subr.bf16.mxu0 0
    %2452 = vmatpush1.bf16.msra.mxu0 0
    %2453 = vmatprep.subr.bf16.mxu0 0
    %2454 = vmatpush1.bf16.msra.mxu0 0
    %2455 = vmatprep.subr.bf16.mxu0 0
    %2456 = vmatpush1.bf16.msra.mxu0 0
    %2457 = vmatprep.subr.bf16.mxu0 0
    %2458 = vmatpush1.bf16.msra.mxu0 0
    %2459 = vmatprep.subr.bf16.mxu0 0
    %2460 = vmatpush1.bf16.msra.mxu0 0
    %2461 = vmatprep.mubr.bf16.mxu0 0
    %2462 = vmatmul.mubr.bf16.gmra.mrb[0].mxu0 %v2402
    %v2463 = vpop.f32.mrb[0].mxu0
    %v2464 = vadd.f32 0.0, %v2463
    %v2465 = vpop.f32.mrb[0].mxu0
    %v2466 = vpop.f32.mrb[0].mxu0
    %v2467 = vadd.f32 0.0, %v2466
    %v2468 = vpop.f32.mrb[0].mxu0
    %2469 = vmatprep.mubr.bf16.mxu0 0
    %2470 = vmatmul.mubr.bf16.gmra.mrb[0].mxu0 %v2405
    %v2471 = vpop.f32.mrb[0].mxu0
    %v2472 = vadd.f32 0.0, %v2471
    %v2473 = vpop.f32.mrb[0].mxu0
    %v2474 = vpop.f32.mrb[0].mxu0
    %v2475 = vadd.f32 0.0, %v2474
    %v2476 = vpop.f32.mrb[0].mxu0
    %2477 = vmatprep.mubr.bf16.mxu0 0
    %2478 = vmatmul.mubr.bf16.gmra.mrb[0].mxu0 %v2408
    %v2479 = vpop.f32.mrb[0].mxu0
    %v2480 = vadd.f32 0.0, %v2479
    %v2481 = vpop.f32.mrb[0].mxu0
    %v2482 = vpop.f32.mrb[0].mxu0
    %v2483 = vadd.f32 0.0, %v2482
    %v2484 = vpop.f32.mrb[0].mxu0
    %2485 = vmatprep.mubr.bf16.mxu0 0
    %2486 = vmatmul.mubr.bf16.gmra.mrb[0].mxu0 %v2411
    %v2487 = vpop.f32.mrb[0].mxu0
    %v2488 = vadd.f32 0.0, %v2487
    %v2489 = vpop.f32.mrb[0].mxu0
    %v2490 = vpop.f32.mrb[0].mxu0
    %v2491 = vadd.f32 0.0, %v2490
    %v2492 = vpop.f32.mrb[0].mxu0
    %2493 = vmatprep.mubr.bf16.mxu0 0
    %2494 = vmatmul.mubr.bf16.gmra.mrb[0].mxu0 %v2414
    %v2495 = vpop.f32.mrb[0].mxu0
    %v2496 = vadd.f32 0.0, %v2495
    %v2497 = vpop.f32.mrb[0].mxu0
    %v2498 = vpop.f32.mrb[0].mxu0
    %v2499 = vadd.f32 0.0, %v2498
    %v2500 = vpop.f32.mrb[0].mxu0
    %2501 = vmatprep.mubr.bf16.mxu0 0
    %2502 = vmatmul.mubr.bf16.gmra.mrb[0].mxu0 %v2417
    %v2503 = vpop.f32.mrb[0].mxu0
    %v2504 = vadd.f32 0.0, %v2503
    %v2505 = vpop.f32.mrb[0].mxu0
    %v2506 = vpop.f32.mrb[0].mxu0
    %v2507 = vadd.f32 0.0, %v2506
    %v2508 = vpop.f32.mrb[0].mxu0
    %2509 = vmatprep.mubr.bf16.mxu0 0
    %2510 = vmatmul.mubr.bf16.gmra.mrb[0].mxu0 %v2420
    %v2511 = vpop.f32.mrb[0].mxu0
    %v2512 = vadd.f32 0.0, %v2511
    %v2513 = vpop.f32.mrb[0].mxu0
    %v2514 = vpop.f32.mrb[0].mxu0
    %v2515 = vadd.f32 0.0, %v2514
    %v2516 = vpop.f32.mrb[0].mxu0
    %2517 = vmatprep.mubr.bf16.mxu0 0
    %2518 = vmatmul.mubr.bf16.gmra.mrb[0].mxu0 %v2423
    %v2519 = vpop.f32.mrb[0].mxu0
    %v2520 = vadd.f32 0.0, %v2519
    %v2521 = vpop.f32.mrb[0].mxu0
    %v2522 = vpop.f32.mrb[0].mxu0
    %v2523 = vadd.f32 0.0, %v2522
    %v2524 = vpop.f32.mrb[0].mxu0
    %2525 = vdwg.mxu0
    %v2526 = vsub.f32 0.0, %v2288
    %v2527 = vmul.f32 %v2526, %v2342
    %v2528 = vpack.c.bf16 %v2527, %v2527
    %v2530 = vsel %vm2425, %v2528, 0
    %2532 = vmatprep.subr.bf16.mxu0 0
    %2533 = vmatpush1.bf16.msra.mxu0 %v2530
    %2534 = vmatprep.subr.bf16.mxu0 0
    %2535 = vmatpush1.bf16.msra.mxu0 0
    %2536 = vmatprep.subr.bf16.mxu0 0
    %2537 = vmatpush1.bf16.msra.mxu0 0
    %2538 = vmatprep.subr.bf16.mxu0 0
    %2539 = vmatpush1.bf16.msra.mxu0 0
    %2540 = vmatprep.subr.bf16.mxu0 0
    %2541 = vmatpush1.bf16.msra.mxu0 0
    %2542 = vmatprep.subr.bf16.mxu0 0
    %2543 = vmatpush1.bf16.msra.mxu0 0
    %2544 = vmatprep.subr.bf16.mxu0 0
    %2545 = vmatpush1.bf16.msra.mxu0 0
    %2546 = vmatprep.subr.bf16.mxu0 0
    %2547 = vmatpush1.bf16.msra.mxu0 0
    %2548 = vmatprep.subr.bf16.mxu0 0
    %2549 = vmatpush1.bf16.msra.mxu0 0
    %2550 = vmatprep.subr.bf16.mxu0 0
    %2551 = vmatpush1.bf16.msra.mxu0 0
    %2552 = vmatprep.subr.bf16.mxu0 0
    %2553 = vmatpush1.bf16.msra.mxu0 0
    %2554 = vmatprep.subr.bf16.mxu0 0
    %2555 = vmatpush1.bf16.msra.mxu0 0
    %2556 = vmatprep.subr.bf16.mxu0 0
    %2557 = vmatpush1.bf16.msra.mxu0 0
    %2558 = vmatprep.subr.bf16.mxu0 0
    %2559 = vmatpush1.bf16.msra.mxu0 0
    %2560 = vmatprep.subr.bf16.mxu0 0
    %2561 = vmatpush1.bf16.msra.mxu0 0
    %2562 = vmatprep.subr.bf16.mxu0 0
    %2563 = vmatpush1.bf16.msra.mxu0 0
    %2564 = vmatprep.mubr.bf16.mxu0 0
    %2565 = vmatmul.mubr.bf16.gmra.mrb[0].mxu0 %v2402
    %v2566 = vpop.f32.mrb[0].mxu0
    %v2567 = vadd.f32 0.0, %v2566
    %v2568 = vpop.f32.mrb[0].mxu0
    %v2569 = vpop.f32.mrb[0].mxu0
    %v2570 = vadd.f32 0.0, %v2569
    %v2571 = vpop.f32.mrb[0].mxu0
    %2572 = vmatprep.mubr.bf16.mxu0 0
    %2573 = vmatmul.mubr.bf16.gmra.mrb[0].mxu0 %v2405
    %v2574 = vpop.f32.mrb[0].mxu0
    %v2575 = vadd.f32 0.0, %v2574
    %v2576 = vpop.f32.mrb[0].mxu0
    %v2577 = vpop.f32.mrb[0].mxu0
    %v2578 = vadd.f32 0.0, %v2577
    %v2579 = vpop.f32.mrb[0].mxu0
    %2580 = vmatprep.mubr.bf16.mxu0 0
    %2581 = vmatmul.mubr.bf16.gmra.mrb[0].mxu0 %v2408
    %v2582 = vpop.f32.mrb[0].mxu0
    %v2583 = vadd.f32 0.0, %v2582
    %v2584 = vpop.f32.mrb[0].mxu0
    %v2585 = vpop.f32.mrb[0].mxu0
    %v2586 = vadd.f32 0.0, %v2585
    %v2587 = vpop.f32.mrb[0].mxu0
    %2588 = vmatprep.mubr.bf16.mxu0 0
    %2589 = vmatmul.mubr.bf16.gmra.mrb[0].mxu0 %v2411
    %v2590 = vpop.f32.mrb[0].mxu0
    %v2591 = vadd.f32 0.0, %v2590
    %v2592 = vpop.f32.mrb[0].mxu0
    %v2593 = vpop.f32.mrb[0].mxu0
    %v2594 = vadd.f32 0.0, %v2593
    %v2595 = vpop.f32.mrb[0].mxu0
    %2596 = vmatprep.mubr.bf16.mxu0 0
    %2597 = vmatmul.mubr.bf16.gmra.mrb[0].mxu0 %v2414
    %v2598 = vpop.f32.mrb[0].mxu0
    %v2599 = vadd.f32 0.0, %v2598
    %v2600 = vpop.f32.mrb[0].mxu0
    %v2601 = vpop.f32.mrb[0].mxu0
    %v2602 = vadd.f32 0.0, %v2601
    %v2603 = vpop.f32.mrb[0].mxu0
    %2604 = vmatprep.mubr.bf16.mxu0 0
    %2605 = vmatmul.mubr.bf16.gmra.mrb[0].mxu0 %v2417
    %v2606 = vpop.f32.mrb[0].mxu0
    %v2607 = vadd.f32 0.0, %v2606
    %v2608 = vpop.f32.mrb[0].mxu0
    %v2609 = vpop.f32.mrb[0].mxu0
    %v2610 = vadd.f32 0.0, %v2609
    %v2611 = vpop.f32.mrb[0].mxu0
    %2612 = vmatprep.mubr.bf16.mxu0 0
    %2613 = vmatmul.mubr.bf16.gmra.mrb[0].mxu0 %v2420
    %v2614 = vpop.f32.mrb[0].mxu0
    %v2615 = vadd.f32 0.0, %v2614
    %v2616 = vpop.f32.mrb[0].mxu0
    %v2617 = vpop.f32.mrb[0].mxu0
    %v2618 = vadd.f32 0.0, %v2617
    %v2619 = vpop.f32.mrb[0].mxu0
    %2620 = vmatprep.mubr.bf16.mxu0 0
    %2621 = vmatmul.mubr.bf16.gmra.mrb[0].mxu0 %v2423
    %v2622 = vpop.f32.mrb[0].mxu0
    %v2623 = vadd.f32 0.0, %v2622
    %v2624 = vpop.f32.mrb[0].mxu0
    %v2625 = vpop.f32.mrb[0].mxu0
    %v2626 = vadd.f32 0.0, %v2625
    %v2627 = vpop.f32.mrb[0].mxu0
    %2628 = vdwg.mxu0
    %v2629 = vpack.c.bf16 %v2467, %v2464
    %v2630 = vpack.c.bf16 %v2475, %v2472
    %v2631 = vpack.c.bf16 %v2483, %v2480
    %v2632 = vpack.c.bf16 %v2491, %v2488
    %v2633 = vpack.c.bf16 %v2499, %v2496
    %v2634 = vpack.c.bf16 %v2507, %v2504
    %v2635 = vpack.c.bf16 %v2515, %v2512
    %v2636 = vpack.c.bf16 %v2523, %v2520
    %v2637 = vpack.c.bf16 %v2570, %v2567
    %v2638 = vpack.c.bf16 %v2578, %v2575
    %v2639 = vpack.c.bf16 %v2586, %v2583
    %v2640 = vpack.c.bf16 %v2594, %v2591
    %v2641 = vpack.c.bf16 %v2602, %v2599
    %v2642 = vpack.c.bf16 %v2610, %v2607
    %v2643 = vpack.c.bf16 %v2618, %v2615
    %v2644 = vpack.c.bf16 %v2626, %v2623
    %v2646 = vsel %vm1197, %v2629, 0
    %v2649 = vsel %vm1197, %v2630, 0
    %v2652 = vsel %vm1197, %v2631, 0
    %v2655 = vsel %vm1197, %v2632, 0
    %v2658 = vsel %vm1197, %v2633, 0
    %v2661 = vsel %vm1197, %v2634, 0
    %v2664 = vsel %vm1197, %v2635, 0
    %v2667 = vsel %vm1197, %v2636, 0
    %v2670 = vsel %vm1197, %v2637, 0
    %v2673 = vsel %vm1197, %v2638, 0
    %v2676 = vsel %vm1197, %v2639, 0
    %v2679 = vsel %vm1197, %v2640, 0
    %v2682 = vsel %vm1197, %v2641, 0
    %v2685 = vsel %vm1197, %v2642, 0
    %v2688 = vsel %vm1197, %v2643, 0
    %v2691 = vsel %vm1197, %v2644, 0
    %2693 = vmatprep.subr.bf16.mxu0 %v1215
    %2694 = vmatpush1.bf16.msra.mxu0 %v1212
    %2695 = vmatprep.subr.bf16.mxu0 0
    %2696 = vmatpush1.bf16.msra.mxu0 0
    %2697 = vmatprep.subr.bf16.mxu0 0
    %2698 = vmatpush1.bf16.msra.mxu0 0
    %2699 = vmatprep.subr.bf16.mxu0 0
    %2700 = vmatpush1.bf16.msra.mxu0 0
    %2701 = vmatprep.subr.bf16.mxu0 0
    %2702 = vmatpush1.bf16.msra.mxu0 0
    %2703 = vmatprep.subr.bf16.mxu0 0
    %2704 = vmatpush1.bf16.msra.mxu0 0
    %2705 = vmatprep.subr.bf16.mxu0 0
    %2706 = vmatpush1.bf16.msra.mxu0 0
    %2707 = vmatprep.subr.bf16.mxu0 0
    %2708 = vmatpush1.bf16.msra.mxu0 0
    %2709 = vmatprep.subr.bf16.mxu0 0
    %2710 = vmatpush1.bf16.msra.mxu0 0
    %2711 = vmatprep.subr.bf16.mxu0 0
    %2712 = vmatpush1.bf16.msra.mxu0 0
    %2713 = vmatprep.subr.bf16.mxu0 0
    %2714 = vmatpush1.bf16.msra.mxu0 0
    %2715 = vmatprep.subr.bf16.mxu0 0
    %2716 = vmatpush1.bf16.msra.mxu0 0
    %2717 = vmatprep.subr.bf16.mxu0 0
    %2718 = vmatpush1.bf16.msra.mxu0 0
    %2719 = vmatprep.subr.bf16.mxu0 0
    %2720 = vmatpush1.bf16.msra.mxu0 0
    %2721 = vmatprep.subr.bf16.mxu0 0
    %2722 = vmatpush1.bf16.msra.mxu0 0
    %2723 = vmatprep.subr.bf16.mxu0 0
    %2724 = vmatpush1.bf16.msra.mxu0 0
    %2725 = vmatprep.mubr.bf16.mxu0 0
    %2726 = vmatmul.mubr.bf16.gmra.mrb[0].mxu0 %v2646
    %v2727 = vpop.f32.mrb[0].mxu0
    %v2728 = vadd.f32 0.0, %v2727
    %v2729 = vpop.f32.mrb[0].mxu0
    %v2730 = vadd.f32 0.0, %v2729
    %v2731 = vpop.f32.mrb[0].mxu0
    %v2732 = vadd.f32 0.0, %v2731
    %v2733 = vpop.f32.mrb[0].mxu0
    %v2734 = vadd.f32 0.0, %v2733
    %2735 = vmatprep.mubr.bf16.mxu0 0
    %2736 = vmatmul.mubr.bf16.gmra.mrb[0].mxu0 %v2649
    %v2737 = vpop.f32.mrb[0].mxu0
    %v2738 = vadd.f32 0.0, %v2737
    %v2739 = vpop.f32.mrb[0].mxu0
    %v2740 = vadd.f32 0.0, %v2739
    %v2741 = vpop.f32.mrb[0].mxu0
    %v2742 = vadd.f32 0.0, %v2741
    %v2743 = vpop.f32.mrb[0].mxu0
    %v2744 = vadd.f32 0.0, %v2743
    %2745 = vmatprep.mubr.bf16.mxu0 0
    %2746 = vmatmul.mubr.bf16.gmra.mrb[0].mxu0 %v2652
    %v2747 = vpop.f32.mrb[0].mxu0
    %v2748 = vadd.f32 0.0, %v2747
    %v2749 = vpop.f32.mrb[0].mxu0
    %v2750 = vadd.f32 0.0, %v2749
    %v2751 = vpop.f32.mrb[0].mxu0
    %v2752 = vadd.f32 0.0, %v2751
    %v2753 = vpop.f32.mrb[0].mxu0
    %v2754 = vadd.f32 0.0, %v2753
    %2755 = vmatprep.mubr.bf16.mxu0 0
    %2756 = vmatmul.mubr.bf16.gmra.mrb[0].mxu0 %v2655
    %v2757 = vpop.f32.mrb[0].mxu0
    %v2758 = vadd.f32 0.0, %v2757
    %v2759 = vpop.f32.mrb[0].mxu0
    %v2760 = vadd.f32 0.0, %v2759
    %v2761 = vpop.f32.mrb[0].mxu0
    %v2762 = vadd.f32 0.0, %v2761
    %v2763 = vpop.f32.mrb[0].mxu0
    %v2764 = vadd.f32 0.0, %v2763
    %2765 = vmatprep.mubr.bf16.mxu0 0
    %2766 = vmatmul.mubr.bf16.gmra.mrb[0].mxu0 %v2658
    %v2767 = vpop.f32.mrb[0].mxu0
    %v2768 = vadd.f32 0.0, %v2767
    %v2769 = vpop.f32.mrb[0].mxu0
    %v2770 = vadd.f32 0.0, %v2769
    %v2771 = vpop.f32.mrb[0].mxu0
    %v2772 = vadd.f32 0.0, %v2771
    %v2773 = vpop.f32.mrb[0].mxu0
    %v2774 = vadd.f32 0.0, %v2773
    %2775 = vmatprep.mubr.bf16.mxu0 0
    %2776 = vmatmul.mubr.bf16.gmra.mrb[0].mxu0 %v2661
    %v2777 = vpop.f32.mrb[0].mxu0
    %v2778 = vadd.f32 0.0, %v2777
    %v2779 = vpop.f32.mrb[0].mxu0
    %v2780 = vadd.f32 0.0, %v2779
    %v2781 = vpop.f32.mrb[0].mxu0
    %v2782 = vadd.f32 0.0, %v2781
    %v2783 = vpop.f32.mrb[0].mxu0
    %v2784 = vadd.f32 0.0, %v2783
    %2785 = vmatprep.mubr.bf16.mxu0 0
    %2786 = vmatmul.mubr.bf16.gmra.mrb[0].mxu0 %v2664
    %v2787 = vpop.f32.mrb[0].mxu0
    %v2788 = vadd.f32 0.0, %v2787
    %v2789 = vpop.f32.mrb[0].mxu0
    %v2790 = vadd.f32 0.0, %v2789
    %v2791 = vpop.f32.mrb[0].mxu0
    %v2792 = vadd.f32 0.0, %v2791
    %v2793 = vpop.f32.mrb[0].mxu0
    %v2794 = vadd.f32 0.0, %v2793
    %2795 = vmatprep.mubr.bf16.mxu0 0
    %2796 = vmatmul.mubr.bf16.gmra.mrb[0].mxu0 %v2667
    %v2797 = vpop.f32.mrb[0].mxu0
    %v2798 = vadd.f32 0.0, %v2797
    %v2799 = vpop.f32.mrb[0].mxu0
    %v2800 = vadd.f32 0.0, %v2799
    %v2801 = vpop.f32.mrb[0].mxu0
    %v2802 = vadd.f32 0.0, %v2801
    %v2803 = vpop.f32.mrb[0].mxu0
    %v2804 = vadd.f32 0.0, %v2803
    %2805 = vmatprep.mubr.bf16.mxu0 0
    %2806 = vmatmul.mubr.bf16.gmra.mrb[0].mxu0 %v2670
    %v2807 = vpop.f32.mrb[0].mxu0
    %v2808 = vadd.f32 0.0, %v2807
    %v2809 = vpop.f32.mrb[0].mxu0
    %v2810 = vadd.f32 0.0, %v2809
    %v2811 = vpop.f32.mrb[0].mxu0
    %v2812 = vadd.f32 0.0, %v2811
    %v2813 = vpop.f32.mrb[0].mxu0
    %v2814 = vadd.f32 0.0, %v2813
    %2815 = vmatprep.mubr.bf16.mxu0 0
    %2816 = vmatmul.mubr.bf16.gmra.mrb[0].mxu0 %v2673
    %v2817 = vpop.f32.mrb[0].mxu0
    %v2818 = vadd.f32 0.0, %v2817
    %v2819 = vpop.f32.mrb[0].mxu0
    %v2820 = vadd.f32 0.0, %v2819
    %v2821 = vpop.f32.mrb[0].mxu0
    %v2822 = vadd.f32 0.0, %v2821
    %v2823 = vpop.f32.mrb[0].mxu0
    %v2824 = vadd.f32 0.0, %v2823
    %2825 = vmatprep.mubr.bf16.mxu0 0
    %2826 = vmatmul.mubr.bf16.gmra.mrb[0].mxu0 %v2676
    %v2827 = vpop.f32.mrb[0].mxu0
    %v2828 = vadd.f32 0.0, %v2827
    %v2829 = vpop.f32.mrb[0].mxu0
    %v2830 = vadd.f32 0.0, %v2829
    %v2831 = vpop.f32.mrb[0].mxu0
    %v2832 = vadd.f32 0.0, %v2831
    %v2833 = vpop.f32.mrb[0].mxu0
    %v2834 = vadd.f32 0.0, %v2833
    %2835 = vmatprep.mubr.bf16.mxu0 0
    %2836 = vmatmul.mubr.bf16.gmra.mrb[0].mxu0 %v2679
    %v2837 = vpop.f32.mrb[0].mxu0
    %v2838 = vadd.f32 0.0, %v2837
    %v2839 = vpop.f32.mrb[0].mxu0
    %v2840 = vadd.f32 0.0, %v2839
    %v2841 = vpop.f32.mrb[0].mxu0
    %v2842 = vadd.f32 0.0, %v2841
    %v2843 = vpop.f32.mrb[0].mxu0
    %v2844 = vadd.f32 0.0, %v2843
    %2845 = vmatprep.mubr.bf16.mxu0 0
    %2846 = vmatmul.mubr.bf16.gmra.mrb[0].mxu0 %v2682
    %v2847 = vpop.f32.mrb[0].mxu0
    %v2848 = vadd.f32 0.0, %v2847
    %v2849 = vpop.f32.mrb[0].mxu0
    %v2850 = vadd.f32 0.0, %v2849
    %v2851 = vpop.f32.mrb[0].mxu0
    %v2852 = vadd.f32 0.0, %v2851
    %v2853 = vpop.f32.mrb[0].mxu0
    %v2854 = vadd.f32 0.0, %v2853
    %2855 = vmatprep.mubr.bf16.mxu0 0
    %2856 = vmatmul.mubr.bf16.gmra.mrb[0].mxu0 %v2685
    %v2857 = vpop.f32.mrb[0].mxu0
    %v2858 = vadd.f32 0.0, %v2857
    %v2859 = vpop.f32.mrb[0].mxu0
    %v2860 = vadd.f32 0.0, %v2859
    %v2861 = vpop.f32.mrb[0].mxu0
    %v2862 = vadd.f32 0.0, %v2861
    %v2863 = vpop.f32.mrb[0].mxu0
    %v2864 = vadd.f32 0.0, %v2863
    %2865 = vmatprep.mubr.bf16.mxu0 0
    %2866 = vmatmul.mubr.bf16.gmra.mrb[0].mxu0 %v2688
    %v2867 = vpop.f32.mrb[0].mxu0
    %v2868 = vadd.f32 0.0, %v2867
    %v2869 = vpop.f32.mrb[0].mxu0
    %v2870 = vadd.f32 0.0, %v2869
    %v2871 = vpop.f32.mrb[0].mxu0
    %v2872 = vadd.f32 0.0, %v2871
    %v2873 = vpop.f32.mrb[0].mxu0
    %v2874 = vadd.f32 0.0, %v2873
    %2875 = vmatprep.mubr.bf16.mxu0 0
    %2876 = vmatmul.mubr.bf16.gmra.mrb[0].mxu0 %v2691
    %v2877 = vpop.f32.mrb[0].mxu0
    %v2878 = vadd.f32 0.0, %v2877
    %v2879 = vpop.f32.mrb[0].mxu0
    %v2880 = vadd.f32 0.0, %v2879
    %v2881 = vpop.f32.mrb[0].mxu0
    %v2882 = vadd.f32 0.0, %v2881
    %v2883 = vpop.f32.mrb[0].mxu0
    %v2884 = vadd.f32 0.0, %v2883
    %2885 = vdwg.mxu0
    %2886 = vmatprep.subr.bf16.mxu0 %v1221
    %2887 = vmatpush1.bf16.msra.mxu0 %v1218
    %2888 = vmatprep.subr.bf16.mxu0 0
    %2889 = vmatpush1.bf16.msra.mxu0 0
    %2890 = vmatprep.subr.bf16.mxu0 0
    %2891 = vmatpush1.bf16.msra.mxu0 0
    %2892 = vmatprep.subr.bf16.mxu0 0
    %2893 = vmatpush1.bf16.msra.mxu0 0
    %2894 = vmatprep.subr.bf16.mxu0 0
    %2895 = vmatpush1.bf16.msra.mxu0 0
    %2896 = vmatprep.subr.bf16.mxu0 0
    %2897 = vmatpush1.bf16.msra.mxu0 0
    %2898 = vmatprep.subr.bf16.mxu0 0
    %2899 = vmatpush1.bf16.msra.mxu0 0
    %2900 = vmatprep.subr.bf16.mxu0 0
    %2901 = vmatpush1.bf16.msra.mxu0 0
    %2902 = vmatprep.subr.bf16.mxu0 0
    %2903 = vmatpush1.bf16.msra.mxu0 0
    %2904 = vmatprep.subr.bf16.mxu0 0
    %2905 = vmatpush1.bf16.msra.mxu0 0
    %2906 = vmatprep.subr.bf16.mxu0 0
    %2907 = vmatpush1.bf16.msra.mxu0 0
    %2908 = vmatprep.subr.bf16.mxu0 0
    %2909 = vmatpush1.bf16.msra.mxu0 0
    %2910 = vmatprep.subr.bf16.mxu0 0
    %2911 = vmatpush1.bf16.msra.mxu0 0
    %2912 = vmatprep.subr.bf16.mxu0 0
    %2913 = vmatpush1.bf16.msra.mxu0 0
    %2914 = vmatprep.subr.bf16.mxu0 0
    %2915 = vmatpush1.bf16.msra.mxu0 0
    %2916 = vmatprep.subr.bf16.mxu0 0
    %2917 = vmatpush1.bf16.msra.mxu0 0
    %2918 = vmatprep.mubr.bf16.mxu0 0
    %2919 = vmatmul.mubr.bf16.gmra.mrb[0].mxu0 %v2646
    %v2920 = vpop.f32.mrb[0].mxu0
    %v2921 = vadd.f32 0.0, %v2920
    %v2922 = vpop.f32.mrb[0].mxu0
    %v2923 = vadd.f32 0.0, %v2922
    %v2924 = vpop.f32.mrb[0].mxu0
    %v2925 = vadd.f32 0.0, %v2924
    %v2926 = vpop.f32.mrb[0].mxu0
    %v2927 = vadd.f32 0.0, %v2926
    %2928 = vmatprep.mubr.bf16.mxu0 0
    %2929 = vmatmul.mubr.bf16.gmra.mrb[0].mxu0 %v2649
    %v2930 = vpop.f32.mrb[0].mxu0
    %v2931 = vadd.f32 0.0, %v2930
    %v2932 = vpop.f32.mrb[0].mxu0
    %v2933 = vadd.f32 0.0, %v2932
    %v2934 = vpop.f32.mrb[0].mxu0
    %v2935 = vadd.f32 0.0, %v2934
    %v2936 = vpop.f32.mrb[0].mxu0
    %v2937 = vadd.f32 0.0, %v2936
    %2938 = vmatprep.mubr.bf16.mxu0 0
    %2939 = vmatmul.mubr.bf16.gmra.mrb[0].mxu0 %v2652
    %v2940 = vpop.f32.mrb[0].mxu0
    %v2941 = vadd.f32 0.0, %v2940
    %v2942 = vpop.f32.mrb[0].mxu0
    %v2943 = vadd.f32 0.0, %v2942
    %v2944 = vpop.f32.mrb[0].mxu0
    %v2945 = vadd.f32 0.0, %v2944
    %v2946 = vpop.f32.mrb[0].mxu0
    %v2947 = vadd.f32 0.0, %v2946
    %2948 = vmatprep.mubr.bf16.mxu0 0
    %2949 = vmatmul.mubr.bf16.gmra.mrb[0].mxu0 %v2655
    %v2950 = vpop.f32.mrb[0].mxu0
    %v2951 = vadd.f32 0.0, %v2950
    %v2952 = vpop.f32.mrb[0].mxu0
    %v2953 = vadd.f32 0.0, %v2952
    %v2954 = vpop.f32.mrb[0].mxu0
    %v2955 = vadd.f32 0.0, %v2954
    %v2956 = vpop.f32.mrb[0].mxu0
    %v2957 = vadd.f32 0.0, %v2956
    %2958 = vmatprep.mubr.bf16.mxu0 0
    %2959 = vmatmul.mubr.bf16.gmra.mrb[0].mxu0 %v2658
    %v2960 = vpop.f32.mrb[0].mxu0
    %v2961 = vadd.f32 0.0, %v2960
    %v2962 = vpop.f32.mrb[0].mxu0
    %v2963 = vadd.f32 0.0, %v2962
    %v2964 = vpop.f32.mrb[0].mxu0
    %v2965 = vadd.f32 0.0, %v2964
    %v2966 = vpop.f32.mrb[0].mxu0
    %v2967 = vadd.f32 0.0, %v2966
    %2968 = vmatprep.mubr.bf16.mxu0 0
    %2969 = vmatmul.mubr.bf16.gmra.mrb[0].mxu0 %v2661
    %v2970 = vpop.f32.mrb[0].mxu0
    %v2971 = vadd.f32 0.0, %v2970
    %v2972 = vpop.f32.mrb[0].mxu0
    %v2973 = vadd.f32 0.0, %v2972
    %v2974 = vpop.f32.mrb[0].mxu0
    %v2975 = vadd.f32 0.0, %v2974
    %v2976 = vpop.f32.mrb[0].mxu0
    %v2977 = vadd.f32 0.0, %v2976
    %2978 = vmatprep.mubr.bf16.mxu0 0
    %2979 = vmatmul.mubr.bf16.gmra.mrb[0].mxu0 %v2664
    %v2980 = vpop.f32.mrb[0].mxu0
    %v2981 = vadd.f32 0.0, %v2980
    %v2982 = vpop.f32.mrb[0].mxu0
    %v2983 = vadd.f32 0.0, %v2982
    %v2984 = vpop.f32.mrb[0].mxu0
    %v2985 = vadd.f32 0.0, %v2984
    %v2986 = vpop.f32.mrb[0].mxu0
    %v2987 = vadd.f32 0.0, %v2986
    %2988 = vmatprep.mubr.bf16.mxu0 0
    %2989 = vmatmul.mubr.bf16.gmra.mrb[0].mxu0 %v2667
    %v2990 = vpop.f32.mrb[0].mxu0
    %v2991 = vadd.f32 0.0, %v2990
    %v2992 = vpop.f32.mrb[0].mxu0
    %v2993 = vadd.f32 0.0, %v2992
    %v2994 = vpop.f32.mrb[0].mxu0
    %v2995 = vadd.f32 0.0, %v2994
    %v2996 = vpop.f32.mrb[0].mxu0
    %v2997 = vadd.f32 0.0, %v2996
    %2998 = vmatprep.mubr.bf16.mxu0 0
    %2999 = vmatmul.mubr.bf16.gmra.mrb[0].mxu0 %v2670
    %v3000 = vpop.f32.mrb[0].mxu0
    %v3001 = vadd.f32 0.0, %v3000
    %v3002 = vpop.f32.mrb[0].mxu0
    %v3003 = vadd.f32 0.0, %v3002
    %v3004 = vpop.f32.mrb[0].mxu0
    %v3005 = vadd.f32 0.0, %v3004
    %v3006 = vpop.f32.mrb[0].mxu0
    %v3007 = vadd.f32 0.0, %v3006
    %3008 = vmatprep.mubr.bf16.mxu0 0
    %3009 = vmatmul.mubr.bf16.gmra.mrb[0].mxu0 %v2673
    %v3010 = vpop.f32.mrb[0].mxu0
    %v3011 = vadd.f32 0.0, %v3010
    %v3012 = vpop.f32.mrb[0].mxu0
    %v3013 = vadd.f32 0.0, %v3012
    %v3014 = vpop.f32.mrb[0].mxu0
    %v3015 = vadd.f32 0.0, %v3014
    %v3016 = vpop.f32.mrb[0].mxu0
    %v3017 = vadd.f32 0.0, %v3016
    %3018 = vmatprep.mubr.bf16.mxu0 0
    %3019 = vmatmul.mubr.bf16.gmra.mrb[0].mxu0 %v2676
    %v3020 = vpop.f32.mrb[0].mxu0
    %v3021 = vadd.f32 0.0, %v3020
    %v3022 = vpop.f32.mrb[0].mxu0
    %v3023 = vadd.f32 0.0, %v3022
    %v3024 = vpop.f32.mrb[0].mxu0
    %v3025 = vadd.f32 0.0, %v3024
    %v3026 = vpop.f32.mrb[0].mxu0
    %v3027 = vadd.f32 0.0, %v3026
    %3028 = vmatprep.mubr.bf16.mxu0 0
    %3029 = vmatmul.mubr.bf16.gmra.mrb[0].mxu0 %v2679
    %v3030 = vpop.f32.mrb[0].mxu0
    %v3031 = vadd.f32 0.0, %v3030
    %v3032 = vpop.f32.mrb[0].mxu0
    %v3033 = vadd.f32 0.0, %v3032
    %v3034 = vpop.f32.mrb[0].mxu0
    %v3035 = vadd.f32 0.0, %v3034
    %v3036 = vpop.f32.mrb[0].mxu0
    %v3037 = vadd.f32 0.0, %v3036
    %3038 = vmatprep.mubr.bf16.mxu0 0
    %3039 = vmatmul.mubr.bf16.gmra.mrb[0].mxu0 %v2682
    %v3040 = vpop.f32.mrb[0].mxu0
    %v3041 = vadd.f32 0.0, %v3040
    %v3042 = vpop.f32.mrb[0].mxu0
    %v3043 = vadd.f32 0.0, %v3042
    %v3044 = vpop.f32.mrb[0].mxu0
    %v3045 = vadd.f32 0.0, %v3044
    %v3046 = vpop.f32.mrb[0].mxu0
    %v3047 = vadd.f32 0.0, %v3046
    %3048 = vmatprep.mubr.bf16.mxu0 0
    %3049 = vmatmul.mubr.bf16.gmra.mrb[0].mxu0 %v2685
    %v3050 = vpop.f32.mrb[0].mxu0
    %v3051 = vadd.f32 0.0, %v3050
    %v3052 = vpop.f32.mrb[0].mxu0
    %v3053 = vadd.f32 0.0, %v3052
    %v3054 = vpop.f32.mrb[0].mxu0
    %v3055 = vadd.f32 0.0, %v3054
    %v3056 = vpop.f32.mrb[0].mxu0
    %v3057 = vadd.f32 0.0, %v3056
    %3058 = vmatprep.mubr.bf16.mxu0 0
    %3059 = vmatmul.mubr.bf16.gmra.mrb[0].mxu0 %v2688
    %v3060 = vpop.f32.mrb[0].mxu0
    %v3061 = vadd.f32 0.0, %v3060
    %v3062 = vpop.f32.mrb[0].mxu0
    %v3063 = vadd.f32 0.0, %v3062
    %v3064 = vpop.f32.mrb[0].mxu0
    %v3065 = vadd.f32 0.0, %v3064
    %v3066 = vpop.f32.mrb[0].mxu0
    %v3067 = vadd.f32 0.0, %v3066
    %3068 = vmatprep.mubr.bf16.mxu0 0
    %3069 = vmatmul.mubr.bf16.gmra.mrb[0].mxu0 %v2691
    %v3070 = vpop.f32.mrb[0].mxu0
    %v3071 = vadd.f32 0.0, %v3070
    %v3072 = vpop.f32.mrb[0].mxu0
    %v3073 = vadd.f32 0.0, %v3072
    %v3074 = vpop.f32.mrb[0].mxu0
    %v3075 = vadd.f32 0.0, %v3074
    %v3076 = vpop.f32.mrb[0].mxu0
    %v3077 = vadd.f32 0.0, %v3076
    %3078 = vdwg.mxu0
    %v3079 = vmul.f32 %v1532, %v2728
    %v3080 = vmul.f32 %v1534, %v2730
    %v3081 = vmul.f32 %v1645, %v2921
    %v3082 = vmul.f32 %v1647, %v2923
    %v3083 = vmul.f32 %v1536, %v2732
    %v3084 = vmul.f32 %v1538, %v2734
    %v3085 = vmul.f32 %v1649, %v2925
    %v3086 = vmul.f32 %v1651, %v2927
    %v3087 = vmul.f32 %v1542, %v2738
    %v3088 = vmul.f32 %v1544, %v2740
    %v3089 = vmul.f32 %v1655, %v2931
    %v3090 = vmul.f32 %v1657, %v2933
    %v3091 = vmul.f32 %v1546, %v2742
    %v3092 = vmul.f32 %v1548, %v2744
    %v3093 = vmul.f32 %v1659, %v2935
    %v3094 = vmul.f32 %v1661, %v2937
    %v3095 = vmul.f32 %v1552, %v2748
    %v3096 = vmul.f32 %v1554, %v2750
    %v3097 = vmul.f32 %v1665, %v2941
    %v3098 = vmul.f32 %v1667, %v2943
    %v3099 = vmul.f32 %v1556, %v2752
    %v3100 = vmul.f32 %v1558, %v2754
    %v3101 = vmul.f32 %v1669, %v2945
    %v3102 = vmul.f32 %v1671, %v2947
    %v3103 = vmul.f32 %v1562, %v2758
    %v3104 = vmul.f32 %v1564, %v2760
    %v3105 = vmul.f32 %v1675, %v2951
    %v3106 = vmul.f32 %v1677, %v2953
    %v3107 = vmul.f32 %v1566, %v2762
    %v3108 = vmul.f32 %v1568, %v2764
    %v3109 = vmul.f32 %v1679, %v2955
    %v3110 = vmul.f32 %v1681, %v2957
    %v3111 = vmul.f32 %v1572, %v2768
    %v3112 = vmul.f32 %v1574, %v2770
    %v3113 = vmul.f32 %v1685, %v2961
    %v3114 = vmul.f32 %v1687, %v2963
    %v3115 = vmul.f32 %v1576, %v2772
    %v3116 = vmul.f32 %v1578, %v2774
    %v3117 = vmul.f32 %v1689, %v2965
    %v3118 = vmul.f32 %v1691, %v2967
    %v3119 = vmul.f32 %v1582, %v2778
    %v3120 = vmul.f32 %v1584, %v2780
    %v3121 = vmul.f32 %v1695, %v2971
    %v3122 = vmul.f32 %v1697, %v2973
    %v3123 = vmul.f32 %v1586, %v2782
    %v3124 = vmul.f32 %v1588, %v2784
    %v3125 = vmul.f32 %v1699, %v2975
    %v3126 = vmul.f32 %v1701, %v2977
    %v3127 = vmul.f32 %v1592, %v2788
    %v3128 = vmul.f32 %v1594, %v2790
    %v3129 = vmul.f32 %v1705, %v2981
    %v3130 = vmul.f32 %v1707, %v2983
    %v3131 = vmul.f32 %v1596, %v2792
    %v3132 = vmul.f32 %v1598, %v2794
    %v3133 = vmul.f32 %v1709, %v2985
    %v3134 = vmul.f32 %v1711, %v2987
    %v3135 = vmul.f32 %v1602, %v2798
    %v3136 = vmul.f32 %v1604, %v2800
    %v3137 = vmul.f32 %v1715, %v2991
    %v3138 = vmul.f32 %v1717, %v2993
    %v3139 = vmul.f32 %v1606, %v2802
    %v3140 = vmul.f32 %v1608, %v2804
    %v3141 = vmul.f32 %v1719, %v2995
    %v3142 = vmul.f32 %v1721, %v2997
    %v3143 = vadd.f32 %v3079, %v2808
    %v3144 = vadd.f32 %v3080, %v2810
    %v3145 = vadd.f32 %v3081, %v3001
    %v3146 = vadd.f32 %v3082, %v3003
    %v3147 = vadd.f32 %v3083, %v2812
    %v3148 = vadd.f32 %v3084, %v2814
    %v3149 = vadd.f32 %v3085, %v3005
    %v3150 = vadd.f32 %v3086, %v3007
    %v3151 = vadd.f32 %v3087, %v2818
    %v3152 = vadd.f32 %v3088, %v2820
    %v3153 = vadd.f32 %v3089, %v3011
    %v3154 = vadd.f32 %v3090, %v3013
    %v3155 = vadd.f32 %v3091, %v2822
    %v3156 = vadd.f32 %v3092, %v2824
    %v3157 = vadd.f32 %v3093, %v3015
    %v3158 = vadd.f32 %v3094, %v3017
    %v3159 = vadd.f32 %v3095, %v2828
    %v3160 = vadd.f32 %v3096, %v2830
    %v3161 = vadd.f32 %v3097, %v3021
    %v3162 = vadd.f32 %v3098, %v3023
    %v3163 = vadd.f32 %v3099, %v2832
    %v3164 = vadd.f32 %v3100, %v2834
    %v3165 = vadd.f32 %v3101, %v3025
    %v3166 = vadd.f32 %v3102, %v3027
    %v3167 = vadd.f32 %v3103, %v2838
    %v3168 = vadd.f32 %v3104, %v2840
    %v3169 = vadd.f32 %v3105, %v3031
    %v3170 = vadd.f32 %v3106, %v3033
    %v3171 = vadd.f32 %v3107, %v2842
    %v3172 = vadd.f32 %v3108, %v2844
    %v3173 = vadd.f32 %v3109, %v3035
    %v3174 = vadd.f32 %v3110, %v3037
    %v3175 = vadd.f32 %v3111, %v2848
    %v3176 = vadd.f32 %v3112, %v2850
    %v3177 = vadd.f32 %v3113, %v3041
    %v3178 = vadd.f32 %v3114, %v3043
    %v3179 = vadd.f32 %v3115, %v2852
    %v3180 = vadd.f32 %v3116, %v2854
    %v3181 = vadd.f32 %v3117, %v3045
    %v3182 = vadd.f32 %v3118, %v3047
    %v3183 = vadd.f32 %v3119, %v2858
    %v3184 = vadd.f32 %v3120, %v2860
    %v3185 = vadd.f32 %v3121, %v3051
    %v3186 = vadd.f32 %v3122, %v3053
    %v3187 = vadd.f32 %v3123, %v2862
    %v3188 = vadd.f32 %v3124, %v2864
    %v3189 = vadd.f32 %v3125, %v3055
    %v3190 = vadd.f32 %v3126, %v3057
    %v3191 = vadd.f32 %v3127, %v2868
    %v3192 = vadd.f32 %v3128, %v2870
    %v3193 = vadd.f32 %v3129, %v3061
    %v3194 = vadd.f32 %v3130, %v3063
    %v3195 = vadd.f32 %v3131, %v2872
    %v3196 = vadd.f32 %v3132, %v2874
    %v3197 = vadd.f32 %v3133, %v3065
    %v3198 = vadd.f32 %v3134, %v3067
    %v3199 = vadd.f32 %v3135, %v2878
    %v3200 = vadd.f32 %v3136, %v2880
    %v3201 = vadd.f32 %v3137, %v3071
    %v3202 = vadd.f32 %v3138, %v3073
    %v3203 = vadd.f32 %v3139, %v2882
    %v3204 = vadd.f32 %v3140, %v2884
    %v3205 = vadd.f32 %v3141, %v3075
    %v3206 = vadd.f32 %v3142, %v3077
    %v3207 = vunpack.c.l.bf16 %v43
    %v3208 = vunpack.c.h.bf16 %v43
    %v3209 = vunpack.c.l.bf16 %v44
    %v3210 = vunpack.c.h.bf16 %v44
    %v3211 = vunpack.c.l.bf16 %v45
    %v3212 = vunpack.c.h.bf16 %v45
    %v3213 = vunpack.c.l.bf16 %v46
    %v3214 = vunpack.c.h.bf16 %v46
    %v3215 = vunpack.c.l.bf16 %v47
    %v3216 = vunpack.c.h.bf16 %v47
    %v3217 = vunpack.c.l.bf16 %v48
    %v3218 = vunpack.c.h.bf16 %v48
    %v3219 = vunpack.c.l.bf16 %v49
    %v3220 = vunpack.c.h.bf16 %v49
    %v3221 = vunpack.c.l.bf16 %v50
    %v3222 = vunpack.c.h.bf16 %v50
    %v3223 = vunpack.c.l.bf16 %v51
    %v3224 = vunpack.c.h.bf16 %v51
    %v3225 = vunpack.c.l.bf16 %v52
    %v3226 = vunpack.c.h.bf16 %v52
    %v3227 = vunpack.c.l.bf16 %v53
    %v3228 = vunpack.c.h.bf16 %v53
    %v3229 = vunpack.c.l.bf16 %v54
    %v3230 = vunpack.c.h.bf16 %v54
    %v3231 = vunpack.c.l.bf16 %v55
    %v3232 = vunpack.c.h.bf16 %v55
    %v3233 = vunpack.c.l.bf16 %v56
    %v3234 = vunpack.c.h.bf16 %v56
    %v3235 = vunpack.c.l.bf16 %v57
    %v3236 = vunpack.c.h.bf16 %v57
    %v3237 = vunpack.c.l.bf16 %v58
    %v3238 = vunpack.c.h.bf16 %v58
    %v3239 = vunpack.c.l.bf16 %v59
    %v3240 = vunpack.c.h.bf16 %v59
    %v3241 = vunpack.c.l.bf16 %v60
    %v3242 = vunpack.c.h.bf16 %v60
    %v3243 = vunpack.c.l.bf16 %v61
    %v3244 = vunpack.c.h.bf16 %v61
    %v3245 = vunpack.c.l.bf16 %v62
    %v3246 = vunpack.c.h.bf16 %v62
    %v3247 = vunpack.c.l.bf16 %v63
    %v3248 = vunpack.c.h.bf16 %v63
    %v3249 = vunpack.c.l.bf16 %v64
    %v3250 = vunpack.c.h.bf16 %v64
    %v3251 = vunpack.c.l.bf16 %v65
    %v3252 = vunpack.c.h.bf16 %v65
    %v3253 = vunpack.c.l.bf16 %v66
    %v3254 = vunpack.c.h.bf16 %v66
    %v3255 = vunpack.c.l.bf16 %v67
    %v3256 = vunpack.c.h.bf16 %v67
    %v3257 = vunpack.c.l.bf16 %v68
    %v3258 = vunpack.c.h.bf16 %v68
    %v3259 = vunpack.c.l.bf16 %v69
    %v3260 = vunpack.c.h.bf16 %v69
    %v3261 = vunpack.c.l.bf16 %v70
    %v3262 = vunpack.c.h.bf16 %v70
    %v3263 = vunpack.c.l.bf16 %v71
    %v3264 = vunpack.c.h.bf16 %v71
    %v3265 = vunpack.c.l.bf16 %v72
    %v3266 = vunpack.c.h.bf16 %v72
    %v3267 = vunpack.c.l.bf16 %v73
    %v3268 = vunpack.c.h.bf16 %v73
    %v3269 = vunpack.c.l.bf16 %v74
    %v3270 = vunpack.c.h.bf16 %v74
    %v3271 = vadd.f32 %v3143, %v3207
    %v3272 = vadd.f32 %v3144, %v3208
    %v3273 = vadd.f32 %v3145, %v3209
    %v3274 = vadd.f32 %v3146, %v3210
    %v3275 = vadd.f32 %v3147, %v3211
    %v3276 = vadd.f32 %v3148, %v3212
    %v3277 = vadd.f32 %v3149, %v3213
    %v3278 = vadd.f32 %v3150, %v3214
    %v3279 = vadd.f32 %v3151, %v3215
    %v3280 = vadd.f32 %v3152, %v3216
    %v3281 = vadd.f32 %v3153, %v3217
    %v3282 = vadd.f32 %v3154, %v3218
    %v3283 = vadd.f32 %v3155, %v3219
    %v3284 = vadd.f32 %v3156, %v3220
    %v3285 = vadd.f32 %v3157, %v3221
    %v3286 = vadd.f32 %v3158, %v3222
    %v3287 = vadd.f32 %v3159, %v3223
    %v3288 = vadd.f32 %v3160, %v3224
    %v3289 = vadd.f32 %v3161, %v3225
    %v3290 = vadd.f32 %v3162, %v3226
    %v3291 = vadd.f32 %v3163, %v3227
    %v3292 = vadd.f32 %v3164, %v3228
    %v3293 = vadd.f32 %v3165, %v3229
    %v3294 = vadd.f32 %v3166, %v3230
    %v3295 = vadd.f32 %v3167, %v3231
    %v3296 = vadd.f32 %v3168, %v3232
    %v3297 = vadd.f32 %v3169, %v3233
    %v3298 = vadd.f32 %v3170, %v3234
    %v3299 = vadd.f32 %v3171, %v3235
    %v3300 = vadd.f32 %v3172, %v3236
    %v3301 = vadd.f32 %v3173, %v3237
    %v3302 = vadd.f32 %v3174, %v3238
    %v3303 = vadd.f32 %v3175, %v3239
    %v3304 = vadd.f32 %v3176, %v3240
    %v3305 = vadd.f32 %v3177, %v3241
    %v3306 = vadd.f32 %v3178, %v3242
    %v3307 = vadd.f32 %v3179, %v3243
    %v3308 = vadd.f32 %v3180, %v3244
    %v3309 = vadd.f32 %v3181, %v3245
    %v3310 = vadd.f32 %v3182, %v3246
    %v3311 = vadd.f32 %v3183, %v3247
    %v3312 = vadd.f32 %v3184, %v3248
    %v3313 = vadd.f32 %v3185, %v3249
    %v3314 = vadd.f32 %v3186, %v3250
    %v3315 = vadd.f32 %v3187, %v3251
    %v3316 = vadd.f32 %v3188, %v3252
    %v3317 = vadd.f32 %v3189, %v3253
    %v3318 = vadd.f32 %v3190, %v3254
    %v3319 = vadd.f32 %v3191, %v3255
    %v3320 = vadd.f32 %v3192, %v3256
    %v3321 = vadd.f32 %v3193, %v3257
    %v3322 = vadd.f32 %v3194, %v3258
    %v3323 = vadd.f32 %v3195, %v3259
    %v3324 = vadd.f32 %v3196, %v3260
    %v3325 = vadd.f32 %v3197, %v3261
    %v3326 = vadd.f32 %v3198, %v3262
    %v3327 = vadd.f32 %v3199, %v3263
    %v3328 = vadd.f32 %v3200, %v3264
    %v3329 = vadd.f32 %v3201, %v3265
    %v3330 = vadd.f32 %v3202, %v3266
    %v3331 = vadd.f32 %v3203, %v3267
    %v3332 = vadd.f32 %v3204, %v3268
    %v3333 = vadd.f32 %v3205, %v3269
    %v3334 = vadd.f32 %v3206, %v3270
    %v3335 = vld [vmem:[%s8] sm:$0xf]
    %v3336 = vld [vmem:[%s8 + $0x4] sm:$0xf]
    %v3337 = vld [vmem:[%s8 + $0x8] sm:$0xf]
    %v3338 = vld [vmem:[%s8 + $0xc] sm:$0xf]
    %v3339 = vld [vmem:[%s8 + $0x10] sm:$0xf]
    %v3340 = vld [vmem:[%s8 + $0x14] sm:$0xf]
    %v3341 = vld [vmem:[%s8 + $0x18] sm:$0xf]
    %v3342 = vld [vmem:[%s8 + $0x1c] sm:$0xf]
    %v3343 = vld [vmem:[%s8 + $0x20] sm:$0xf]
    %v3344 = vld [vmem:[%s8 + $0x24] sm:$0xf]
    %v3345 = vld [vmem:[%s8 + $0x28] sm:$0xf]
    %v3346 = vld [vmem:[%s8 + $0x2c] sm:$0xf]
    %v3347 = vld [vmem:[%s8 + $0x30] sm:$0xf]
    %v3348 = vld [vmem:[%s8 + $0x34] sm:$0xf]
    %v3349 = vld [vmem:[%s8 + $0x38] sm:$0xf]
    %v3350 = vld [vmem:[%s8 + $0x3c] sm:$0xf]
    %v3351 = vpack.c.bf16 %v3275, %v3271
    %v3352 = vpack.c.bf16 %v3276, %v3272
    %v3353 = vpack.c.bf16 %v3277, %v3273
    %v3354 = vpack.c.bf16 %v3278, %v3274
    %v3355 = vpack.c.bf16 %v3283, %v3279
    %v3356 = vpack.c.bf16 %v3284, %v3280
    %v3357 = vpack.c.bf16 %v3285, %v3281
    %v3358 = vpack.c.bf16 %v3286, %v3282
    %v3359 = vpack.c.bf16 %v3291, %v3287
    %v3360 = vpack.c.bf16 %v3292, %v3288
    %v3361 = vpack.c.bf16 %v3293, %v3289
    %v3362 = vpack.c.bf16 %v3294, %v3290
    %v3363 = vpack.c.bf16 %v3299, %v3295
    %v3364 = vpack.c.bf16 %v3300, %v3296
    %v3365 = vpack.c.bf16 %v3301, %v3297
    %v3366 = vpack.c.bf16 %v3302, %v3298
    %v3367 = vpack.c.bf16 %v3307, %v3303
    %v3368 = vpack.c.bf16 %v3308, %v3304
    %v3369 = vpack.c.bf16 %v3309, %v3305
    %v3370 = vpack.c.bf16 %v3310, %v3306
    %v3371 = vpack.c.bf16 %v3315, %v3311
    %v3372 = vpack.c.bf16 %v3316, %v3312
    %v3373 = vpack.c.bf16 %v3317, %v3313
    %v3374 = vpack.c.bf16 %v3318, %v3314
    %v3375 = vpack.c.bf16 %v3323, %v3319
    %v3376 = vpack.c.bf16 %v3324, %v3320
    %v3377 = vpack.c.bf16 %v3325, %v3321
    %v3378 = vpack.c.bf16 %v3326, %v3322
    %v3379 = vpack.c.bf16 %v3331, %v3327
    %v3380 = vpack.c.bf16 %v3332, %v3328
    %v3381 = vpack.c.bf16 %v3333, %v3329
    %v3382 = vpack.c.bf16 %v3334, %v3330
    %v3383 = vld [vmem:[%s11] sm:$0xff]
    %v3384 = vld [vmem:[%s11 + $0x8] sm:$0xff]
    %v3385 = vld [vmem:[%s11 + $0x10] sm:$0xff]
    %v3386 = vld [vmem:[%s11 + $0x18] sm:$0xff]
    %v3387 = vld [vmem:[%s11 + $0x20] sm:$0xff]
    %v3388 = vld [vmem:[%s11 + $0x28] sm:$0xff]
    %v3389 = vld [vmem:[%s11 + $0x30] sm:$0xff]
    %v3390 = vld [vmem:[%s11 + $0x38] sm:$0xff]
    %v3391 = vld [vmem:[%s11 + $0x40] sm:$0xff]
    %v3392 = vld [vmem:[%s11 + $0x48] sm:$0xff]
    %v3393 = vld [vmem:[%s11 + $0x50] sm:$0xff]
    %v3394 = vld [vmem:[%s11 + $0x58] sm:$0xff]
    %v3395 = vld [vmem:[%s11 + $0x60] sm:$0xff]
    %v3396 = vld [vmem:[%s11 + $0x68] sm:$0xff]
    %v3397 = vld [vmem:[%s11 + $0x70] sm:$0xff]
    %v3398 = vld [vmem:[%s11 + $0x78] sm:$0xff]
    %3400 = vset.pattern.permute.xlu0 0
    %3401 = vperm.xlu0 %3400, %v3383
    %v3402 = vpop.permute.xlu0 %3401
    %3405 = vset.pattern.permute.xlu0 0
    %3406 = vperm.xlu0 %3405, %v3384
    %v3407 = vpop.permute.xlu0 %3406
    %3410 = vset.pattern.permute.xlu0 0
    %3411 = vperm.xlu0 %3410, %v3385
    %v3412 = vpop.permute.xlu0 %3411
    %3415 = vset.pattern.permute.xlu0 0
    %3416 = vperm.xlu0 %3415, %v3386
    %v3417 = vpop.permute.xlu0 %3416
    %3420 = vset.pattern.permute.xlu0 0
    %3421 = vperm.xlu0 %3420, %v3387
    %v3422 = vpop.permute.xlu0 %3421
    %3425 = vset.pattern.permute.xlu0 0
    %3426 = vperm.xlu0 %3425, %v3388
    %v3427 = vpop.permute.xlu0 %3426
    %3430 = vset.pattern.permute.xlu0 0
    %3431 = vperm.xlu0 %3430, %v3389
    %v3432 = vpop.permute.xlu0 %3431
    %3435 = vset.pattern.permute.xlu0 0
    %3436 = vperm.xlu0 %3435, %v3390
    %v3437 = vpop.permute.xlu0 %3436
    %3440 = vset.pattern.permute.xlu0 0
    %3441 = vperm.xlu0 %3440, %v3391
    %v3442 = vpop.permute.xlu0 %3441
    %3445 = vset.pattern.permute.xlu0 0
    %3446 = vperm.xlu0 %3445, %v3392
    %v3447 = vpop.permute.xlu0 %3446
    %3450 = vset.pattern.permute.xlu0 0
    %3451 = vperm.xlu0 %3450, %v3393
    %v3452 = vpop.permute.xlu0 %3451
    %3455 = vset.pattern.permute.xlu0 0
    %3456 = vperm.xlu0 %3455, %v3394
    %v3457 = vpop.permute.xlu0 %3456
    %3460 = vset.pattern.permute.xlu0 0
    %3461 = vperm.xlu0 %3460, %v3395
    %v3462 = vpop.permute.xlu0 %3461
    %3465 = vset.pattern.permute.xlu0 0
    %3466 = vperm.xlu0 %3465, %v3396
    %v3467 = vpop.permute.xlu0 %3466
    %3470 = vset.pattern.permute.xlu0 0
    %3471 = vperm.xlu0 %3470, %v3397
    %v3472 = vpop.permute.xlu0 %3471
    %3475 = vset.pattern.permute.xlu0 0
    %3476 = vperm.xlu0 %3475, %v3398
    %v3477 = vpop.permute.xlu0 %3476
    %v3495 = vunpack.c.l.b16 %v3335
    %v3496 = vunpack.c.l.b16 %v3336
    %v3497 = vunpack.c.l.b16 %v3337
    %v3498 = vunpack.c.l.b16 %v3338
    %v3499 = vunpack.c.l.b16 %v3339
    %v3500 = vunpack.c.l.b16 %v3340
    %v3501 = vunpack.c.l.b16 %v3341
    %v3502 = vunpack.c.l.b16 %v3342
    %v3503 = vunpack.c.l.b16 %v3343
    %v3504 = vunpack.c.l.b16 %v3344
    %v3505 = vunpack.c.l.b16 %v3345
    %v3506 = vunpack.c.l.b16 %v3346
    %v3507 = vunpack.c.l.b16 %v3347
    %v3508 = vunpack.c.l.b16 %v3348
    %v3509 = vunpack.c.l.b16 %v3349
    %v3510 = vunpack.c.l.b16 %v3350
    %v3511 = vpack.c.b16 %v3496, %v3495
    %v3512 = vpack.c.b16 %v3498, %v3497
    %v3513 = vpack.c.b16 %v3500, %v3499
    %v3514 = vpack.c.b16 %v3502, %v3501
    %v3515 = vpack.c.b16 %v3504, %v3503
    %v3516 = vpack.c.b16 %v3506, %v3505
    %v3517 = vpack.c.b16 %v3508, %v3507
    %v3518 = vpack.c.b16 %v3510, %v3509
    %3527 = vmatprep.subr.bf16.mxu0 %v3352
    %3528 = vmatpush1.bf16.msra.mxu0 %v3351
    %3529 = vmatprep.subr.bf16.mxu0 %v3356
    %3530 = vmatpush1.bf16.msra.mxu0 %v3355
    %3531 = vmatprep.subr.bf16.mxu0 %v3360
    %3532 = vmatpush1.bf16.msra.mxu0 %v3359
    %3533 = vmatprep.subr.bf16.mxu0 %v3364
    %3534 = vmatpush1.bf16.msra.mxu0 %v3363
    %3535 = vmatprep.subr.bf16.mxu0 %v3368
    %3536 = vmatpush1.bf16.msra.mxu0 %v3367
    %3537 = vmatprep.subr.bf16.mxu0 %v3372
    %3538 = vmatpush1.bf16.msra.mxu0 %v3371
    %3539 = vmatprep.subr.bf16.mxu0 %v3376
    %3540 = vmatpush1.bf16.msra.mxu0 %v3375
    %3541 = vmatprep.subr.bf16.mxu0 %v3380
    %3542 = vmatpush1.bf16.msra.mxu0 %v3379
    %3543 = vmatprep.subr.bf16.mxu0 0
    %3544 = vmatpush1.bf16.msra.mxu0 0
    %3545 = vmatprep.subr.bf16.mxu0 0
    %3546 = vmatpush1.bf16.msra.mxu0 0
    %3547 = vmatprep.subr.bf16.mxu0 0
    %3548 = vmatpush1.bf16.msra.mxu0 0
    %3549 = vmatprep.subr.bf16.mxu0 0
    %3550 = vmatpush1.bf16.msra.mxu0 0
    %3551 = vmatprep.subr.bf16.mxu0 0
    %3552 = vmatpush1.bf16.msra.mxu0 0
    %3553 = vmatprep.subr.bf16.mxu0 0
    %3554 = vmatpush1.bf16.msra.mxu0 0
    %3555 = vmatprep.subr.bf16.mxu0 0
    %3556 = vmatpush1.bf16.msra.mxu0 0
    %3557 = vmatprep.subr.bf16.mxu0 0
    %3558 = vmatpush1.bf16.msra.mxu0 0
    %3559 = vmatprep.mubr.bf16.mxu0 0
    %3560 = vmatmul.mubr.bf16.gmra.mrb[0].mxu0 %v3511
    %v3561 = vpop.f32.mrb[0].mxu0
    %v3562 = vadd.f32 %v3402, %v3561
    %v3563 = vpop.f32.mrb[0].mxu0
    %v3564 = vadd.f32 %v3402, %v3563
    %v3565 = vpop.f32.mrb[0].mxu0
    %v3566 = vadd.f32 %v3407, %v3565
    %v3567 = vpop.f32.mrb[0].mxu0
    %v3568 = vadd.f32 %v3407, %v3567
    %3569 = vmatprep.mubr.bf16.mxu0 0
    %3570 = vmatmul.mubr.bf16.gmra.mrb[0].mxu0 %v3512
    %v3571 = vpop.f32.mrb[0].mxu0
    %v3572 = vadd.f32 %v3412, %v3571
    %v3573 = vpop.f32.mrb[0].mxu0
    %v3574 = vadd.f32 %v3412, %v3573
    %v3575 = vpop.f32.mrb[0].mxu0
    %v3576 = vadd.f32 %v3417, %v3575
    %v3577 = vpop.f32.mrb[0].mxu0
    %v3578 = vadd.f32 %v3417, %v3577
    %3579 = vmatprep.mubr.bf16.mxu0 0
    %3580 = vmatmul.mubr.bf16.gmra.mrb[0].mxu0 %v3513
    %v3581 = vpop.f32.mrb[0].mxu0
    %v3582 = vadd.f32 %v3422, %v3581
    %v3583 = vpop.f32.mrb[0].mxu0
    %v3584 = vadd.f32 %v3422, %v3583
    %v3585 = vpop.f32.mrb[0].mxu0
    %v3586 = vadd.f32 %v3427, %v3585
    %v3587 = vpop.f32.mrb[0].mxu0
    %v3588 = vadd.f32 %v3427, %v3587
    %3589 = vmatprep.mubr.bf16.mxu0 0
    %3590 = vmatmul.mubr.bf16.gmra.mrb[0].mxu0 %v3514
    %v3591 = vpop.f32.mrb[0].mxu0
    %v3592 = vadd.f32 %v3432, %v3591
    %v3593 = vpop.f32.mrb[0].mxu0
    %v3594 = vadd.f32 %v3432, %v3593
    %v3595 = vpop.f32.mrb[0].mxu0
    %v3596 = vadd.f32 %v3437, %v3595
    %v3597 = vpop.f32.mrb[0].mxu0
    %v3598 = vadd.f32 %v3437, %v3597
    %3599 = vmatprep.mubr.bf16.mxu0 0
    %3600 = vmatmul.mubr.bf16.gmra.mrb[0].mxu0 %v3515
    %v3601 = vpop.f32.mrb[0].mxu0
    %v3602 = vadd.f32 %v3442, %v3601
    %v3603 = vpop.f32.mrb[0].mxu0
    %v3604 = vadd.f32 %v3442, %v3603
    %v3605 = vpop.f32.mrb[0].mxu0
    %v3606 = vadd.f32 %v3447, %v3605
    %v3607 = vpop.f32.mrb[0].mxu0
    %v3608 = vadd.f32 %v3447, %v3607
    %3609 = vmatprep.mubr.bf16.mxu0 0
    %3610 = vmatmul.mubr.bf16.gmra.mrb[0].mxu0 %v3516
    %v3611 = vpop.f32.mrb[0].mxu0
    %v3612 = vadd.f32 %v3452, %v3611
    %v3613 = vpop.f32.mrb[0].mxu0
    %v3614 = vadd.f32 %v3452, %v3613
    %v3615 = vpop.f32.mrb[0].mxu0
    %v3616 = vadd.f32 %v3457, %v3615
    %v3617 = vpop.f32.mrb[0].mxu0
    %v3618 = vadd.f32 %v3457, %v3617
    %3619 = vmatprep.mubr.bf16.mxu0 0
    %3620 = vmatmul.mubr.bf16.gmra.mrb[0].mxu0 %v3517
    %v3621 = vpop.f32.mrb[0].mxu0
    %v3622 = vadd.f32 %v3462, %v3621
    %v3623 = vpop.f32.mrb[0].mxu0
    %v3624 = vadd.f32 %v3462, %v3623
    %v3625 = vpop.f32.mrb[0].mxu0
    %v3626 = vadd.f32 %v3467, %v3625
    %v3627 = vpop.f32.mrb[0].mxu0
    %v3628 = vadd.f32 %v3467, %v3627
    %3629 = vmatprep.mubr.bf16.mxu0 0
    %3630 = vmatmul.mubr.bf16.gmra.mrb[0].mxu0 %v3518
    %v3631 = vpop.f32.mrb[0].mxu0
    %v3632 = vadd.f32 %v3472, %v3631
    %v3633 = vpop.f32.mrb[0].mxu0
    %v3634 = vadd.f32 %v3472, %v3633
    %v3635 = vpop.f32.mrb[0].mxu0
    %v3636 = vadd.f32 %v3477, %v3635
    %v3637 = vpop.f32.mrb[0].mxu0
    %v3638 = vadd.f32 %v3477, %v3637
    %3639 = vdwg.mxu0
    %3640 = vmatprep.subr.bf16.mxu0 %v3354
    %3641 = vmatpush1.bf16.msra.mxu0 %v3353
    %3642 = vmatprep.subr.bf16.mxu0 %v3358
    %3643 = vmatpush1.bf16.msra.mxu0 %v3357
    %3644 = vmatprep.subr.bf16.mxu0 %v3362
    %3645 = vmatpush1.bf16.msra.mxu0 %v3361
    %3646 = vmatprep.subr.bf16.mxu0 %v3366
    %3647 = vmatpush1.bf16.msra.mxu0 %v3365
    %3648 = vmatprep.subr.bf16.mxu0 %v3370
    %3649 = vmatpush1.bf16.msra.mxu0 %v3369
    %3650 = vmatprep.subr.bf16.mxu0 %v3374
    %3651 = vmatpush1.bf16.msra.mxu0 %v3373
    %3652 = vmatprep.subr.bf16.mxu0 %v3378
    %3653 = vmatpush1.bf16.msra.mxu0 %v3377
    %3654 = vmatprep.subr.bf16.mxu0 %v3382
    %3655 = vmatpush1.bf16.msra.mxu0 %v3381
    %3656 = vmatprep.subr.bf16.mxu0 0
    %3657 = vmatpush1.bf16.msra.mxu0 0
    %3658 = vmatprep.subr.bf16.mxu0 0
    %3659 = vmatpush1.bf16.msra.mxu0 0
    %3660 = vmatprep.subr.bf16.mxu0 0
    %3661 = vmatpush1.bf16.msra.mxu0 0
    %3662 = vmatprep.subr.bf16.mxu0 0
    %3663 = vmatpush1.bf16.msra.mxu0 0
    %3664 = vmatprep.subr.bf16.mxu0 0
    %3665 = vmatpush1.bf16.msra.mxu0 0
    %3666 = vmatprep.subr.bf16.mxu0 0
    %3667 = vmatpush1.bf16.msra.mxu0 0
    %3668 = vmatprep.subr.bf16.mxu0 0
    %3669 = vmatpush1.bf16.msra.mxu0 0
    %3670 = vmatprep.subr.bf16.mxu0 0
    %3671 = vmatpush1.bf16.msra.mxu0 0
    %3672 = vmatprep.mubr.bf16.mxu0 0
    %3673 = vmatmul.mubr.bf16.gmra.mrb[0].mxu0 %v3511
    %v3674 = vpop.f32.mrb[0].mxu0
    %v3675 = vadd.f32 %v3402, %v3674
    %v3676 = vpop.f32.mrb[0].mxu0
    %v3677 = vadd.f32 %v3402, %v3676
    %v3678 = vpop.f32.mrb[0].mxu0
    %v3679 = vadd.f32 %v3407, %v3678
    %v3680 = vpop.f32.mrb[0].mxu0
    %v3681 = vadd.f32 %v3407, %v3680
    %3682 = vmatprep.mubr.bf16.mxu0 0
    %3683 = vmatmul.mubr.bf16.gmra.mrb[0].mxu0 %v3512
    %v3684 = vpop.f32.mrb[0].mxu0
    %v3685 = vadd.f32 %v3412, %v3684
    %v3686 = vpop.f32.mrb[0].mxu0
    %v3687 = vadd.f32 %v3412, %v3686
    %v3688 = vpop.f32.mrb[0].mxu0
    %v3689 = vadd.f32 %v3417, %v3688
    %v3690 = vpop.f32.mrb[0].mxu0
    %v3691 = vadd.f32 %v3417, %v3690
    %3692 = vmatprep.mubr.bf16.mxu0 0
    %3693 = vmatmul.mubr.bf16.gmra.mrb[0].mxu0 %v3513
    %v3694 = vpop.f32.mrb[0].mxu0
    %v3695 = vadd.f32 %v3422, %v3694
    %v3696 = vpop.f32.mrb[0].mxu0
    %v3697 = vadd.f32 %v3422, %v3696
    %v3698 = vpop.f32.mrb[0].mxu0
    %v3699 = vadd.f32 %v3427, %v3698
    %v3700 = vpop.f32.mrb[0].mxu0
    %v3701 = vadd.f32 %v3427, %v3700
    %3702 = vmatprep.mubr.bf16.mxu0 0
    %3703 = vmatmul.mubr.bf16.gmra.mrb[0].mxu0 %v3514
    %v3704 = vpop.f32.mrb[0].mxu0
    %v3705 = vadd.f32 %v3432, %v3704
    %v3706 = vpop.f32.mrb[0].mxu0
    %v3707 = vadd.f32 %v3432, %v3706
    %v3708 = vpop.f32.mrb[0].mxu0
    %v3709 = vadd.f32 %v3437, %v3708
    %v3710 = vpop.f32.mrb[0].mxu0
    %v3711 = vadd.f32 %v3437, %v3710
    %3712 = vmatprep.mubr.bf16.mxu0 0
    %3713 = vmatmul.mubr.bf16.gmra.mrb[0].mxu0 %v3515
    %v3714 = vpop.f32.mrb[0].mxu0
    %v3715 = vadd.f32 %v3442, %v3714
    %v3716 = vpop.f32.mrb[0].mxu0
    %v3717 = vadd.f32 %v3442, %v3716
    %v3718 = vpop.f32.mrb[0].mxu0
    %v3719 = vadd.f32 %v3447, %v3718
    %v3720 = vpop.f32.mrb[0].mxu0
    %v3721 = vadd.f32 %v3447, %v3720
    %3722 = vmatprep.mubr.bf16.mxu0 0
    %3723 = vmatmul.mubr.bf16.gmra.mrb[0].mxu0 %v3516
    %v3724 = vpop.f32.mrb[0].mxu0
    %v3725 = vadd.f32 %v3452, %v3724
    %v3726 = vpop.f32.mrb[0].mxu0
    %v3727 = vadd.f32 %v3452, %v3726
    %v3728 = vpop.f32.mrb[0].mxu0
    %v3729 = vadd.f32 %v3457, %v3728
    %v3730 = vpop.f32.mrb[0].mxu0
    %v3731 = vadd.f32 %v3457, %v3730
    %3732 = vmatprep.mubr.bf16.mxu0 0
    %3733 = vmatmul.mubr.bf16.gmra.mrb[0].mxu0 %v3517
    %v3734 = vpop.f32.mrb[0].mxu0
    %v3735 = vadd.f32 %v3462, %v3734
    %v3736 = vpop.f32.mrb[0].mxu0
    %v3737 = vadd.f32 %v3462, %v3736
    %v3738 = vpop.f32.mrb[0].mxu0
    %v3739 = vadd.f32 %v3467, %v3738
    %v3740 = vpop.f32.mrb[0].mxu0
    %v3741 = vadd.f32 %v3467, %v3740
    %3742 = vmatprep.mubr.bf16.mxu0 0
    %3743 = vmatmul.mubr.bf16.gmra.mrb[0].mxu0 %v3518
    %v3744 = vpop.f32.mrb[0].mxu0
    %v3745 = vadd.f32 %v3472, %v3744
    %v3746 = vpop.f32.mrb[0].mxu0
    %v3747 = vadd.f32 %v3472, %v3746
    %v3748 = vpop.f32.mrb[0].mxu0
    %v3749 = vadd.f32 %v3477, %v3748
    %v3750 = vpop.f32.mrb[0].mxu0
    %v3751 = vadd.f32 %v3477, %v3750
    %3752 = vdwg.mxu0
    %v3753 = vmax.f32 %v3562, 0.0
    %v3754 = vmax.f32 %v3564, 0.0
    %v3755 = vmax.f32 %v3675, 0.0
    %v3756 = vmax.f32 %v3677, 0.0
    %v3757 = vmax.f32 %v3566, 0.0
    %v3758 = vmax.f32 %v3568, 0.0
    %v3759 = vmax.f32 %v3679, 0.0
    %v3760 = vmax.f32 %v3681, 0.0
    %v3761 = vmax.f32 %v3572, 0.0
    %v3762 = vmax.f32 %v3574, 0.0
    %v3763 = vmax.f32 %v3685, 0.0
    %v3764 = vmax.f32 %v3687, 0.0
    %v3765 = vmax.f32 %v3576, 0.0
    %v3766 = vmax.f32 %v3578, 0.0
    %v3767 = vmax.f32 %v3689, 0.0
    %v3768 = vmax.f32 %v3691, 0.0
    %v3769 = vmax.f32 %v3582, 0.0
    %v3770 = vmax.f32 %v3584, 0.0
    %v3771 = vmax.f32 %v3695, 0.0
    %v3772 = vmax.f32 %v3697, 0.0
    %v3773 = vmax.f32 %v3586, 0.0
    %v3774 = vmax.f32 %v3588, 0.0
    %v3775 = vmax.f32 %v3699, 0.0
    %v3776 = vmax.f32 %v3701, 0.0
    %v3777 = vmax.f32 %v3592, 0.0
    %v3778 = vmax.f32 %v3594, 0.0
    %v3779 = vmax.f32 %v3705, 0.0
    %v3780 = vmax.f32 %v3707, 0.0
    %v3781 = vmax.f32 %v3596, 0.0
    %v3782 = vmax.f32 %v3598, 0.0
    %v3783 = vmax.f32 %v3709, 0.0
    %v3784 = vmax.f32 %v3711, 0.0
    %v3785 = vmax.f32 %v3602, 0.0
    %v3786 = vmax.f32 %v3604, 0.0
    %v3787 = vmax.f32 %v3715, 0.0
    %v3788 = vmax.f32 %v3717, 0.0
    %v3789 = vmax.f32 %v3606, 0.0
    %v3790 = vmax.f32 %v3608, 0.0
    %v3791 = vmax.f32 %v3719, 0.0
    %v3792 = vmax.f32 %v3721, 0.0
    %v3793 = vmax.f32 %v3612, 0.0
    %v3794 = vmax.f32 %v3614, 0.0
    %v3795 = vmax.f32 %v3725, 0.0
    %v3796 = vmax.f32 %v3727, 0.0
    %v3797 = vmax.f32 %v3616, 0.0
    %v3798 = vmax.f32 %v3618, 0.0
    %v3799 = vmax.f32 %v3729, 0.0
    %v3800 = vmax.f32 %v3731, 0.0
    %v3801 = vmax.f32 %v3622, 0.0
    %v3802 = vmax.f32 %v3624, 0.0
    %v3803 = vmax.f32 %v3735, 0.0
    %v3804 = vmax.f32 %v3737, 0.0
    %v3805 = vmax.f32 %v3626, 0.0
    %v3806 = vmax.f32 %v3628, 0.0
    %v3807 = vmax.f32 %v3739, 0.0
    %v3808 = vmax.f32 %v3741, 0.0
    %v3809 = vmax.f32 %v3632, 0.0
    %v3810 = vmax.f32 %v3634, 0.0
    %v3811 = vmax.f32 %v3745, 0.0
    %v3812 = vmax.f32 %v3747, 0.0
    %v3813 = vmax.f32 %v3636, 0.0
    %v3814 = vmax.f32 %v3638, 0.0
    %v3815 = vmax.f32 %v3749, 0.0
    %v3816 = vmax.f32 %v3751, 0.0
    %v3817 = vld [vmem:[%s9] sm:$0xf]
    %v3818 = vld [vmem:[%s9 + $0x4] sm:$0xf]
    %v3819 = vld [vmem:[%s9 + $0x8] sm:$0xf]
    %v3820 = vld [vmem:[%s9 + $0xc] sm:$0xf]
    %v3821 = vld [vmem:[%s9 + $0x10] sm:$0xf]
    %v3822 = vld [vmem:[%s9 + $0x14] sm:$0xf]
    %v3823 = vld [vmem:[%s9 + $0x18] sm:$0xf]
    %v3824 = vld [vmem:[%s9 + $0x1c] sm:$0xf]
    %v3825 = vld [vmem:[%s9 + $0x20] sm:$0xf]
    %v3826 = vld [vmem:[%s9 + $0x24] sm:$0xf]
    %v3827 = vld [vmem:[%s9 + $0x28] sm:$0xf]
    %v3828 = vld [vmem:[%s9 + $0x2c] sm:$0xf]
    %v3829 = vld [vmem:[%s9 + $0x30] sm:$0xf]
    %v3830 = vld [vmem:[%s9 + $0x34] sm:$0xf]
    %v3831 = vld [vmem:[%s9 + $0x38] sm:$0xf]
    %v3832 = vld [vmem:[%s9 + $0x3c] sm:$0xf]
    %v3833 = vpack.c.bf16 %v3757, %v3753
    %v3834 = vpack.c.bf16 %v3758, %v3754
    %v3835 = vpack.c.bf16 %v3759, %v3755
    %v3836 = vpack.c.bf16 %v3760, %v3756
    %v3837 = vpack.c.bf16 %v3765, %v3761
    %v3838 = vpack.c.bf16 %v3766, %v3762
    %v3839 = vpack.c.bf16 %v3767, %v3763
    %v3840 = vpack.c.bf16 %v3768, %v3764
    %v3841 = vpack.c.bf16 %v3773, %v3769
    %v3842 = vpack.c.bf16 %v3774, %v3770
    %v3843 = vpack.c.bf16 %v3775, %v3771
    %v3844 = vpack.c.bf16 %v3776, %v3772
    %v3845 = vpack.c.bf16 %v3781, %v3777
    %v3846 = vpack.c.bf16 %v3782, %v3778
    %v3847 = vpack.c.bf16 %v3783, %v3779
    %v3848 = vpack.c.bf16 %v3784, %v3780
    %v3849 = vpack.c.bf16 %v3789, %v3785
    %v3850 = vpack.c.bf16 %v3790, %v3786
    %v3851 = vpack.c.bf16 %v3791, %v3787
    %v3852 = vpack.c.bf16 %v3792, %v3788
    %v3853 = vpack.c.bf16 %v3797, %v3793
    %v3854 = vpack.c.bf16 %v3798, %v3794
    %v3855 = vpack.c.bf16 %v3799, %v3795
    %v3856 = vpack.c.bf16 %v3800, %v3796
    %v3857 = vpack.c.bf16 %v3805, %v3801
    %v3858 = vpack.c.bf16 %v3806, %v3802
    %v3859 = vpack.c.bf16 %v3807, %v3803
    %v3860 = vpack.c.bf16 %v3808, %v3804
    %v3861 = vpack.c.bf16 %v3813, %v3809
    %v3862 = vpack.c.bf16 %v3814, %v3810
    %v3863 = vpack.c.bf16 %v3815, %v3811
    %v3864 = vpack.c.bf16 %v3816, %v3812
    %v3865 = vld [vmem:[%s11 + $0x80] sm:$0xff]
    %v3866 = vld [vmem:[%s11 + $0x88] sm:$0xff]
    %v3867 = vld [vmem:[%s11 + $0x90] sm:$0xff]
    %v3868 = vld [vmem:[%s11 + $0x98] sm:$0xff]
    %v3869 = vld [vmem:[%s11 + $0xa0] sm:$0xff]
    %v3870 = vld [vmem:[%s11 + $0xa8] sm:$0xff]
    %v3871 = vld [vmem:[%s11 + $0xb0] sm:$0xff]
    %v3872 = vld [vmem:[%s11 + $0xb8] sm:$0xff]
    %v3873 = vld [vmem:[%s11 + $0xc0] sm:$0xff]
    %v3874 = vld [vmem:[%s11 + $0xc8] sm:$0xff]
    %v3875 = vld [vmem:[%s11 + $0xd0] sm:$0xff]
    %v3876 = vld [vmem:[%s11 + $0xd8] sm:$0xff]
    %v3877 = vld [vmem:[%s11 + $0xe0] sm:$0xff]
    %v3878 = vld [vmem:[%s11 + $0xe8] sm:$0xff]
    %v3879 = vld [vmem:[%s11 + $0xf0] sm:$0xff]
    %v3880 = vld [vmem:[%s11 + $0xf8] sm:$0xff]
    %3882 = vset.pattern.permute.xlu0 0
    %3883 = vperm.xlu0 %3882, %v3865
    %v3884 = vpop.permute.xlu0 %3883
    %3887 = vset.pattern.permute.xlu0 0
    %3888 = vperm.xlu0 %3887, %v3866
    %v3889 = vpop.permute.xlu0 %3888
    %3892 = vset.pattern.permute.xlu0 0
    %3893 = vperm.xlu0 %3892, %v3867
    %v3894 = vpop.permute.xlu0 %3893
    %3897 = vset.pattern.permute.xlu0 0
    %3898 = vperm.xlu0 %3897, %v3868
    %v3899 = vpop.permute.xlu0 %3898
    %3902 = vset.pattern.permute.xlu0 0
    %3903 = vperm.xlu0 %3902, %v3869
    %v3904 = vpop.permute.xlu0 %3903
    %3907 = vset.pattern.permute.xlu0 0
    %3908 = vperm.xlu0 %3907, %v3870
    %v3909 = vpop.permute.xlu0 %3908
    %3912 = vset.pattern.permute.xlu0 0
    %3913 = vperm.xlu0 %3912, %v3871
    %v3914 = vpop.permute.xlu0 %3913
    %3917 = vset.pattern.permute.xlu0 0
    %3918 = vperm.xlu0 %3917, %v3872
    %v3919 = vpop.permute.xlu0 %3918
    %3922 = vset.pattern.permute.xlu0 0
    %3923 = vperm.xlu0 %3922, %v3873
    %v3924 = vpop.permute.xlu0 %3923
    %3927 = vset.pattern.permute.xlu0 0
    %3928 = vperm.xlu0 %3927, %v3874
    %v3929 = vpop.permute.xlu0 %3928
    %3932 = vset.pattern.permute.xlu0 0
    %3933 = vperm.xlu0 %3932, %v3875
    %v3934 = vpop.permute.xlu0 %3933
    %3937 = vset.pattern.permute.xlu0 0
    %3938 = vperm.xlu0 %3937, %v3876
    %v3939 = vpop.permute.xlu0 %3938
    %3942 = vset.pattern.permute.xlu0 0
    %3943 = vperm.xlu0 %3942, %v3877
    %v3944 = vpop.permute.xlu0 %3943
    %3947 = vset.pattern.permute.xlu0 0
    %3948 = vperm.xlu0 %3947, %v3878
    %v3949 = vpop.permute.xlu0 %3948
    %3952 = vset.pattern.permute.xlu0 0
    %3953 = vperm.xlu0 %3952, %v3879
    %v3954 = vpop.permute.xlu0 %3953
    %3957 = vset.pattern.permute.xlu0 0
    %3958 = vperm.xlu0 %3957, %v3880
    %v3959 = vpop.permute.xlu0 %3958
    %v3977 = vunpack.c.l.b16 %v3817
    %v3978 = vunpack.c.l.b16 %v3818
    %v3979 = vunpack.c.l.b16 %v3819
    %v3980 = vunpack.c.l.b16 %v3820
    %v3981 = vunpack.c.l.b16 %v3821
    %v3982 = vunpack.c.l.b16 %v3822
    %v3983 = vunpack.c.l.b16 %v3823
    %v3984 = vunpack.c.l.b16 %v3824
    %v3985 = vunpack.c.l.b16 %v3825
    %v3986 = vunpack.c.l.b16 %v3826
    %v3987 = vunpack.c.l.b16 %v3827
    %v3988 = vunpack.c.l.b16 %v3828
    %v3989 = vunpack.c.l.b16 %v3829
    %v3990 = vunpack.c.l.b16 %v3830
    %v3991 = vunpack.c.l.b16 %v3831
    %v3992 = vunpack.c.l.b16 %v3832
    %v3993 = vpack.c.b16 %v3978, %v3977
    %v3994 = vpack.c.b16 %v3980, %v3979
    %v3995 = vpack.c.b16 %v3982, %v3981
    %v3996 = vpack.c.b16 %v3984, %v3983
    %v3997 = vpack.c.b16 %v3986, %v3985
    %v3998 = vpack.c.b16 %v3988, %v3987
    %v3999 = vpack.c.b16 %v3990, %v3989
    %v4000 = vpack.c.b16 %v3992, %v3991
    %4009 = vmatprep.subr.bf16.mxu0 %v3834
    %4010 = vmatpush1.bf16.msra.mxu0 %v3833
    %4011 = vmatprep.subr.bf16.mxu0 %v3838
    %4012 = vmatpush1.bf16.msra.mxu0 %v3837
    %4013 = vmatprep.subr.bf16.mxu0 %v3842
    %4014 = vmatpush1.bf16.msra.mxu0 %v3841
    %4015 = vmatprep.subr.bf16.mxu0 %v3846
    %4016 = vmatpush1.bf16.msra.mxu0 %v3845
    %4017 = vmatprep.subr.bf16.mxu0 %v3850
    %4018 = vmatpush1.bf16.msra.mxu0 %v3849
    %4019 = vmatprep.subr.bf16.mxu0 %v3854
    %4020 = vmatpush1.bf16.msra.mxu0 %v3853
    %4021 = vmatprep.subr.bf16.mxu0 %v3858
    %4022 = vmatpush1.bf16.msra.mxu0 %v3857
    %4023 = vmatprep.subr.bf16.mxu0 %v3862
    %4024 = vmatpush1.bf16.msra.mxu0 %v3861
    %4025 = vmatprep.subr.bf16.mxu0 0
    %4026 = vmatpush1.bf16.msra.mxu0 0
    %4027 = vmatprep.subr.bf16.mxu0 0
    %4028 = vmatpush1.bf16.msra.mxu0 0
    %4029 = vmatprep.subr.bf16.mxu0 0
    %4030 = vmatpush1.bf16.msra.mxu0 0
    %4031 = vmatprep.subr.bf16.mxu0 0
    %4032 = vmatpush1.bf16.msra.mxu0 0
    %4033 = vmatprep.subr.bf16.mxu0 0
    %4034 = vmatpush1.bf16.msra.mxu0 0
    %4035 = vmatprep.subr.bf16.mxu0 0
    %4036 = vmatpush1.bf16.msra.mxu0 0
    %4037 = vmatprep.subr.bf16.mxu0 0
    %4038 = vmatpush1.bf16.msra.mxu0 0
    %4039 = vmatprep.subr.bf16.mxu0 0
    %4040 = vmatpush1.bf16.msra.mxu0 0
    %4041 = vmatprep.mubr.bf16.mxu0 0
    %4042 = vmatmul.mubr.bf16.gmra.mrb[0].mxu0 %v3993
    %v4043 = vpop.f32.mrb[0].mxu0
    %v4044 = vadd.f32 %v3884, %v4043
    %v4045 = vpop.f32.mrb[0].mxu0
    %v4046 = vadd.f32 %v3884, %v4045
    %v4047 = vpop.f32.mrb[0].mxu0
    %v4048 = vadd.f32 %v3889, %v4047
    %v4049 = vpop.f32.mrb[0].mxu0
    %v4050 = vadd.f32 %v3889, %v4049
    %4051 = vmatprep.mubr.bf16.mxu0 0
    %4052 = vmatmul.mubr.bf16.gmra.mrb[0].mxu0 %v3994
    %v4053 = vpop.f32.mrb[0].mxu0
    %v4054 = vadd.f32 %v3894, %v4053
    %v4055 = vpop.f32.mrb[0].mxu0
    %v4056 = vadd.f32 %v3894, %v4055
    %v4057 = vpop.f32.mrb[0].mxu0
    %v4058 = vadd.f32 %v3899, %v4057
    %v4059 = vpop.f32.mrb[0].mxu0
    %v4060 = vadd.f32 %v3899, %v4059
    %4061 = vmatprep.mubr.bf16.mxu0 0
    %4062 = vmatmul.mubr.bf16.gmra.mrb[0].mxu0 %v3995
    %v4063 = vpop.f32.mrb[0].mxu0
    %v4064 = vadd.f32 %v3904, %v4063
    %v4065 = vpop.f32.mrb[0].mxu0
    %v4066 = vadd.f32 %v3904, %v4065
    %v4067 = vpop.f32.mrb[0].mxu0
    %v4068 = vadd.f32 %v3909, %v4067
    %v4069 = vpop.f32.mrb[0].mxu0
    %v4070 = vadd.f32 %v3909, %v4069
    %4071 = vmatprep.mubr.bf16.mxu0 0
    %4072 = vmatmul.mubr.bf16.gmra.mrb[0].mxu0 %v3996
    %v4073 = vpop.f32.mrb[0].mxu0
    %v4074 = vadd.f32 %v3914, %v4073
    %v4075 = vpop.f32.mrb[0].mxu0
    %v4076 = vadd.f32 %v3914, %v4075
    %v4077 = vpop.f32.mrb[0].mxu0
    %v4078 = vadd.f32 %v3919, %v4077
    %v4079 = vpop.f32.mrb[0].mxu0
    %v4080 = vadd.f32 %v3919, %v4079
    %4081 = vmatprep.mubr.bf16.mxu0 0
    %4082 = vmatmul.mubr.bf16.gmra.mrb[0].mxu0 %v3997
    %v4083 = vpop.f32.mrb[0].mxu0
    %v4084 = vadd.f32 %v3924, %v4083
    %v4085 = vpop.f32.mrb[0].mxu0
    %v4086 = vadd.f32 %v3924, %v4085
    %v4087 = vpop.f32.mrb[0].mxu0
    %v4088 = vadd.f32 %v3929, %v4087
    %v4089 = vpop.f32.mrb[0].mxu0
    %v4090 = vadd.f32 %v3929, %v4089
    %4091 = vmatprep.mubr.bf16.mxu0 0
    %4092 = vmatmul.mubr.bf16.gmra.mrb[0].mxu0 %v3998
    %v4093 = vpop.f32.mrb[0].mxu0
    %v4094 = vadd.f32 %v3934, %v4093
    %v4095 = vpop.f32.mrb[0].mxu0
    %v4096 = vadd.f32 %v3934, %v4095
    %v4097 = vpop.f32.mrb[0].mxu0
    %v4098 = vadd.f32 %v3939, %v4097
    %v4099 = vpop.f32.mrb[0].mxu0
    %v4100 = vadd.f32 %v3939, %v4099
    %4101 = vmatprep.mubr.bf16.mxu0 0
    %4102 = vmatmul.mubr.bf16.gmra.mrb[0].mxu0 %v3999
    %v4103 = vpop.f32.mrb[0].mxu0
    %v4104 = vadd.f32 %v3944, %v4103
    %v4105 = vpop.f32.mrb[0].mxu0
    %v4106 = vadd.f32 %v3944, %v4105
    %v4107 = vpop.f32.mrb[0].mxu0
    %v4108 = vadd.f32 %v3949, %v4107
    %v4109 = vpop.f32.mrb[0].mxu0
    %v4110 = vadd.f32 %v3949, %v4109
    %4111 = vmatprep.mubr.bf16.mxu0 0
    %4112 = vmatmul.mubr.bf16.gmra.mrb[0].mxu0 %v4000
    %v4113 = vpop.f32.mrb[0].mxu0
    %v4114 = vadd.f32 %v3954, %v4113
    %v4115 = vpop.f32.mrb[0].mxu0
    %v4116 = vadd.f32 %v3954, %v4115
    %v4117 = vpop.f32.mrb[0].mxu0
    %v4118 = vadd.f32 %v3959, %v4117
    %v4119 = vpop.f32.mrb[0].mxu0
    %v4120 = vadd.f32 %v3959, %v4119
    %4121 = vdwg.mxu0
    %4122 = vmatprep.subr.bf16.mxu0 %v3836
    %4123 = vmatpush1.bf16.msra.mxu0 %v3835
    %4124 = vmatprep.subr.bf16.mxu0 %v3840
    %4125 = vmatpush1.bf16.msra.mxu0 %v3839
    %4126 = vmatprep.subr.bf16.mxu0 %v3844
    %4127 = vmatpush1.bf16.msra.mxu0 %v3843
    %4128 = vmatprep.subr.bf16.mxu0 %v3848
    %4129 = vmatpush1.bf16.msra.mxu0 %v3847
    %4130 = vmatprep.subr.bf16.mxu0 %v3852
    %4131 = vmatpush1.bf16.msra.mxu0 %v3851
    %4132 = vmatprep.subr.bf16.mxu0 %v3856
    %4133 = vmatpush1.bf16.msra.mxu0 %v3855
    %4134 = vmatprep.subr.bf16.mxu0 %v3860
    %4135 = vmatpush1.bf16.msra.mxu0 %v3859
    %4136 = vmatprep.subr.bf16.mxu0 %v3864
    %4137 = vmatpush1.bf16.msra.mxu0 %v3863
    %4138 = vmatprep.subr.bf16.mxu0 0
    %4139 = vmatpush1.bf16.msra.mxu0 0
    %4140 = vmatprep.subr.bf16.mxu0 0
    %4141 = vmatpush1.bf16.msra.mxu0 0
    %4142 = vmatprep.subr.bf16.mxu0 0
    %4143 = vmatpush1.bf16.msra.mxu0 0
    %4144 = vmatprep.subr.bf16.mxu0 0
    %4145 = vmatpush1.bf16.msra.mxu0 0
    %4146 = vmatprep.subr.bf16.mxu0 0
    %4147 = vmatpush1.bf16.msra.mxu0 0
    %4148 = vmatprep.subr.bf16.mxu0 0
    %4149 = vmatpush1.bf16.msra.mxu0 0
    %4150 = vmatprep.subr.bf16.mxu0 0
    %4151 = vmatpush1.bf16.msra.mxu0 0
    %4152 = vmatprep.subr.bf16.mxu0 0
    %4153 = vmatpush1.bf16.msra.mxu0 0
    %4154 = vmatprep.mubr.bf16.mxu0 0
    %4155 = vmatmul.mubr.bf16.gmra.mrb[0].mxu0 %v3993
    %v4156 = vpop.f32.mrb[0].mxu0
    %v4157 = vadd.f32 %v3884, %v4156
    %v4158 = vpop.f32.mrb[0].mxu0
    %v4159 = vadd.f32 %v3884, %v4158
    %v4160 = vpop.f32.mrb[0].mxu0
    %v4161 = vadd.f32 %v3889, %v4160
    %v4162 = vpop.f32.mrb[0].mxu0
    %v4163 = vadd.f32 %v3889, %v4162
    %4164 = vmatprep.mubr.bf16.mxu0 0
    %4165 = vmatmul.mubr.bf16.gmra.mrb[0].mxu0 %v3994
    %v4166 = vpop.f32.mrb[0].mxu0
    %v4167 = vadd.f32 %v3894, %v4166
    %v4168 = vpop.f32.mrb[0].mxu0
    %v4169 = vadd.f32 %v3894, %v4168
    %v4170 = vpop.f32.mrb[0].mxu0
    %v4171 = vadd.f32 %v3899, %v4170
    %v4172 = vpop.f32.mrb[0].mxu0
    %v4173 = vadd.f32 %v3899, %v4172
    %4174 = vmatprep.mubr.bf16.mxu0 0
    %4175 = vmatmul.mubr.bf16.gmra.mrb[0].mxu0 %v3995
    %v4176 = vpop.f32.mrb[0].mxu0
    %v4177 = vadd.f32 %v3904, %v4176
    %v4178 = vpop.f32.mrb[0].mxu0
    %v4179 = vadd.f32 %v3904, %v4178
    %v4180 = vpop.f32.mrb[0].mxu0
    %v4181 = vadd.f32 %v3909, %v4180
    %v4182 = vpop.f32.mrb[0].mxu0
    %v4183 = vadd.f32 %v3909, %v4182
    %4184 = vmatprep.mubr.bf16.mxu0 0
    %4185 = vmatmul.mubr.bf16.gmra.mrb[0].mxu0 %v3996
    %v4186 = vpop.f32.mrb[0].mxu0
    %v4187 = vadd.f32 %v3914, %v4186
    %v4188 = vpop.f32.mrb[0].mxu0
    %v4189 = vadd.f32 %v3914, %v4188
    %v4190 = vpop.f32.mrb[0].mxu0
    %v4191 = vadd.f32 %v3919, %v4190
    %v4192 = vpop.f32.mrb[0].mxu0
    %v4193 = vadd.f32 %v3919, %v4192
    %4194 = vmatprep.mubr.bf16.mxu0 0
    %4195 = vmatmul.mubr.bf16.gmra.mrb[0].mxu0 %v3997
    %v4196 = vpop.f32.mrb[0].mxu0
    %v4197 = vadd.f32 %v3924, %v4196
    %v4198 = vpop.f32.mrb[0].mxu0
    %v4199 = vadd.f32 %v3924, %v4198
    %v4200 = vpop.f32.mrb[0].mxu0
    %v4201 = vadd.f32 %v3929, %v4200
    %v4202 = vpop.f32.mrb[0].mxu0
    %v4203 = vadd.f32 %v3929, %v4202
    %4204 = vmatprep.mubr.bf16.mxu0 0
    %4205 = vmatmul.mubr.bf16.gmra.mrb[0].mxu0 %v3998
    %v4206 = vpop.f32.mrb[0].mxu0
    %v4207 = vadd.f32 %v3934, %v4206
    %v4208 = vpop.f32.mrb[0].mxu0
    %v4209 = vadd.f32 %v3934, %v4208
    %v4210 = vpop.f32.mrb[0].mxu0
    %v4211 = vadd.f32 %v3939, %v4210
    %v4212 = vpop.f32.mrb[0].mxu0
    %v4213 = vadd.f32 %v3939, %v4212
    %4214 = vmatprep.mubr.bf16.mxu0 0
    %4215 = vmatmul.mubr.bf16.gmra.mrb[0].mxu0 %v3999
    %v4216 = vpop.f32.mrb[0].mxu0
    %v4217 = vadd.f32 %v3944, %v4216
    %v4218 = vpop.f32.mrb[0].mxu0
    %v4219 = vadd.f32 %v3944, %v4218
    %v4220 = vpop.f32.mrb[0].mxu0
    %v4221 = vadd.f32 %v3949, %v4220
    %v4222 = vpop.f32.mrb[0].mxu0
    %v4223 = vadd.f32 %v3949, %v4222
    %4224 = vmatprep.mubr.bf16.mxu0 0
    %4225 = vmatmul.mubr.bf16.gmra.mrb[0].mxu0 %v4000
    %v4226 = vpop.f32.mrb[0].mxu0
    %v4227 = vadd.f32 %v3954, %v4226
    %v4228 = vpop.f32.mrb[0].mxu0
    %v4229 = vadd.f32 %v3954, %v4228
    %v4230 = vpop.f32.mrb[0].mxu0
    %v4231 = vadd.f32 %v3959, %v4230
    %v4232 = vpop.f32.mrb[0].mxu0
    %v4233 = vadd.f32 %v3959, %v4232
    %4234 = vdwg.mxu0
    %v4235 = vmax.f32 %v4044, 0.0
    %v4236 = vmax.f32 %v4046, 0.0
    %v4237 = vmax.f32 %v4157, 0.0
    %v4238 = vmax.f32 %v4159, 0.0
    %v4239 = vmax.f32 %v4048, 0.0
    %v4240 = vmax.f32 %v4050, 0.0
    %v4241 = vmax.f32 %v4161, 0.0
    %v4242 = vmax.f32 %v4163, 0.0
    %v4243 = vmax.f32 %v4054, 0.0
    %v4244 = vmax.f32 %v4056, 0.0
    %v4245 = vmax.f32 %v4167, 0.0
    %v4246 = vmax.f32 %v4169, 0.0
    %v4247 = vmax.f32 %v4058, 0.0
    %v4248 = vmax.f32 %v4060, 0.0
    %v4249 = vmax.f32 %v4171, 0.0
    %v4250 = vmax.f32 %v4173, 0.0
    %v4251 = vmax.f32 %v4064, 0.0
    %v4252 = vmax.f32 %v4066, 0.0
    %v4253 = vmax.f32 %v4177, 0.0
    %v4254 = vmax.f32 %v4179, 0.0
    %v4255 = vmax.f32 %v4068, 0.0
    %v4256 = vmax.f32 %v4070, 0.0
    %v4257 = vmax.f32 %v4181, 0.0
    %v4258 = vmax.f32 %v4183, 0.0
    %v4259 = vmax.f32 %v4074, 0.0
    %v4260 = vmax.f32 %v4076, 0.0
    %v4261 = vmax.f32 %v4187, 0.0
    %v4262 = vmax.f32 %v4189, 0.0
    %v4263 = vmax.f32 %v4078, 0.0
    %v4264 = vmax.f32 %v4080, 0.0
    %v4265 = vmax.f32 %v4191, 0.0
    %v4266 = vmax.f32 %v4193, 0.0
    %v4267 = vmax.f32 %v4084, 0.0
    %v4268 = vmax.f32 %v4086, 0.0
    %v4269 = vmax.f32 %v4197, 0.0
    %v4270 = vmax.f32 %v4199, 0.0
    %v4271 = vmax.f32 %v4088, 0.0
    %v4272 = vmax.f32 %v4090, 0.0
    %v4273 = vmax.f32 %v4201, 0.0
    %v4274 = vmax.f32 %v4203, 0.0
    %v4275 = vmax.f32 %v4094, 0.0
    %v4276 = vmax.f32 %v4096, 0.0
    %v4277 = vmax.f32 %v4207, 0.0
    %v4278 = vmax.f32 %v4209, 0.0
    %v4279 = vmax.f32 %v4098, 0.0
    %v4280 = vmax.f32 %v4100, 0.0
    %v4281 = vmax.f32 %v4211, 0.0
    %v4282 = vmax.f32 %v4213, 0.0
    %v4283 = vmax.f32 %v4104, 0.0
    %v4284 = vmax.f32 %v4106, 0.0
    %v4285 = vmax.f32 %v4217, 0.0
    %v4286 = vmax.f32 %v4219, 0.0
    %v4287 = vmax.f32 %v4108, 0.0
    %v4288 = vmax.f32 %v4110, 0.0
    %v4289 = vmax.f32 %v4221, 0.0
    %v4290 = vmax.f32 %v4223, 0.0
    %v4291 = vmax.f32 %v4114, 0.0
    %v4292 = vmax.f32 %v4116, 0.0
    %v4293 = vmax.f32 %v4227, 0.0
    %v4294 = vmax.f32 %v4229, 0.0
    %v4295 = vmax.f32 %v4118, 0.0
    %v4296 = vmax.f32 %v4120, 0.0
    %v4297 = vmax.f32 %v4231, 0.0
    %v4298 = vmax.f32 %v4233, 0.0
    %v4299 = vld [vmem:[%s10] sm:$0xf]
    %v4300 = vld [vmem:[%s10 + $0x4] sm:$0xf]
    %v4301 = vld [vmem:[%s10 + $0x8] sm:$0xf]
    %v4302 = vld [vmem:[%s10 + $0xc] sm:$0xf]
    %v4303 = vld [vmem:[%s10 + $0x10] sm:$0xf]
    %v4304 = vld [vmem:[%s10 + $0x14] sm:$0xf]
    %v4305 = vpack.c.bf16 %v4239, %v4235
    %v4306 = vpack.c.bf16 %v4240, %v4236
    %v4307 = vpack.c.bf16 %v4241, %v4237
    %v4308 = vpack.c.bf16 %v4242, %v4238
    %v4309 = vpack.c.bf16 %v4247, %v4243
    %v4310 = vpack.c.bf16 %v4248, %v4244
    %v4311 = vpack.c.bf16 %v4249, %v4245
    %v4312 = vpack.c.bf16 %v4250, %v4246
    %v4313 = vpack.c.bf16 %v4255, %v4251
    %v4314 = vpack.c.bf16 %v4256, %v4252
    %v4315 = vpack.c.bf16 %v4257, %v4253
    %v4316 = vpack.c.bf16 %v4258, %v4254
    %v4317 = vpack.c.bf16 %v4263, %v4259
    %v4318 = vpack.c.bf16 %v4264, %v4260
    %v4319 = vpack.c.bf16 %v4265, %v4261
    %v4320 = vpack.c.bf16 %v4266, %v4262
    %v4321 = vpack.c.bf16 %v4271, %v4267
    %v4322 = vpack.c.bf16 %v4272, %v4268
    %v4323 = vpack.c.bf16 %v4273, %v4269
    %v4324 = vpack.c.bf16 %v4274, %v4270
    %v4325 = vpack.c.bf16 %v4279, %v4275
    %v4326 = vpack.c.bf16 %v4280, %v4276
    %v4327 = vpack.c.bf16 %v4281, %v4277
    %v4328 = vpack.c.bf16 %v4282, %v4278
    %v4329 = vpack.c.bf16 %v4287, %v4283
    %v4330 = vpack.c.bf16 %v4288, %v4284
    %v4331 = vpack.c.bf16 %v4289, %v4285
    %v4332 = vpack.c.bf16 %v4290, %v4286
    %v4333 = vpack.c.bf16 %v4295, %v4291
    %v4334 = vpack.c.bf16 %v4296, %v4292
    %v4335 = vpack.c.bf16 %v4297, %v4293
    %v4336 = vpack.c.bf16 %v4298, %v4294
    %v4337 = vld [vmem:[%s11 + $0x100] sm:$0xff]
    %v4338 = vld [vmem:[%s11 + $0x108] sm:$0xff]
    %v4339 = vld [vmem:[%s11 + $0x110] sm:$0xff]
    %v4340 = vld [vmem:[%s11 + $0x118] sm:$0xff]
    %v4341 = vld [vmem:[%s11 + $0x120] sm:$0xff]
    %v4342 = vld [vmem:[%s11 + $0x128] sm:$0xff]
    %4344 = vset.pattern.permute.xlu0 0
    %4345 = vperm.xlu0 %4344, %v4337
    %v4346 = vpop.permute.xlu0 %4345
    %4349 = vset.pattern.permute.xlu0 0
    %4350 = vperm.xlu0 %4349, %v4338
    %v4351 = vpop.permute.xlu0 %4350
    %4354 = vset.pattern.permute.xlu0 0
    %4355 = vperm.xlu0 %4354, %v4339
    %v4356 = vpop.permute.xlu0 %4355
    %4359 = vset.pattern.permute.xlu0 0
    %4360 = vperm.xlu0 %4359, %v4340
    %v4361 = vpop.permute.xlu0 %4360
    %4364 = vset.pattern.permute.xlu0 0
    %4365 = vperm.xlu0 %4364, %v4341
    %v4366 = vpop.permute.xlu0 %4365
    %4369 = vset.pattern.permute.xlu0 0
    %4370 = vperm.xlu0 %4369, %v4342
    %v4371 = vpop.permute.xlu0 %4370
    %v4379 = vunpack.c.l.b16 %v4299
    %v4380 = vunpack.c.l.b16 %v4300
    %v4381 = vunpack.c.l.b16 %v4301
    %v4382 = vunpack.c.l.b16 %v4302
    %v4383 = vunpack.c.l.b16 %v4303
    %v4384 = vunpack.c.l.b16 %v4304
    %v4385 = vpack.c.b16 %v4380, %v4379
    %v4386 = vpack.c.b16 %v4382, %v4381
    %v4387 = vpack.c.b16 %v4384, %v4383
    %4391 = vmatprep.subr.bf16.mxu0 %v4306
    %4392 = vmatpush1.bf16.msra.mxu0 %v4305
    %4393 = vmatprep.subr.bf16.mxu0 %v4310
    %4394 = vmatpush1.bf16.msra.mxu0 %v4309
    %4395 = vmatprep.subr.bf16.mxu0 %v4314
    %4396 = vmatpush1.bf16.msra.mxu0 %v4313
    %4397 = vmatprep.subr.bf16.mxu0 %v4318
    %4398 = vmatpush1.bf16.msra.mxu0 %v4317
    %4399 = vmatprep.subr.bf16.mxu0 %v4322
    %4400 = vmatpush1.bf16.msra.mxu0 %v4321
    %4401 = vmatprep.subr.bf16.mxu0 %v4326
    %4402 = vmatpush1.bf16.msra.mxu0 %v4325
    %4403 = vmatprep.subr.bf16.mxu0 %v4330
    %4404 = vmatpush1.bf16.msra.mxu0 %v4329
    %4405 = vmatprep.subr.bf16.mxu0 %v4334
    %4406 = vmatpush1.bf16.msra.mxu0 %v4333
    %4407 = vmatprep.subr.bf16.mxu0 0
    %4408 = vmatpush1.bf16.msra.mxu0 0
    %4409 = vmatprep.subr.bf16.mxu0 0
    %4410 = vmatpush1.bf16.msra.mxu0 0
    %4411 = vmatprep.subr.bf16.mxu0 0
    %4412 = vmatpush1.bf16.msra.mxu0 0
    %4413 = vmatprep.subr.bf16.mxu0 0
    %4414 = vmatpush1.bf16.msra.mxu0 0
    %4415 = vmatprep.subr.bf16.mxu0 0
    %4416 = vmatpush1.bf16.msra.mxu0 0
    %4417 = vmatprep.subr.bf16.mxu0 0
    %4418 = vmatpush1.bf16.msra.mxu0 0
    %4419 = vmatprep.subr.bf16.mxu0 0
    %4420 = vmatpush1.bf16.msra.mxu0 0
    %4421 = vmatprep.subr.bf16.mxu0 0
    %4422 = vmatpush1.bf16.msra.mxu0 0
    %4423 = vmatprep.mubr.bf16.mxu0 0
    %4424 = vmatmul.mubr.bf16.gmra.mrb[0].mxu0 %v4385
    %v4425 = vpop.f32.mrb[0].mxu0
    %v4426 = vadd.f32 %v4346, %v4425
    %v4427 = vpop.f32.mrb[0].mxu0
    %v4428 = vadd.f32 %v4346, %v4427
    %v4429 = vpop.f32.mrb[0].mxu0
    %v4430 = vadd.f32 %v4351, %v4429
    %v4431 = vpop.f32.mrb[0].mxu0
    %v4432 = vadd.f32 %v4351, %v4431
    %4433 = vmatprep.mubr.bf16.mxu0 0
    %4434 = vmatmul.mubr.bf16.gmra.mrb[0].mxu0 %v4386
    %v4435 = vpop.f32.mrb[0].mxu0
    %v4436 = vadd.f32 %v4356, %v4435
    %v4437 = vpop.f32.mrb[0].mxu0
    %v4438 = vadd.f32 %v4356, %v4437
    %v4439 = vpop.f32.mrb[0].mxu0
    %v4440 = vadd.f32 %v4361, %v4439
    %v4441 = vpop.f32.mrb[0].mxu0
    %v4442 = vadd.f32 %v4361, %v4441
    %4443 = vmatprep.mubr.bf16.mxu0 0
    %4444 = vmatmul.mubr.bf16.gmra.mrb[0].mxu0 %v4387
    %v4445 = vpop.f32.mrb[0].mxu0
    %v4446 = vadd.f32 %v4366, %v4445
    %v4447 = vpop.f32.mrb[0].mxu0
    %v4448 = vadd.f32 %v4366, %v4447
    %v4449 = vpop.f32.mrb[0].mxu0
    %v4450 = vadd.f32 %v4371, %v4449
    %v4451 = vpop.f32.mrb[0].mxu0
    %v4452 = vadd.f32 %v4371, %v4451
    %4453 = vdwg.mxu0
    %4454 = vmatprep.subr.bf16.mxu0 %v4308
    %4455 = vmatpush1.bf16.msra.mxu0 %v4307
    %4456 = vmatprep.subr.bf16.mxu0 %v4312
    %4457 = vmatpush1.bf16.msra.mxu0 %v4311
    %4458 = vmatprep.subr.bf16.mxu0 %v4316
    %4459 = vmatpush1.bf16.msra.mxu0 %v4315
    %4460 = vmatprep.subr.bf16.mxu0 %v4320
    %4461 = vmatpush1.bf16.msra.mxu0 %v4319
    %4462 = vmatprep.subr.bf16.mxu0 %v4324
    %4463 = vmatpush1.bf16.msra.mxu0 %v4323
    %4464 = vmatprep.subr.bf16.mxu0 %v4328
    %4465 = vmatpush1.bf16.msra.mxu0 %v4327
    %4466 = vmatprep.subr.bf16.mxu0 %v4332
    %4467 = vmatpush1.bf16.msra.mxu0 %v4331
    %4468 = vmatprep.subr.bf16.mxu0 %v4336
    %4469 = vmatpush1.bf16.msra.mxu0 %v4335
    %4470 = vmatprep.subr.bf16.mxu0 0
    %4471 = vmatpush1.bf16.msra.mxu0 0
    %4472 = vmatprep.subr.bf16.mxu0 0
    %4473 = vmatpush1.bf16.msra.mxu0 0
    %4474 = vmatprep.subr.bf16.mxu0 0
    %4475 = vmatpush1.bf16.msra.mxu0 0
    %4476 = vmatprep.subr.bf16.mxu0 0
    %4477 = vmatpush1.bf16.msra.mxu0 0
    %4478 = vmatprep.subr.bf16.mxu0 0
    %4479 = vmatpush1.bf16.msra.mxu0 0
    %4480 = vmatprep.subr.bf16.mxu0 0
    %4481 = vmatpush1.bf16.msra.mxu0 0
    %4482 = vmatprep.subr.bf16.mxu0 0
    %4483 = vmatpush1.bf16.msra.mxu0 0
    %4484 = vmatprep.subr.bf16.mxu0 0
    %4485 = vmatpush1.bf16.msra.mxu0 0
    %4486 = vmatprep.mubr.bf16.mxu0 0
    %4487 = vmatmul.mubr.bf16.gmra.mrb[0].mxu0 %v4385
    %v4488 = vpop.f32.mrb[0].mxu0
    %v4489 = vadd.f32 %v4346, %v4488
    %v4490 = vpop.f32.mrb[0].mxu0
    %v4491 = vadd.f32 %v4346, %v4490
    %v4492 = vpop.f32.mrb[0].mxu0
    %v4493 = vadd.f32 %v4351, %v4492
    %v4494 = vpop.f32.mrb[0].mxu0
    %v4495 = vadd.f32 %v4351, %v4494
    %4496 = vmatprep.mubr.bf16.mxu0 0
    %4497 = vmatmul.mubr.bf16.gmra.mrb[0].mxu0 %v4386
    %v4498 = vpop.f32.mrb[0].mxu0
    %v4499 = vadd.f32 %v4356, %v4498
    %v4500 = vpop.f32.mrb[0].mxu0
    %v4501 = vadd.f32 %v4356, %v4500
    %v4502 = vpop.f32.mrb[0].mxu0
    %v4503 = vadd.f32 %v4361, %v4502
    %v4504 = vpop.f32.mrb[0].mxu0
    %v4505 = vadd.f32 %v4361, %v4504
    %4506 = vmatprep.mubr.bf16.mxu0 0
    %4507 = vmatmul.mubr.bf16.gmra.mrb[0].mxu0 %v4387
    %v4508 = vpop.f32.mrb[0].mxu0
    %v4509 = vadd.f32 %v4366, %v4508
    %v4510 = vpop.f32.mrb[0].mxu0
    %v4511 = vadd.f32 %v4366, %v4510
    %v4512 = vpop.f32.mrb[0].mxu0
    %v4513 = vadd.f32 %v4371, %v4512
    %v4514 = vpop.f32.mrb[0].mxu0
    %v4515 = vadd.f32 %v4371, %v4514
    %4516 = vdwg.mxu0
    %4517 = vst [vmem:[#allocation2] sm:$0xff] %v4426
    %4518 = vst [vmem:[#allocation2 + $0x8] sm:$0xff] %v4428
    %4519 = vst [vmem:[#allocation2 + $0x10] sm:$0xff] %v4489
    %4520 = vst [vmem:[#allocation2 + $0x18] sm:$0xff] %v4491
    %4521 = vst [vmem:[#allocation2 + $0x20] sm:$0xff] %v4430
    %4522 = vst [vmem:[#allocation2 + $0x28] sm:$0xff] %v4432
    %4523 = vst [vmem:[#allocation2 + $0x30] sm:$0xff] %v4493
    %4524 = vst [vmem:[#allocation2 + $0x38] sm:$0xff] %v4495
    %4525 = vst [vmem:[#allocation2 + $0x40] sm:$0xff] %v4436
    %4526 = vst [vmem:[#allocation2 + $0x48] sm:$0xff] %v4438
    %4527 = vst [vmem:[#allocation2 + $0x50] sm:$0xff] %v4499
    %4528 = vst [vmem:[#allocation2 + $0x58] sm:$0xff] %v4501
    %4529 = vst [vmem:[#allocation2 + $0x60] sm:$0xff] %v4440
    %4530 = vst [vmem:[#allocation2 + $0x68] sm:$0xff] %v4442
    %4531 = vst [vmem:[#allocation2 + $0x70] sm:$0xff] %v4503
    %4532 = vst [vmem:[#allocation2 + $0x78] sm:$0xff] %v4505
    %4533 = vst [vmem:[#allocation2 + $0x80] sm:$0xff] %v4446
    %4534 = vst [vmem:[#allocation2 + $0x88] sm:$0xff] %v4448
    %4535 = vst [vmem:[#allocation2 + $0x90] sm:$0xff] %v4509
    %4536 = vst [vmem:[#allocation2 + $0x98] sm:$0xff] %v4511
    %4537 = vst [vmem:[#allocation2 + $0xa0] sm:$0xff] %v4450
    %4538 = vst [vmem:[#allocation2 + $0xa8] sm:$0xff] %v4452
    %4539 = vst [vmem:[#allocation2 + $0xb0] sm:$0xff] %v4513
    %4540 = vst [vmem:[#allocation2 + $0xb8] sm:$0xff] %v4515
    // Predicated region
    $region50: #{tpu_custom_call.1} parent=1 // pred_check
      _
    $region51: #{tpu_custom_call.1} parent=1 // pred_check_branch
      %4542 = sbr.rel (0) target = $region53
    $region52: #{tpu_custom_call.1} parent=1 // pred_region
      %s4544 = ssub.s32 3072, 3072
      %4545 = vsyncadd [#allocation3], %s4544
      %s4546 = sshll.u32 [#allocation2], 4
      %s4547 = int_to_ptr.vmem [resolvable:$true] %s4546
      %4552 = dma.vmem_to_hbm [thread:$0]  %s4547, 3072, %s12, [#allocation3], 512, 512, 32
    $region53: #{tpu_custom_call.1} parent=1 // pred_fallthru
      _
    // Predicated region
    $region54: #{tpu_custom_call.1} parent=1 // pred_check
      _
    $region55: #{tpu_custom_call.1} parent=1 // pred_check_branch
      %4554 = sbr.rel (0) target = $region57
    $region56: #{tpu_custom_call.1} parent=1 // pred_region
      %4555 = dma.done [#allocation3], 3072
    $region57: #{tpu_custom_call.1} parent=1 // pred_fallthru
      _
    %4556 = vsyncpa [#allocation3], 1

</llo_original>
